<compile_context>
chip_gen: v7x
topology: tpu7x:2x2x1
jax: 0.10.0
libtpu: 0.0.40
codegen_flags: <defaults>
</compile_context>

<pallas_src>
import jax
import jax.numpy as jnp
from jax import lax
from jax.experimental import pallas as pl
from jax.experimental.pallas import tpu as pltpu


# ----------------------------- fused Pallas kernel -----------------------------

def _make_kernel(*, N, C, P, H, W, LW, LBUF, TBASE, eps):
    Wp = W + 2
    HW = H * W

    def conv9(w_ref, kg, load):
        """3x3 conv as 9 accumulating MXU dots: sum_k W[:, k*kg:(k+1)*kg] @ window_k -> f32."""
        acc = None
        for k in range(9):
            kh, kw = divmod(k, 3)
            off = TBASE + (kh - 1) * Wp + (kw - 1)   # static lane offset of tap (kh, kw)
            t = jnp.dot(w_ref[:, k * kg:(k + 1) * kg], load(off),
                        preferred_element_type=jnp.float32)
            acc = t if acc is None else acc + t
        return acc                                    # (P, LW) f32

    def kernel(x_ref, w1_ref, w2_ref, gamma_ref, beta_ref, mask_ref,   # inputs
               out_ref,                                                # output (P, LW)
               mid_ref, mean_ref, m2_ref, inv_ref, shift_ref):         # scratch
        phase = pl.program_id(0)
        n = pl.program_id(1)

        # ---------------- phase 0: conv1 + batch-stat reduction ----------------
        @pl.when(phase == 0)
        def _conv1_and_stats():
            @pl.when(n == 0)
            def _init():
                # Zero only the pad-guard strips: the [TBASE, TBASE+LW) window is fully
                # overwritten every phase-0 step, so a full-buffer memset is wasted vst.
                mid_ref[:, :, :TBASE] = jnp.zeros((N, P, TBASE), mid_ref.dtype)
                mid_ref[:, :, TBASE + LW:] = jnp.zeros((N, P, LBUF - TBASE - LW),
                                                       mid_ref.dtype)
                mean_ref[...] = jnp.zeros_like(mean_ref)
                m2_ref[...] = jnp.zeros_like(m2_ref)

            y = conv9(w1_ref, C, lambda off: x_ref[:, off:off + LW])   # raw conv1 (P, LW) f32
            # NOTE: y has pad-ring / lane-slack garbage outside the interior; the stats below
            # mask it and phase 1 re-masks before conv2 -- never read mid unmasked elsewhere.
            mid_ref[n, :, TBASE:TBASE + LW] = y.astype(mid_ref.dtype)

            mask = mask_ref[...]                                       # (1, LW): 1 on interior
            mean_n = jnp.sum(y * mask, axis=-1, keepdims=True) * (1.0 / HW)
            d = (y - mean_n) * mask
            m2_n = jnp.sum(d * d, axis=-1, keepdims=True)
            # Chan / Welford combine of per-image stats -> numerically stable batch variance.
            nf = n.astype(jnp.float32)
            delta = mean_n - mean_ref[...]
            mean_ref[...] = mean_ref[...] + delta * (1.0 / (nf + 1.0))
            m2_ref[...] = m2_ref[...] + m2_n + delta * delta * (HW * nf / (nf + 1.0))

        # ---------------- phase 1: BN + ReLU + conv2 + residual ----------------
        @pl.when(phase == 1)
        def _bn_relu_conv2_residual():
            @pl.when(n == 0)
            def _finalize_stats():
                var = m2_ref[...] * (1.0 / (N * HW))                   # biased (torch train BN)
                inv = gamma_ref[...] * lax.rsqrt(var + eps)
                inv_ref[...] = inv
                shift_ref[...] = beta_ref[...] - mean_ref[...] * inv

            y = mid_ref[n, :, TBASE:TBASE + LW].astype(jnp.float32)
            # Mask zeroes the pad ring / slack so conv2's shifted slices see true zero padding.
            m = jnp.maximum(y * inv_ref[...] + shift_ref[...], 0.0) * mask_ref[...]
            mid_ref[n, :, TBASE:TBASE + LW] = m.astype(mid_ref.dtype)
            z = conv9(w2_ref, P, lambda off: mid_ref[n, :, off:off + LW])
            out_ref[...] = z + x_ref[:, TBASE:TBASE + LW].astype(jnp.float32)

    return kernel


# ----------------------------- wrapper -----------------------------

def basic_block_forward(x_nchw, w1_oihw, w2_oihw, gamma, beta, *,
                        compute_dtype=jnp.float32, eps=1e-5):
    """Forward of BasicBlock(inplanes=C, planes=P, stride=1). NCHW in, NCHW out (f32)."""
    N, C, H, W = x_nchw.shape
    P = w1_oihw.shape[0]
    assert P == C, "residual add requires inplanes == planes"
    Hp, Wp = H + 2, W + 2
    Lpad = Hp * Wp                                   # flattened padded image length
    GUARD = Wp + 1                                   # largest |tap offset| in flat layout
    TBASE = -(-GUARD // 128) * 128                   # lane-ALIGNED image origin (>= GUARD)
    LW = -(-Lpad // 128) * 128                       # lane-aligned compute window
    LBUF = -(-(TBASE + LW + GUARD) // 128) * 128     # per-image buffer length
    HW = H * W

    # ONE flattened, zero-padded copy of the input -- no HBM im2col blow-up.
    xb = x_nchw.astype(compute_dtype)
    xb = jnp.pad(xb, ((0, 0), (0, 0), (1, 1), (1, 1))).reshape(N, C, Lpad)
    xb = jnp.pad(xb, ((0, 0), (0, 0), (TBASE, LBUF - TBASE - Lpad)))        # (N, C, LBUF)

    # OIHW -> (P, kh, kw, Cin) -> (P, 9*Cin): per-tap (P, Cin) blocks are contiguous slices.
    w1cat = jnp.transpose(w1_oihw, (0, 2, 3, 1)).reshape(P, 9 * C).astype(compute_dtype)
    w2cat = jnp.transpose(w2_oihw, (0, 2, 3, 1)).reshape(P, 9 * P).astype(compute_dtype)
    g = gamma.reshape(P, 1).astype(jnp.float32)
    b = beta.reshape(P, 1).astype(jnp.float32)

    # 1.0 on interior (valid output) window positions, 0.0 on the pad ring / alignment slack.
    u = jnp.arange(LW)
    r, c = u // Wp, u % Wp
    interior = (u < Lpad) & (r >= 1) & (r <= H) & (c >= 1) & (c <= W)
    mask = interior.astype(jnp.float32).reshape(1, LW)

    kernel = _make_kernel(N=N, C=C, P=P, H=H, W=W, LW=LW, LBUF=LBUF, TBASE=TBASE, eps=eps)

    # Chip-aware VMEM budget: ~3/4 of physical, capped at 100 MiB
    # (~96-100 MiB on v5e/v6e with 128 MiB physical, ~48 MiB on v7x with 64 MiB physical).
    try:
        vmem_cap = pltpu.get_tpu_info().vmem_capacity_bytes
    except Exception:
        vmem_cap = 128 * 1024 * 1024
    vmem_limit = int(min(vmem_cap * 3 // 4, 100 * 1024 * 1024))

    itm = jnp.dtype(compute_dtype).itemsize
    cost = pl.CostEstimate(
        flops=4 * N * HW * 9 * C * P,                       # two 3x3 convs as matmuls
        transcendentals=P,                                  # per-channel rsqrt
        bytes_accessed=(2 * N * C * LBUF * itm              # x read in both phases
                        + (P * 9 * C + P * 9 * P) * itm     # weights
                        + (2 * P + LW) * 4                  # gamma/beta/mask
                        + N * P * LW * 4),                  # output written exactly once
    )

    out_win = pl.pallas_call(
        kernel,
        out_shape=jax.ShapeDtypeStruct((N, P, LW), jnp.float32),
        grid_spec=pltpu.PrefetchScalarGridSpec(
            num_scalar_prefetch=0,
            grid=(2, N),                                    # (phase, image); phase is OUTER
            in_specs=[
                pl.BlockSpec((None, C, LBUF), lambda p, n: (n, 0, 0)),   # per-image activations
                pl.BlockSpec((P, 9 * C), lambda p, n: (0, 0)),           # resident weights
                pl.BlockSpec((P, 9 * P), lambda p, n: (0, 0)),
                pl.BlockSpec((P, 1), lambda p, n: (0, 0)),               # gamma
                pl.BlockSpec((P, 1), lambda p, n: (0, 0)),               # beta
                pl.BlockSpec((1, LW), lambda p, n: (0, 0)),              # interior mask
            ],
            # Phase-0 steps all alias block 0 (never written there); it is only flushed after
            # phase-1 n=0 overwrites it -> each HBM output block is written exactly once.
            out_specs=pl.BlockSpec((None, P, LW), lambda p, n: (n * p, 0, 0)),
            scratch_shapes=[
                pltpu.VMEM((N, P, LBUF), compute_dtype),  # fused intermediate (never hits HBM)
                pltpu.VMEM((P, 1), jnp.float32),          # running batch mean
                pltpu.VMEM((P, 1), jnp.float32),          # running batch M2
                pltpu.VMEM((P, 1), jnp.float32),          # gamma * rsqrt(var + eps)
                pltpu.VMEM((P, 1), jnp.float32),          # beta - mean * inv
            ],
        ),
        compiler_params=pltpu.CompilerParams(
            # Both axes "arbitrary": training-mode BN batch stats are a grid-carried reduction
            # (phase 0) consumed by every phase-1 step, so iterations are order-dependent and
            # the phase axis must stay the outer, sequential one.
            dimension_semantics=("arbitrary", "arbitrary"),
            vmem_limit_bytes=vmem_limit,
        ),
        cost_estimate=cost,
    )(xb, w1cat, w2cat, g, b, mask)

    # Window coords == padded-image coords: strip the pad ring -> NCHW, no transpose needed.
    out = out_win[:, :, :Lpad].reshape(N, P, Hp, Wp)[:, :, 1:H + 1, 1:W + 1]
    return out


# ----------------------------- pure-JAX reference -----------------------------

def ref_forward(x_nchw, w1, w2, gamma, beta, eps=1e-5):
    dn = lax.conv_dimension_numbers(x_nchw.shape, w1.shape, ("NCHW", "OIHW", "NCHW"))
    y = lax.conv_general_dilated(x_nchw, w1, (1, 1), "SAME", dimension_numbers=dn,
                                 precision=lax.Precision.HIGHEST)
    mean = y.mean(axis=(0, 2, 3), keepdims=True)
    var = y.var(axis=(0, 2, 3), keepdims=True)               # biased, as torch training-mode BN
    y = (y - mean) / jnp.sqrt(var + eps) * gamma.reshape(1, -1, 1, 1) + beta.reshape(1, -1, 1, 1)
    y = jnp.maximum(y, 0.0)
    z = lax.conv_general_dilated(y, w2, (1, 1), "SAME", dimension_numbers=dn,
                                 precision=lax.Precision.HIGHEST)
    return z + x_nchw


# ----------------------------- main -----------------------------

if __name__ == "__main__":
    key = jax.random.PRNGKey(0)
    k1, k2, k3, k4, k5 = jax.random.split(key, 5)

    N, C, H, W = 2, 4, 16, 16       # inplanes == planes (required for the residual add)
    P = C

    x = jax.random.normal(k1, (N, C, H, W), jnp.float32)
    w1 = 0.1 * jax.random.normal(k2, (P, C, 3, 3), jnp.float32)     # conv1.weight (OIHW, no bias)
    w2 = 0.1 * jax.random.normal(k3, (P, P, 3, 3), jnp.float32)     # conv2.weight (OIHW, no bias)
    gamma = 1.0 + 0.1 * jax.random.normal(k4, (P,), jnp.float32)    # bn1.weight
    beta = 0.1 * jax.random.normal(k5, (P,), jnp.float32)           # bn1.bias

    ref = jax.block_until_ready(ref_forward(x, w1, w2, gamma, beta))

    # f32 compute path.  Tolerance covers the MXU's default f32 matmul handling; the BN
    # variance itself uses a stable Welford/Chan reduction (no cancellation).
    out = jax.block_until_ready(basic_block_forward(x, w1, w2, gamma, beta))
    assert out.shape == (N, P, H, W), out.shape
    err_f32 = float(jnp.max(jnp.abs(out - ref)))
    assert err_f32 < 5e-2, f"f32 max abs err too large: {err_f32}"

    # bf16 compute path (half the HBM/VMEM bytes, bf16 mid scratch; f32 MXU accumulation and
    # f32 BN math).
    out_bf16 = jax.block_until_ready(
        basic_block_forward(x, w1, w2, gamma, beta, compute_dtype=jnp.bfloat16))
    err_bf16 = float(jnp.max(jnp.abs(out_bf16 - ref)))
    assert err_bf16 < 1.5e-1, f"bf16 max abs err too large: {err_bf16}"

    print("KERNEL_OK")
</pallas_src>

<mosaic_0001>
module attributes {stable_mosaic.version = 11 : i64} {
  func.func @kernel(%arg0: i32, %arg1: i32, %arg2: memref<1x4x640xf32, #tpu.memory_space<vmem>>, %arg3: memref<4x36xf32, #tpu.memory_space<vmem>>, %arg4: memref<4x36xf32, #tpu.memory_space<vmem>>, %arg5: memref<4x1xf32, #tpu.memory_space<vmem>>, %arg6: memref<4x1xf32, #tpu.memory_space<vmem>>, %arg7: memref<1x384xf32, #tpu.memory_space<vmem>>, %arg8: memref<1x4x384xf32, #tpu.memory_space<vmem>>, %arg9: memref<2x4x640xf32, #tpu.memory_space<vmem>>, %arg10: memref<4x1xf32, #tpu.memory_space<vmem>>, %arg11: memref<4x1xf32, #tpu.memory_space<vmem>>, %arg12: memref<4x1xf32, #tpu.memory_space<vmem>>, %arg13: memref<4x1xf32, #tpu.memory_space<vmem>>) attributes {dimension_semantics = [#tpu.dimension_semantics<arbitrary>, #tpu.dimension_semantics<arbitrary>], iteration_bounds = array<i64: 2, 2>, scalar_prefetch = 0 : i64, scratch_operands = 5 : i64, tpu.core_type = #tpu.core_type<tc>, window_params = [{transform_indices = @transform_0, window_bounds = array<i64: 1, 4, 640>}, {pipeline_mode = #tpu.pipeline_mode<synchronous>, transform_indices = @transform_1, window_bounds = array<i64: 4, 36>}, {pipeline_mode = #tpu.pipeline_mode<synchronous>, transform_indices = @transform_2, window_bounds = array<i64: 4, 36>}, {pipeline_mode = #tpu.pipeline_mode<synchronous>, transform_indices = @transform_3, window_bounds = array<i64: 4, 1>}, {pipeline_mode = #tpu.pipeline_mode<synchronous>, transform_indices = @transform_4, window_bounds = array<i64: 4, 1>}, {pipeline_mode = #tpu.pipeline_mode<synchronous>, transform_indices = @transform_5, window_bounds = array<i64: 1, 384>}, {transform_indices = @transform_6, window_bounds = array<i64: 1, 4, 384>}]} {
    %c0_i32 = arith.constant 0 : i32
    %0 = arith.cmpi eq, %arg0, %c0_i32 : i32
    %1 = arith.extui %0 : i1 to i32
    %c0_i32_0 = arith.constant 0 : i32
    %2 = arith.cmpi ne, %1, %c0_i32_0 : i32
    scf.if %2 {
      %c0_i32_2 = arith.constant 0 : i32
      %6 = arith.cmpi eq, %arg1, %c0_i32_2 : i32
      %7 = arith.extui %6 : i1 to i32
      %c0_i32_3 = arith.constant 0 : i32
      %8 = arith.cmpi ne, %7, %c0_i32_3 : i32
      scf.if %8 {
        %cst_60 = arith.constant 0.000000e+00 : f32
        %91 = vector.broadcast %cst_60 : f32 to vector<2x4x128xf32>
        %c0_61 = arith.constant 0 : index
        %c0_62 = arith.constant 0 : index
        %c0_63 = arith.constant 0 : index
        %92 = vector.load %arg9[%c0_61, %c0_62, %c0_63] : memref<2x4x640xf32, #tpu.memory_space<vmem>>, vector<2x4x128xf32>
        tpu.vector_store %arg9[%c0_61, %c0_62, %c0_63], %91 {strides = array<i32>} : memref<2x4x640xf32, #tpu.memory_space<vmem>>, vector<2x4x128xf32>,
        %cst_64 = arith.constant 0.000000e+00 : f32
        %93 = vector.broadcast %cst_64 : f32 to vector<2x4x128xf32>
        %c0_65 = arith.constant 0 : index
        %c0_66 = arith.constant 0 : index
        %c512 = arith.constant 512 : index
        %94 = vector.load %arg9[%c0_65, %c0_66, %c512] : memref<2x4x640xf32, #tpu.memory_space<vmem>>, vector<2x4x128xf32>
        tpu.vector_store %arg9[%c0_65, %c0_66, %c512], %93 {strides = array<i32>} : memref<2x4x640xf32, #tpu.memory_space<vmem>>, vector<2x4x128xf32>,
        %cst_67 = arith.constant 0.000000e+00 : f32
        %95 = vector.broadcast %cst_67 : f32 to vector<4x1xf32>
        %c0_68 = arith.constant 0 : index
        %c0_69 = arith.constant 0 : index
        %96 = vector.load %arg10[%c0_68, %c0_69] : memref<4x1xf32, #tpu.memory_space<vmem>>, vector<4x1xf32>
        tpu.vector_store %arg10[%c0_68, %c0_69], %95 {strides = array<i32>} : memref<4x1xf32, #tpu.memory_space<vmem>>, vector<4x1xf32>,
        %cst_70 = arith.constant 0.000000e+00 : f32
        %97 = vector.broadcast %cst_70 : f32 to vector<4x1xf32>
        %c0_71 = arith.constant 0 : index
        %c0_72 = arith.constant 0 : index
        %98 = vector.load %arg11[%c0_71, %c0_72] : memref<4x1xf32, #tpu.memory_space<vmem>>, vector<4x1xf32>
        tpu.vector_store %arg11[%c0_71, %c0_72], %97 {strides = array<i32>} : memref<4x1xf32, #tpu.memory_space<vmem>>, vector<4x1xf32>,
      } else {
      }
      %c0 = arith.constant 0 : index
      %c0_4 = arith.constant 0 : index
      %9 = vector.load %arg3[%c0, %c0_4] : memref<4x36xf32, #tpu.memory_space<vmem>>, vector<4x4xf32>
      %c0_5 = arith.constant 0 : index
      %c0_6 = arith.constant 0 : index
      %c109 = arith.constant 109 : index
      %10 = vector.load %arg2[%c0_5, %c0_6, %c109] : memref<1x4x640xf32, #tpu.memory_space<vmem>>, vector<1x4x384xf32>
      %11 = vector.shape_cast %10 : vector<1x4x384xf32> to vector<4x384xf32>
      %cst = arith.constant dense<0.000000e+00> : vector<4x384xf32>
      %12 = tpu.matmul %9, %11, %cst {dimension_numbers = #tpu.dot_dimension_numbers<[1], [0], [0], [1], [0, 0, 1, 1], [], []>} : vector<4x4xf32>, vector<4x384xf32>, vector<4x384xf32> -> vector<4x384xf32>
      %c0_7 = arith.constant 0 : index
      %c4 = arith.constant 4 : index
      %13 = vector.load %arg3[%c0_7, %c4] : memref<4x36xf32, #tpu.memory_space<vmem>>, vector<4x4xf32>
      %c0_8 = arith.constant 0 : index
      %c0_9 = arith.constant 0 : index
      %c110 = arith.constant 110 : index
      %14 = vector.load %arg2[%c0_8, %c0_9, %c110] : memref<1x4x640xf32, #tpu.memory_space<vmem>>, vector<1x4x384xf32>
      %15 = vector.shape_cast %14 : vector<1x4x384xf32> to vector<4x384xf32>
      %cst_10 = arith.constant dense<0.000000e+00> : vector<4x384xf32>
      %16 = tpu.matmul %13, %15, %cst_10 {dimension_numbers = #tpu.dot_dimension_numbers<[1], [0], [0], [1], [0, 0, 1, 1], [], []>} : vector<4x4xf32>, vector<4x384xf32>, vector<4x384xf32> -> vector<4x384xf32>
      %17 = arith.addf %12, %16 : vector<4x384xf32>
      %c0_11 = arith.constant 0 : index
      %c8 = arith.constant 8 : index
      %18 = vector.load %arg3[%c0_11, %c8] : memref<4x36xf32, #tpu.memory_space<vmem>>, vector<4x4xf32>
      %c0_12 = arith.constant 0 : index
      %c0_13 = arith.constant 0 : index
      %c111 = arith.constant 111 : index
      %19 = vector.load %arg2[%c0_12, %c0_13, %c111] : memref<1x4x640xf32, #tpu.memory_space<vmem>>, vector<1x4x384xf32>
      %20 = vector.shape_cast %19 : vector<1x4x384xf32> to vector<4x384xf32>
      %cst_14 = arith.constant dense<0.000000e+00> : vector<4x384xf32>
      %21 = tpu.matmul %18, %20, %cst_14 {dimension_numbers = #tpu.dot_dimension_numbers<[1], [0], [0], [1], [0, 0, 1, 1], [], []>} : vector<4x4xf32>, vector<4x384xf32>, vector<4x384xf32> -> vector<4x384xf32>
      %22 = arith.addf %17, %21 : vector<4x384xf32>
      %c0_15 = arith.constant 0 : index
      %c12 = arith.constant 12 : index
      %23 = vector.load %arg3[%c0_15, %c12] : memref<4x36xf32, #tpu.memory_space<vmem>>, vector<4x4xf32>
      %c0_16 = arith.constant 0 : index
      %c0_17 = arith.constant 0 : index
      %c127 = arith.constant 127 : index
      %24 = vector.load %arg2[%c0_16, %c0_17, %c127] : memref<1x4x640xf32, #tpu.memory_space<vmem>>, vector<1x4x384xf32>
      %25 = vector.shape_cast %24 : vector<1x4x384xf32> to vector<4x384xf32>
      %cst_18 = arith.constant dense<0.000000e+00> : vector<4x384xf32>
      %26 = tpu.matmul %23, %25, %cst_18 {dimension_numbers = #tpu.dot_dimension_numbers<[1], [0], [0], [1], [0, 0, 1, 1], [], []>} : vector<4x4xf32>, vector<4x384xf32>, vector<4x384xf32> -> vector<4x384xf32>
      %27 = arith.addf %22, %26 : vector<4x384xf32>
      %c0_19 = arith.constant 0 : index
      %c16 = arith.constant 16 : index
      %28 = vector.load %arg3[%c0_19, %c16] : memref<4x36xf32, #tpu.memory_space<vmem>>, vector<4x4xf32>
      %c0_20 = arith.constant 0 : index
      %c0_21 = arith.constant 0 : index
      %c128 = arith.constant 128 : index
      %29 = vector.load %arg2[%c0_20, %c0_21, %c128] : memref<1x4x640xf32, #tpu.memory_space<vmem>>, vector<1x4x384xf32>
      %30 = vector.shape_cast %29 : vector<1x4x384xf32> to vector<4x384xf32>
      %cst_22 = arith.constant dense<0.000000e+00> : vector<4x384xf32>
      %31 = tpu.matmul %28, %30, %cst_22 {dimension_numbers = #tpu.dot_dimension_numbers<[1], [0], [0], [1], [0, 0, 1, 1], [], []>} : vector<4x4xf32>, vector<4x384xf32>, vector<4x384xf32> -> vector<4x384xf32>
      %32 = arith.addf %27, %31 : vector<4x384xf32>
      %c0_23 = arith.constant 0 : index
      %c20 = arith.constant 20 : index
      %33 = vector.load %arg3[%c0_23, %c20] : memref<4x36xf32, #tpu.memory_space<vmem>>, vector<4x4xf32>
      %c0_24 = arith.constant 0 : index
      %c0_25 = arith.constant 0 : index
      %c129 = arith.constant 129 : index
      %34 = vector.load %arg2[%c0_24, %c0_25, %c129] : memref<1x4x640xf32, #tpu.memory_space<vmem>>, vector<1x4x384xf32>
      %35 = vector.shape_cast %34 : vector<1x4x384xf32> to vector<4x384xf32>
      %cst_26 = arith.constant dense<0.000000e+00> : vector<4x384xf32>
      %36 = tpu.matmul %33, %35, %cst_26 {dimension_numbers = #tpu.dot_dimension_numbers<[1], [0], [0], [1], [0, 0, 1, 1], [], []>} : vector<4x4xf32>, vector<4x384xf32>, vector<4x384xf32> -> vector<4x384xf32>
      %37 = arith.addf %32, %36 : vector<4x384xf32>
      %c0_27 = arith.constant 0 : index
      %c24 = arith.constant 24 : index
      %38 = vector.load %arg3[%c0_27, %c24] : memref<4x36xf32, #tpu.memory_space<vmem>>, vector<4x4xf32>
      %c0_28 = arith.constant 0 : index
      %c0_29 = arith.constant 0 : index
      %c145 = arith.constant 145 : index
      %39 = vector.load %arg2[%c0_28, %c0_29, %c145] : memref<1x4x640xf32, #tpu.memory_space<vmem>>, vector<1x4x384xf32>
      %40 = vector.shape_cast %39 : vector<1x4x384xf32> to vector<4x384xf32>
      %cst_30 = arith.constant dense<0.000000e+00> : vector<4x384xf32>
      %41 = tpu.matmul %38, %40, %cst_30 {dimension_numbers = #tpu.dot_dimension_numbers<[1], [0], [0], [1], [0, 0, 1, 1], [], []>} : vector<4x4xf32>, vector<4x384xf32>, vector<4x384xf32> -> vector<4x384xf32>
      %42 = arith.addf %37, %41 : vector<4x384xf32>
      %c0_31 = arith.constant 0 : index
      %c28 = arith.constant 28 : index
      %43 = vector.load %arg3[%c0_31, %c28] : memref<4x36xf32, #tpu.memory_space<vmem>>, vector<4x4xf32>
      %c0_32 = arith.constant 0 : index
      %c0_33 = arith.constant 0 : index
      %c146 = arith.constant 146 : index
      %44 = vector.load %arg2[%c0_32, %c0_33, %c146] : memref<1x4x640xf32, #tpu.memory_space<vmem>>, vector<1x4x384xf32>
      %45 = vector.shape_cast %44 : vector<1x4x384xf32> to vector<4x384xf32>
      %cst_34 = arith.constant dense<0.000000e+00> : vector<4x384xf32>
      %46 = tpu.matmul %43, %45, %cst_34 {dimension_numbers = #tpu.dot_dimension_numbers<[1], [0], [0], [1], [0, 0, 1, 1], [], []>} : vector<4x4xf32>, vector<4x384xf32>, vector<4x384xf32> -> vector<4x384xf32>
      %47 = arith.addf %42, %46 : vector<4x384xf32>
      %c0_35 = arith.constant 0 : index
      %c32 = arith.constant 32 : index
      %48 = vector.load %arg3[%c0_35, %c32] : memref<4x36xf32, #tpu.memory_space<vmem>>, vector<4x4xf32>
      %c0_36 = arith.constant 0 : index
      %c0_37 = arith.constant 0 : index
      %c147 = arith.constant 147 : index
      %49 = vector.load %arg2[%c0_36, %c0_37, %c147] : memref<1x4x640xf32, #tpu.memory_space<vmem>>, vector<1x4x384xf32>
      %50 = vector.shape_cast %49 : vector<1x4x384xf32> to vector<4x384xf32>
      %cst_38 = arith.constant dense<0.000000e+00> : vector<4x384xf32>
      %51 = tpu.matmul %48, %50, %cst_38 {dimension_numbers = #tpu.dot_dimension_numbers<[1], [0], [0], [1], [0, 0, 1, 1], [], []>} : vector<4x4xf32>, vector<4x384xf32>, vector<4x384xf32> -> vector<4x384xf32>
      %52 = arith.addf %47, %51 : vector<4x384xf32>
      %53 = arith.index_cast %arg1 : i32 to index
      %c0_39 = arith.constant 0 : index
      %c128_40 = arith.constant 128 : index
      %54 = vector.load %arg9[%53, %c0_39, %c128_40] : memref<2x4x640xf32, #tpu.memory_space<vmem>>, vector<1x4x384xf32>
      %55 = vector.shape_cast %54 : vector<1x4x384xf32> to vector<4x384xf32>
      %56 = vector.shape_cast %52 : vector<4x384xf32> to vector<1x4x384xf32>
      tpu.vector_store %arg9[%53, %c0_39, %c128_40], %56 {strides = array<i32>} : memref<2x4x640xf32, #tpu.memory_space<vmem>>, vector<1x4x384xf32>,
      %c0_41 = arith.constant 0 : index
      %c0_42 = arith.constant 0 : index
      %57 = vector.load %arg7[%c0_41, %c0_42] : memref<1x384xf32, #tpu.memory_space<vmem>>, vector<1x384xf32>
      %58 = vector.broadcast %57 : vector<1x384xf32> to vector<4x384xf32>
      %59 = arith.mulf %52, %58 : vector<4x384xf32>
      %cst_43 = arith.constant dense<0.000000e+00> : vector<4xf32>
      %60 = vector.multi_reduction <add>, %59, %cst_43 [1] : vector<4x384xf32> to vector<4xf32>
      %61 = vector.shape_cast %60 : vector<4xf32> to vector<4x1xf32>
      %cst_44 = arith.constant 3.906250e-03 : f32
      %62 = vector.broadcast %cst_44 : f32 to vector<4x1xf32>
      %63 = arith.mulf %61, %62 : vector<4x1xf32>
      %64 = vector.broadcast %63 : vector<4x1xf32> to vector<4x384xf32>
      %65 = arith.subf %52, %64 : vector<4x384xf32>
      %66 = vector.broadcast %57 : vector<1x384xf32> to vector<4x384xf32>
      %67 = arith.mulf %65, %66 : vector<4x384xf32>
      %68 = arith.mulf %67, %67 : vector<4x384xf32>
      %cst_45 = arith.constant dense<0.000000e+00> : vector<4xf32>
      %69 = vector.multi_reduction <add>, %68, %cst_45 [1] : vector<4x384xf32> to vector<4xf32>
      %70 = vector.shape_cast %69 : vector<4xf32> to vector<4x1xf32>
      %71 = arith.sitofp %arg1 : i32 to f32
      %c0_46 = arith.constant 0 : index
      %c0_47 = arith.constant 0 : index
      %72 = vector.load %arg10[%c0_46, %c0_47] : memref<4x1xf32, #tpu.memory_space<vmem>>, vector<4x1xf32>
      %73 = arith.subf %63, %72 : vector<4x1xf32>
      %c0_48 = arith.constant 0 : index
      %c0_49 = arith.constant 0 : index
      %74 = vector.load %arg10[%c0_48, %c0_49] : memref<4x1xf32, #tpu.memory_space<vmem>>, vector<4x1xf32>
      %cst_50 = arith.constant 1.000000e+00 : f32
      %75 = arith.addf %71, %cst_50 : f32
      %cst_51 = arith.constant 1.000000e+00 : f32
      %76 = arith.divf %cst_51, %75 : f32
      %77 = vector.broadcast %76 : f32 to vector<4x1xf32>
      %78 = arith.mulf %73, %77 : vector<4x1xf32>
      %79 = arith.addf %74, %78 : vector<4x1xf32>
      %c0_52 = arith.constant 0 : index
      %c0_53 = arith.constant 0 : index
      %80 = vector.load %arg10[%c0_52, %c0_53] : memref<4x1xf32, #tpu.memory_space<vmem>>, vector<4x1xf32>
      tpu.vector_store %arg10[%c0_52, %c0_53], %79 {strides = array<i32>} : memref<4x1xf32, #tpu.memory_space<vmem>>, vector<4x1xf32>,
      %c0_54 = arith.constant 0 : index
      %c0_55 = arith.constant 0 : index
      %81 = vector.load %arg11[%c0_54, %c0_55] : memref<4x1xf32, #tpu.memory_space<vmem>>, vector<4x1xf32>
      %82 = arith.addf %81, %70 : vector<4x1xf32>
      %83 = arith.mulf %73, %73 : vector<4x1xf32>
      %cst_56 = arith.constant 2.560000e+02 : f32
      %84 = arith.mulf %cst_56, %71 : f32
      %cst_57 = arith.constant 1.000000e+00 : f32
      %85 = arith.addf %71, %cst_57 : f32
      %86 = arith.divf %84, %85 : f32
      %87 = vector.broadcast %86 : f32 to vector<4x1xf32>
      %88 = arith.mulf %83, %87 : vector<4x1xf32>
      %89 = arith.addf %82, %88 : vector<4x1xf32>
      %c0_58 = arith.constant 0 : index
      %c0_59 = arith.constant 0 : index
      %90 = vector.load %arg11[%c0_58, %c0_59] : memref<4x1xf32, #tpu.memory_space<vmem>>, vector<4x1xf32>
      tpu.vector_store %arg11[%c0_58, %c0_59], %89 {strides = array<i32>} : memref<4x1xf32, #tpu.memory_space<vmem>>, vector<4x1xf32>,
    } else {
    }
    %c1_i32 = arith.constant 1 : i32
    %3 = arith.cmpi eq, %arg0, %c1_i32 : i32
    %4 = arith.extui %3 : i1 to i32
    %c0_i32_1 = arith.constant 0 : i32
    %5 = arith.cmpi ne, %4, %c0_i32_1 : i32
    scf.if %5 {
      %c0_i32_2 = arith.constant 0 : i32
      %6 = arith.cmpi eq, %arg1, %c0_i32_2 : i32
      %7 = arith.extui %6 : i1 to i32
      %c0_i32_3 = arith.constant 0 : i32
      %8 = arith.cmpi ne, %7, %c0_i32_3 : i32
      scf.if %8 {
        %c0_47 = arith.constant 0 : index
        %c0_48 = arith.constant 0 : index
        %86 = vector.load %arg11[%c0_47, %c0_48] : memref<4x1xf32, #tpu.memory_space<vmem>>, vector<4x1xf32>
        %cst_49 = arith.constant 0.001953125 : f32
        %87 = vector.broadcast %cst_49 : f32 to vector<4x1xf32>
        %88 = arith.mulf %86, %87 : vector<4x1xf32>
        %c0_50 = arith.constant 0 : index
        %c0_51 = arith.constant 0 : index
        %89 = vector.load %arg5[%c0_50, %c0_51] : memref<4x1xf32, #tpu.memory_space<vmem>>, vector<4x1xf32>
        %cst_52 = arith.constant 9.99999974E-6 : f32
        %90 = vector.broadcast %cst_52 : f32 to vector<4x1xf32>
        %91 = arith.addf %88, %90 : vector<4x1xf32>
        %92 = math.rsqrt %91 : vector<4x1xf32>
        %93 = arith.mulf %89, %92 : vector<4x1xf32>
        %c0_53 = arith.constant 0 : index
        %c0_54 = arith.constant 0 : index
        %94 = vector.load %arg12[%c0_53, %c0_54] : memref<4x1xf32, #tpu.memory_space<vmem>>, vector<4x1xf32>
        tpu.vector_store %arg12[%c0_53, %c0_54], %93 {strides = array<i32>} : memref<4x1xf32, #tpu.memory_space<vmem>>, vector<4x1xf32>,
        %c0_55 = arith.constant 0 : index
        %c0_56 = arith.constant 0 : index
        %95 = vector.load %arg6[%c0_55, %c0_56] : memref<4x1xf32, #tpu.memory_space<vmem>>, vector<4x1xf32>
        %c0_57 = arith.constant 0 : index
        %c0_58 = arith.constant 0 : index
        %96 = vector.load %arg10[%c0_57, %c0_58] : memref<4x1xf32, #tpu.memory_space<vmem>>, vector<4x1xf32>
        %97 = arith.mulf %96, %93 : vector<4x1xf32>
        %98 = arith.subf %95, %97 : vector<4x1xf32>
        %c0_59 = arith.constant 0 : index
        %c0_60 = arith.constant 0 : index
        %99 = vector.load %arg13[%c0_59, %c0_60] : memref<4x1xf32, #tpu.memory_space<vmem>>, vector<4x1xf32>
        tpu.vector_store %arg13[%c0_59, %c0_60], %98 {strides = array<i32>} : memref<4x1xf32, #tpu.memory_space<vmem>>, vector<4x1xf32>,
      } else {
      }
      %9 = arith.index_cast %arg1 : i32 to index
      %c0 = arith.constant 0 : index
      %c128 = arith.constant 128 : index
      %10 = vector.load %arg9[%9, %c0, %c128] : memref<2x4x640xf32, #tpu.memory_space<vmem>>, vector<1x4x384xf32>
      %11 = vector.shape_cast %10 : vector<1x4x384xf32> to vector<4x384xf32>
      %c0_4 = arith.constant 0 : index
      %c0_5 = arith.constant 0 : index
      %12 = vector.load %arg12[%c0_4, %c0_5] : memref<4x1xf32, #tpu.memory_space<vmem>>, vector<4x1xf32>
      %13 = vector.broadcast %12 : vector<4x1xf32> to vector<4x384xf32>
      %14 = arith.mulf %11, %13 : vector<4x384xf32>
      %c0_6 = arith.constant 0 : index
      %c0_7 = arith.constant 0 : index
      %15 = vector.load %arg13[%c0_6, %c0_7] : memref<4x1xf32, #tpu.memory_space<vmem>>, vector<4x1xf32>
      %16 = vector.broadcast %15 : vector<4x1xf32> to vector<4x384xf32>
      %17 = arith.addf %14, %16 : vector<4x384xf32>
      %cst = arith.constant 0.000000e+00 : f32
      %18 = vector.broadcast %cst : f32 to vector<4x384xf32>
      %19 = arith.maximumf %17, %18 : vector<4x384xf32>
      %c0_8 = arith.constant 0 : index
      %c0_9 = arith.constant 0 : index
      %20 = vector.load %arg7[%c0_8, %c0_9] : memref<1x384xf32, #tpu.memory_space<vmem>>, vector<1x384xf32>
      %21 = vector.broadcast %20 : vector<1x384xf32> to vector<4x384xf32>
      %22 = arith.mulf %19, %21 : vector<4x384xf32>
      %23 = arith.index_cast %arg1 : i32 to index
      %c0_10 = arith.constant 0 : index
      %c128_11 = arith.constant 128 : index
      %24 = vector.load %arg9[%23, %c0_10, %c128_11] : memref<2x4x640xf32, #tpu.memory_space<vmem>>, vector<1x4x384xf32>
      %25 = vector.shape_cast %24 : vector<1x4x384xf32> to vector<4x384xf32>
      %26 = vector.shape_cast %22 : vector<4x384xf32> to vector<1x4x384xf32>
      tpu.vector_store %arg9[%23, %c0_10, %c128_11], %26 {strides = array<i32>} : memref<2x4x640xf32, #tpu.memory_space<vmem>>, vector<1x4x384xf32>,
      %c0_12 = arith.constant 0 : index
      %c0_13 = arith.constant 0 : index
      %27 = vector.load %arg4[%c0_12, %c0_13] : memref<4x36xf32, #tpu.memory_space<vmem>>, vector<4x4xf32>
      %28 = arith.index_cast %arg1 : i32 to index
      %c0_14 = arith.constant 0 : index
      %c109 = arith.constant 109 : index
      %29 = vector.load %arg9[%28, %c0_14, %c109] : memref<2x4x640xf32, #tpu.memory_space<vmem>>, vector<1x4x384xf32>
      %30 = vector.shape_cast %29 : vector<1x4x384xf32> to vector<4x384xf32>
      %cst_15 = arith.constant dense<0.000000e+00> : vector<4x384xf32>
      %31 = tpu.matmul %27, %30, %cst_15 {dimension_numbers = #tpu.dot_dimension_numbers<[1], [0], [0], [1], [0, 0, 1, 1], [], []>} : vector<4x4xf32>, vector<4x384xf32>, vector<4x384xf32> -> vector<4x384xf32>
      %c0_16 = arith.constant 0 : index
      %c4 = arith.constant 4 : index
      %32 = vector.load %arg4[%c0_16, %c4] : memref<4x36xf32, #tpu.memory_space<vmem>>, vector<4x4xf32>
      %33 = arith.index_cast %arg1 : i32 to index
      %c0_17 = arith.constant 0 : index
      %c110 = arith.constant 110 : index
      %34 = vector.load %arg9[%33, %c0_17, %c110] : memref<2x4x640xf32, #tpu.memory_space<vmem>>, vector<1x4x384xf32>
      %35 = vector.shape_cast %34 : vector<1x4x384xf32> to vector<4x384xf32>
      %cst_18 = arith.constant dense<0.000000e+00> : vector<4x384xf32>
      %36 = tpu.matmul %32, %35, %cst_18 {dimension_numbers = #tpu.dot_dimension_numbers<[1], [0], [0], [1], [0, 0, 1, 1], [], []>} : vector<4x4xf32>, vector<4x384xf32>, vector<4x384xf32> -> vector<4x384xf32>
      %37 = arith.addf %31, %36 : vector<4x384xf32>
      %c0_19 = arith.constant 0 : index
      %c8 = arith.constant 8 : index
      %38 = vector.load %arg4[%c0_19, %c8] : memref<4x36xf32, #tpu.memory_space<vmem>>, vector<4x4xf32>
      %39 = arith.index_cast %arg1 : i32 to index
      %c0_20 = arith.constant 0 : index
      %c111 = arith.constant 111 : index
      %40 = vector.load %arg9[%39, %c0_20, %c111] : memref<2x4x640xf32, #tpu.memory_space<vmem>>, vector<1x4x384xf32>
      %41 = vector.shape_cast %40 : vector<1x4x384xf32> to vector<4x384xf32>
      %cst_21 = arith.constant dense<0.000000e+00> : vector<4x384xf32>
      %42 = tpu.matmul %38, %41, %cst_21 {dimension_numbers = #tpu.dot_dimension_numbers<[1], [0], [0], [1], [0, 0, 1, 1], [], []>} : vector<4x4xf32>, vector<4x384xf32>, vector<4x384xf32> -> vector<4x384xf32>
      %43 = arith.addf %37, %42 : vector<4x384xf32>
      %c0_22 = arith.constant 0 : index
      %c12 = arith.constant 12 : index
      %44 = vector.load %arg4[%c0_22, %c12] : memref<4x36xf32, #tpu.memory_space<vmem>>, vector<4x4xf32>
      %45 = arith.index_cast %arg1 : i32 to index
      %c0_23 = arith.constant 0 : index
      %c127 = arith.constant 127 : index
      %46 = vector.load %arg9[%45, %c0_23, %c127] : memref<2x4x640xf32, #tpu.memory_space<vmem>>, vector<1x4x384xf32>
      %47 = vector.shape_cast %46 : vector<1x4x384xf32> to vector<4x384xf32>
      %cst_24 = arith.constant dense<0.000000e+00> : vector<4x384xf32>
      %48 = tpu.matmul %44, %47, %cst_24 {dimension_numbers = #tpu.dot_dimension_numbers<[1], [0], [0], [1], [0, 0, 1, 1], [], []>} : vector<4x4xf32>, vector<4x384xf32>, vector<4x384xf32> -> vector<4x384xf32>
      %49 = arith.addf %43, %48 : vector<4x384xf32>
      %c0_25 = arith.constant 0 : index
      %c16 = arith.constant 16 : index
      %50 = vector.load %arg4[%c0_25, %c16] : memref<4x36xf32, #tpu.memory_space<vmem>>, vector<4x4xf32>
      %51 = arith.index_cast %arg1 : i32 to index
      %c0_26 = arith.constant 0 : index
      %c128_27 = arith.constant 128 : index
      %52 = vector.load %arg9[%51, %c0_26, %c128_27] : memref<2x4x640xf32, #tpu.memory_space<vmem>>, vector<1x4x384xf32>
      %53 = vector.shape_cast %52 : vector<1x4x384xf32> to vector<4x384xf32>
      %cst_28 = arith.constant dense<0.000000e+00> : vector<4x384xf32>
      %54 = tpu.matmul %50, %53, %cst_28 {dimension_numbers = #tpu.dot_dimension_numbers<[1], [0], [0], [1], [0, 0, 1, 1], [], []>} : vector<4x4xf32>, vector<4x384xf32>, vector<4x384xf32> -> vector<4x384xf32>
      %55 = arith.addf %49, %54 : vector<4x384xf32>
      %c0_29 = arith.constant 0 : index
      %c20 = arith.constant 20 : index
      %56 = vector.load %arg4[%c0_29, %c20] : memref<4x36xf32, #tpu.memory_space<vmem>>, vector<4x4xf32>
      %57 = arith.index_cast %arg1 : i32 to index
      %c0_30 = arith.constant 0 : index
      %c129 = arith.constant 129 : index
      %58 = vector.load %arg9[%57, %c0_30, %c129] : memref<2x4x640xf32, #tpu.memory_space<vmem>>, vector<1x4x384xf32>
      %59 = vector.shape_cast %58 : vector<1x4x384xf32> to vector<4x384xf32>
      %cst_31 = arith.constant dense<0.000000e+00> : vector<4x384xf32>
      %60 = tpu.matmul %56, %59, %cst_31 {dimension_numbers = #tpu.dot_dimension_numbers<[1], [0], [0], [1], [0, 0, 1, 1], [], []>} : vector<4x4xf32>, vector<4x384xf32>, vector<4x384xf32> -> vector<4x384xf32>
      %61 = arith.addf %55, %60 : vector<4x384xf32>
      %c0_32 = arith.constant 0 : index
      %c24 = arith.constant 24 : index
      %62 = vector.load %arg4[%c0_32, %c24] : memref<4x36xf32, #tpu.memory_space<vmem>>, vector<4x4xf32>
      %63 = arith.index_cast %arg1 : i32 to index
      %c0_33 = arith.constant 0 : index
      %c145 = arith.constant 145 : index
      %64 = vector.load %arg9[%63, %c0_33, %c145] : memref<2x4x640xf32, #tpu.memory_space<vmem>>, vector<1x4x384xf32>
      %65 = vector.shape_cast %64 : vector<1x4x384xf32> to vector<4x384xf32>
      %cst_34 = arith.constant dense<0.000000e+00> : vector<4x384xf32>
      %66 = tpu.matmul %62, %65, %cst_34 {dimension_numbers = #tpu.dot_dimension_numbers<[1], [0], [0], [1], [0, 0, 1, 1], [], []>} : vector<4x4xf32>, vector<4x384xf32>, vector<4x384xf32> -> vector<4x384xf32>
      %67 = arith.addf %61, %66 : vector<4x384xf32>
      %c0_35 = arith.constant 0 : index
      %c28 = arith.constant 28 : index
      %68 = vector.load %arg4[%c0_35, %c28] : memref<4x36xf32, #tpu.memory_space<vmem>>, vector<4x4xf32>
      %69 = arith.index_cast %arg1 : i32 to index
      %c0_36 = arith.constant 0 : index
      %c146 = arith.constant 146 : index
      %70 = vector.load %arg9[%69, %c0_36, %c146] : memref<2x4x640xf32, #tpu.memory_space<vmem>>, vector<1x4x384xf32>
      %71 = vector.shape_cast %70 : vector<1x4x384xf32> to vector<4x384xf32>
      %cst_37 = arith.constant dense<0.000000e+00> : vector<4x384xf32>
      %72 = tpu.matmul %68, %71, %cst_37 {dimension_numbers = #tpu.dot_dimension_numbers<[1], [0], [0], [1], [0, 0, 1, 1], [], []>} : vector<4x4xf32>, vector<4x384xf32>, vector<4x384xf32> -> vector<4x384xf32>
      %73 = arith.addf %67, %72 : vector<4x384xf32>
      %c0_38 = arith.constant 0 : index
      %c32 = arith.constant 32 : index
      %74 = vector.load %arg4[%c0_38, %c32] : memref<4x36xf32, #tpu.memory_space<vmem>>, vector<4x4xf32>
      %75 = arith.index_cast %arg1 : i32 to index
      %c0_39 = arith.constant 0 : index
      %c147 = arith.constant 147 : index
      %76 = vector.load %arg9[%75, %c0_39, %c147] : memref<2x4x640xf32, #tpu.memory_space<vmem>>, vector<1x4x384xf32>
      %77 = vector.shape_cast %76 : vector<1x4x384xf32> to vector<4x384xf32>
      %cst_40 = arith.constant dense<0.000000e+00> : vector<4x384xf32>
      %78 = tpu.matmul %74, %77, %cst_40 {dimension_numbers = #tpu.dot_dimension_numbers<[1], [0], [0], [1], [0, 0, 1, 1], [], []>} : vector<4x4xf32>, vector<4x384xf32>, vector<4x384xf32> -> vector<4x384xf32>
      %79 = arith.addf %73, %78 : vector<4x384xf32>
      %c0_41 = arith.constant 0 : index
      %c0_42 = arith.constant 0 : index
      %c128_43 = arith.constant 128 : index
      %80 = vector.load %arg2[%c0_41, %c0_42, %c128_43] : memref<1x4x640xf32, #tpu.memory_space<vmem>>, vector<1x4x384xf32>
      %81 = vector.shape_cast %80 : vector<1x4x384xf32> to vector<4x384xf32>
      %82 = arith.addf %79, %81 : vector<4x384xf32>
      %c0_44 = arith.constant 0 : index
      %c0_45 = arith.constant 0 : index
      %c0_46 = arith.constant 0 : index
      %83 = vector.load %arg8[%c0_44, %c0_45, %c0_46] : memref<1x4x384xf32, #tpu.memory_space<vmem>>, vector<1x4x384xf32>
      %84 = vector.shape_cast %83 : vector<1x4x384xf32> to vector<4x384xf32>
      %85 = vector.shape_cast %82 : vector<4x384xf32> to vector<1x4x384xf32>
      tpu.vector_store %arg8[%c0_44, %c0_45, %c0_46], %85 {strides = array<i32>} : memref<1x4x384xf32, #tpu.memory_space<vmem>>, vector<1x4x384xf32>,
    } else {
    }
    return
  }
  func.func @transform_0(%arg0: i32, %arg1: i32) -> (i32, i32, i32) {
    %c0_i32 = arith.constant 0 : i32
    %c0_i32_0 = arith.constant 0 : i32
    %c0_i32_1 = arith.constant 0 : i32
    return %arg1, %c0_i32, %c0_i32_0 : i32, i32, i32
  }
  func.func @transform_1(%arg0: i32, %arg1: i32) -> (i32, i32) {
    %c0_i32 = arith.constant 0 : i32
    %c0_i32_0 = arith.constant 0 : i32
    %c0_i32_1 = arith.constant 0 : i32
    return %c0_i32, %c0_i32_0 : i32, i32
  }
  func.func @transform_2(%arg0: i32, %arg1: i32) -> (i32, i32) {
    %c0_i32 = arith.constant 0 : i32
    %c0_i32_0 = arith.constant 0 : i32
    %c0_i32_1 = arith.constant 0 : i32
    return %c0_i32, %c0_i32_0 : i32, i32
  }
  func.func @transform_3(%arg0: i32, %arg1: i32) -> (i32, i32) {
    %c0_i32 = arith.constant 0 : i32
    %c0_i32_0 = arith.constant 0 : i32
    %c0_i32_1 = arith.constant 0 : i32
    return %c0_i32, %c0_i32_0 : i32, i32
  }
  func.func @transform_4(%arg0: i32, %arg1: i32) -> (i32, i32) {
    %c0_i32 = arith.constant 0 : i32
    %c0_i32_0 = arith.constant 0 : i32
    %c0_i32_1 = arith.constant 0 : i32
    return %c0_i32, %c0_i32_0 : i32, i32
  }
  func.func @transform_5(%arg0: i32, %arg1: i32) -> (i32, i32) {
    %c0_i32 = arith.constant 0 : i32
    %c0_i32_0 = arith.constant 0 : i32
    %c0_i32_1 = arith.constant 0 : i32
    return %c0_i32, %c0_i32_0 : i32, i32
  }
  func.func @transform_6(%arg0: i32, %arg1: i32) -> (i32, i32, i32) {
    %0 = arith.muli %arg1, %arg0 : i32
    %c0_i32 = arith.constant 0 : i32
    %c0_i32_0 = arith.constant 0 : i32
    %c0_i32_1 = arith.constant 0 : i32
    return %0, %c0_i32, %c0_i32_0 : i32, i32, i32
  }
}

</mosaic_0001>

<llo_original>
// kernel: tpu_custom_call.1
$region0: #{tpu_custom_call.1}
  #allocation0 [shape = 'u32[]', space=smem, size = 0x4, offset = 0x4, fixed_abs, tag = 'smem constant byte address 0x4 - core index']
  #allocation1 [shape = 'u32[144,128]{1,0:T(1,128)}', space=vmem, size = 0x12000, scoped, tag = 'internal scratch']
  #allocation2 [shape = 'f32[2,4,640]{2,1,0:T(4,128)}', space=vmem, size = 0x5000, scoped, tag = 'scratch operand']
  #allocation3 [shape = 'f32[4,1]{1,0:T(4,128)}', space=vmem, size = 0x800, scoped, tag = 'scratch operand']
  #allocation4 [shape = 'f32[4,1]{1,0:T(4,128)}', space=vmem, size = 0x800, scoped, tag = 'scratch operand']
  #allocation5 [shape = 'f32[4,1]{1,0:T(4,128)}', space=vmem, size = 0x800, scoped, tag = 'scratch operand']
  #allocation6 [shape = 'f32[4,1]{1,0:T(4,128)}', space=vmem, size = 0x800, scoped, tag = 'scratch operand']
  %s0 = inlined_call_operand.hbm [shape: f32[2,4,640], index: 0, kind: input, shape index: {}]
  %s1 = inlined_call_operand.hbm [shape: f32[4,36], index: 1, kind: input, shape index: {}]
  %s2 = inlined_call_operand.hbm [shape: f32[4,36], index: 2, kind: input, shape index: {}]
  %s3 = inlined_call_operand.hbm [shape: f32[4,1], index: 3, kind: input, shape index: {}]
  %s4 = inlined_call_operand.hbm [shape: f32[4,1], index: 4, kind: input, shape index: {}]
  %s5 = inlined_call_operand.hbm [shape: f32[1,384], index: 5, kind: input, shape index: {}]
  %s6 = inlined_call_operand.hbm [shape: f32[2,4,384], index: 6, kind: output, shape index: {}]
  %s7 = sld [smem:[#allocation0]]
  $region97: #{tpu_custom_call.1} parent=0
    _
  %s9 = ssub.s32 1, %s7
  %s10 = scalar_select 0, %s9, %s7
  $region1: #{tpu_custom_call.1} parent=0
    #allocation7 [shape = 'u8[20480]{0}', space=vmem, size = 0x5000, scoped, tag = 'input window, operand 0']
    #allocation8 [shape = 's32[2]{0}', space=sflag, size = 0x8, scoped, tag = 'scoped memory for tpu_custom_call.1']
    #allocation9 [shape = 's32[2]{0}', space=sflag, size = 0x8, scoped, tag = 'scoped memory for tpu_custom_call.1']
    #allocation10 [shape = 'u8[2048]{0}', space=vmem, size = 0x800, scoped, tag = 'input window, operand 1, single buffered']
    #allocation11 [shape = 's32[1]{0}', space=sflag, size = 0x4, scoped, tag = 'scoped memory for tpu_custom_call.1']
    #allocation12 [shape = 'u8[2048]{0}', space=vmem, size = 0x800, scoped, tag = 'input window, operand 2, single buffered']
    #allocation13 [shape = 'u8[2048]{0}', space=vmem, size = 0x800, scoped, tag = 'input window, operand 3, single buffered']
    #allocation14 [shape = 's32[1]{0}', space=sflag, size = 0x4, scoped, tag = 'scoped memory for tpu_custom_call.1']
    #allocation15 [shape = 'u8[2048]{0}', space=vmem, size = 0x800, scoped, tag = 'input window, operand 4, single buffered']
    #allocation16 [shape = 'u8[1536]{0}', space=vmem, size = 0x800, scoped, tag = 'input window, operand 5, single buffered']
    #allocation17 [shape = 's32[1]{0}', space=sflag, size = 0x4, scoped, tag = 'scoped memory for tpu_custom_call.1']
    #allocation18 [shape = 'u8[12288]{0}', space=vmem, size = 0x3000, scoped, tag = 'output window, operand 0']
    %11 = vsyncpa [#allocation8], 0
    %s12 = scalar_lea.sflag [#allocation8], 1
    %13 = vsyncpa %s12, 0
    %14 = vsyncpa [#allocation11], 0
    %15 = vsyncpa [#allocation14], 0
    %16 = vsyncpa [#allocation17], 0
    %17 = vsyncpa [#allocation9], 0
    %s18 = scalar_lea.sflag [#allocation9], 1
    %19 = vsyncpa %s18, 0
    loop: start=0, step=1, limit=6
    $region2: #{tpu_custom_call.1} parent=1 // loop_pre_header
      _
    $region3: #{tpu_custom_call.1} parent=1 // loop_header
      %s21 = sphi 0, %s25
      %p22 = scmp.ge.s32.totalorder %s21, 6
      %s28 = sphi 0, %s40
      %s29 = sphi 0, %s36
      %s30 = sphi 0, %s28
      %s31 = sphi 0, %s29
      %s32 = sphi 0, %s30
      %s33 = sphi 0, %s31
      %s43 = sphi 0, %s45
      %s46 = sphi 0, %s43
      %s47 = sphi 0, %s46
      %s63 = sphi 0, %s47
      %s67 = sphi 0, %s67
      %s69 = sphi 0, %s67
      %s70 = sphi 0, %s69
      %s84 = sphi 0, %s70
      %s88 = sphi 0, %s88
      %s90 = sphi 0, %s88
      %s91 = sphi 0, %s90
      %s105 = sphi 0, %s91
      %s109 = sphi 0, %s109
      %s111 = sphi 0, %s109
      %s112 = sphi 0, %s111
      %s126 = sphi 0, %s112
      %s130 = sphi 0, %s130
      %s132 = sphi 0, %s130
      %s133 = sphi 0, %s132
      %s147 = sphi 0, %s133
      %s151 = sphi 0, %s151
      %s153 = sphi 0, %s151
      %s154 = sphi 0, %s153
      %s168 = sphi 0, %s154
      %s176 = sphi 0, %s178
      %s179 = sphi 0, %s176
      %s180 = sphi 0, %s179
      %s196 = sphi 0, %s180
    $region4: #{tpu_custom_call.1} parent=1 // loop_header_branch
      %24 = sbr.rel (%p22) target = $region8
    $region5: #{tpu_custom_call.1} parent=1 // loop_body
      %s26 = ssub.s32 %s21, 1
      %s27 = ssub.s32 %s21, 2
      %s34 = sadd.s32 1, %s29
      %p35 = scmp.ge.s32.totalorder %s34, 2
      %s36 = scalar_select %p35, 0, %s34
      %s37 = sadd.s32 1, %s28
      %s38 = scalar_select %p35, %s37, %s28
      %p39 = scmp.ge.s32.totalorder %s38, 2
      %s40 = scalar_select %p39, 0, %s38
      %s41 = ssub.s32 %s29, %s36
      %p42 = scmp.eq.s32.totalorder %s41, 0
      %s44 = sadd.s32 %s43, 1
      %s45 = scalar_select %p42, %s43, %s44
      %p48 = pneg %p42
      %p49 = scmp.eq.s32.totalorder %s21, 3
      %p50 = por %p48, %p49
      %p51 = scmp.ne.s32.totalorder %s43, %s46
      %p52 = scmp.eq.s32.totalorder %s21, 0
      %p53 = por %p51, %p52
      %p54 = scmp.ne.s32.totalorder %s43, %s46
      %p55 = scmp.eq.s32.totalorder %s26, 3
      %p56 = por %p54, %p55
      %p57 = scmp.ne.s32.totalorder %s46, %s47
      %p58 = scmp.eq.s32.totalorder %s26, 0
      %p59 = por %p57, %p58
      %p60 = scmp.ne.s32.totalorder %s46, %s47
      %p61 = scmp.eq.s32.totalorder %s27, 3
      %p62 = por %p60, %p61
      %p64 = scmp.ne.s32.totalorder %s47, %s63
      %p65 = scmp.eq.s32.totalorder %s27, 0
      %p66 = por %p64, %p65
      %s68 = sadd.s32 %s67, 1
      %p71 = scmp.eq.s32.totalorder %s21, 3
      %p72 = scmp.ne.s32.totalorder %s67, %s69
      %p73 = scmp.eq.s32.totalorder %s21, 0
      %p74 = por %p72, %p73
      %p75 = scmp.ne.s32.totalorder %s67, %s69
      %p76 = scmp.eq.s32.totalorder %s26, 3
      %p77 = por %p75, %p76
      %p78 = scmp.ne.s32.totalorder %s69, %s70
      %p79 = scmp.eq.s32.totalorder %s26, 0
      %p80 = por %p78, %p79
      %p81 = scmp.ne.s32.totalorder %s69, %s70
      %p82 = scmp.eq.s32.totalorder %s27, 3
      %p83 = por %p81, %p82
      %p85 = scmp.ne.s32.totalorder %s70, %s84
      %p86 = scmp.eq.s32.totalorder %s27, 0
      %p87 = por %p85, %p86
      %s89 = sadd.s32 %s88, 1
      %p92 = scmp.eq.s32.totalorder %s21, 3
      %p93 = scmp.ne.s32.totalorder %s88, %s90
      %p94 = scmp.eq.s32.totalorder %s21, 0
      %p95 = por %p93, %p94
      %p96 = scmp.ne.s32.totalorder %s88, %s90
      %p97 = scmp.eq.s32.totalorder %s26, 3
      %p98 = por %p96, %p97
      %p99 = scmp.ne.s32.totalorder %s90, %s91
      %p100 = scmp.eq.s32.totalorder %s26, 0
      %p101 = por %p99, %p100
      %p102 = scmp.ne.s32.totalorder %s90, %s91
      %p103 = scmp.eq.s32.totalorder %s27, 3
      %p104 = por %p102, %p103
      %p106 = scmp.ne.s32.totalorder %s91, %s105
      %p107 = scmp.eq.s32.totalorder %s27, 0
      %p108 = por %p106, %p107
      %s110 = sadd.s32 %s109, 1
      %p113 = scmp.eq.s32.totalorder %s21, 3
      %p114 = scmp.ne.s32.totalorder %s109, %s111
      %p115 = scmp.eq.s32.totalorder %s21, 0
      %p116 = por %p114, %p115
      %p117 = scmp.ne.s32.totalorder %s109, %s111
      %p118 = scmp.eq.s32.totalorder %s26, 3
      %p119 = por %p117, %p118
      %p120 = scmp.ne.s32.totalorder %s111, %s112
      %p121 = scmp.eq.s32.totalorder %s26, 0
      %p122 = por %p120, %p121
      %p123 = scmp.ne.s32.totalorder %s111, %s112
      %p124 = scmp.eq.s32.totalorder %s27, 3
      %p125 = por %p123, %p124
      %p127 = scmp.ne.s32.totalorder %s112, %s126
      %p128 = scmp.eq.s32.totalorder %s27, 0
      %p129 = por %p127, %p128
      %s131 = sadd.s32 %s130, 1
      %p134 = scmp.eq.s32.totalorder %s21, 3
      %p135 = scmp.ne.s32.totalorder %s130, %s132
      %p136 = scmp.eq.s32.totalorder %s21, 0
      %p137 = por %p135, %p136
      %p138 = scmp.ne.s32.totalorder %s130, %s132
      %p139 = scmp.eq.s32.totalorder %s26, 3
      %p140 = por %p138, %p139
      %p141 = scmp.ne.s32.totalorder %s132, %s133
      %p142 = scmp.eq.s32.totalorder %s26, 0
      %p143 = por %p141, %p142
      %p144 = scmp.ne.s32.totalorder %s132, %s133
      %p145 = scmp.eq.s32.totalorder %s27, 3
      %p146 = por %p144, %p145
      %p148 = scmp.ne.s32.totalorder %s133, %s147
      %p149 = scmp.eq.s32.totalorder %s27, 0
      %p150 = por %p148, %p149
      %s152 = sadd.s32 %s151, 1
      %p155 = scmp.eq.s32.totalorder %s21, 3
      %p156 = scmp.ne.s32.totalorder %s151, %s153
      %p157 = scmp.eq.s32.totalorder %s21, 0
      %p158 = por %p156, %p157
      %p159 = scmp.ne.s32.totalorder %s151, %s153
      %p160 = scmp.eq.s32.totalorder %s26, 3
      %p161 = por %p159, %p160
      %p162 = scmp.ne.s32.totalorder %s153, %s154
      %p163 = scmp.eq.s32.totalorder %s26, 0
      %p164 = por %p162, %p163
      %p165 = scmp.ne.s32.totalorder %s153, %s154
      %p166 = scmp.eq.s32.totalorder %s27, 3
      %p167 = por %p165, %p166
      %p169 = scmp.ne.s32.totalorder %s154, %s168
      %p170 = scmp.eq.s32.totalorder %s27, 0
      %p171 = por %p169, %p170
      %s172 = smul.u32 %s29, %s28
      %s173 = smul.u32 %s36, %s40
      %s174 = ssub.s32 %s172, %s173
      %p175 = scmp.eq.s32.totalorder %s174, 0
      %s177 = sadd.s32 %s176, 1
      %s178 = scalar_select %p175, %s176, %s177
      %p181 = pneg %p175
      %p182 = scmp.eq.s32.totalorder %s21, 3
      %p183 = por %p181, %p182
      %p184 = scmp.ne.s32.totalorder %s176, %s179
      %p185 = scmp.eq.s32.totalorder %s21, 0
      %p186 = por %p184, %p185
      %p187 = scmp.ne.s32.totalorder %s176, %s179
      %p188 = scmp.eq.s32.totalorder %s26, 3
      %p189 = por %p187, %p188
      %p190 = scmp.ne.s32.totalorder %s179, %s180
      %p191 = scmp.eq.s32.totalorder %s26, 0
      %p192 = por %p190, %p191
      %p193 = scmp.ne.s32.totalorder %s179, %s180
      %p194 = scmp.eq.s32.totalorder %s27, 3
      %p195 = por %p193, %p194
      %p197 = scmp.ne.s32.totalorder %s180, %s196
      %p198 = scmp.eq.s32.totalorder %s27, 0
      %p199 = por %p197, %p198
      %p200 = scmp.le.s32.totalorder 1, %s21
      %p201 = scmp.lt.s32.totalorder %s21, 5
      %p202 = pnand %p200, %p201
      %p203 = pneg %p202
      // Predicated region
      $region9: #{tpu_custom_call.1} parent=5 // pred_check
        _
      $region10: #{tpu_custom_call.1} parent=5 // pred_check_branch
        %205 = sbr.rel (%p202) target = $region12
      $region11: #{tpu_custom_call.1} parent=5 // pred_region
        %s206 = ssub.s32 %s21, 1
        // Predicated region
        $region13: #{tpu_custom_call.1} parent=11 // pred_check
          %p207 = pneg %p80
        $region14: #{tpu_custom_call.1} parent=11 // pred_check_branch
          %209 = sbr.rel (%p207) target = $region16
        $region15: #{tpu_custom_call.1} parent=11 // pred_region
          %s211 = ssub.s32 64, 64
          %212 = vsyncadd [#allocation11], %s211
          %s214 = sshll.u32 [#allocation10], 4
          %s215 = int_to_ptr.vmem [resolvable:$true] %s214
          %217 = dma.hbm_to_vmem [thread:$0]  %s1, 64, %s215, [#allocation11]
        $region16: #{tpu_custom_call.1} parent=11 // pred_fallthru
          _
        // Predicated region
        $region17: #{tpu_custom_call.1} parent=11 // pred_check
          %p218 = pneg %p101
        $region18: #{tpu_custom_call.1} parent=11 // pred_check_branch
          %220 = sbr.rel (%p218) target = $region20
        $region19: #{tpu_custom_call.1} parent=11 // pred_region
          %s222 = ssub.s32 64, 64
          %223 = vsyncadd [#allocation11], %s222
          %s225 = sshll.u32 [#allocation12], 4
          %s226 = int_to_ptr.vmem [resolvable:$true] %s225
          %228 = dma.hbm_to_vmem [thread:$0]  %s2, 64, %s226, [#allocation11]
        $region20: #{tpu_custom_call.1} parent=11 // pred_fallthru
          _
        // Predicated region
        $region21: #{tpu_custom_call.1} parent=11 // pred_check
          %p229 = pneg %p122
        $region22: #{tpu_custom_call.1} parent=11 // pred_check_branch
          %231 = sbr.rel (%p229) target = $region24
        $region23: #{tpu_custom_call.1} parent=11 // pred_region
          %s233 = ssub.s32 64, 64
          %234 = vsyncadd [#allocation14], %s233
          %s236 = sshll.u32 [#allocation13], 4
          %s237 = int_to_ptr.vmem [resolvable:$true] %s236
          %239 = dma.hbm_to_vmem [thread:$0]  %s3, 64, %s237, [#allocation14]
        $region24: #{tpu_custom_call.1} parent=11 // pred_fallthru
          _
        // Predicated region
        $region25: #{tpu_custom_call.1} parent=11 // pred_check
          %p240 = pneg %p143
        $region26: #{tpu_custom_call.1} parent=11 // pred_check_branch
          %242 = sbr.rel (%p240) target = $region28
        $region27: #{tpu_custom_call.1} parent=11 // pred_region
          %s244 = ssub.s32 64, 64
          %245 = vsyncadd [#allocation14], %s244
          %s247 = sshll.u32 [#allocation15], 4
          %s248 = int_to_ptr.vmem [resolvable:$true] %s247
          %250 = dma.hbm_to_vmem [thread:$0]  %s4, 64, %s248, [#allocation14]
        $region28: #{tpu_custom_call.1} parent=11 // pred_fallthru
          _
        // Predicated region
        $region29: #{tpu_custom_call.1} parent=11 // pred_check
          %p251 = pneg %p164
        $region30: #{tpu_custom_call.1} parent=11 // pred_check_branch
          %253 = sbr.rel (%p251) target = $region32
        $region31: #{tpu_custom_call.1} parent=11 // pred_region
          %s255 = ssub.s32 48, 48
          %256 = vsyncadd [#allocation17], %s255
          %s258 = sshll.u32 [#allocation16], 4
          %s259 = int_to_ptr.vmem [resolvable:$true] %s258
          %261 = dma.hbm_to_vmem [thread:$0]  %s5, 48, %s259, [#allocation17]
        $region32: #{tpu_custom_call.1} parent=11 // pred_fallthru
          _
      $region12: #{tpu_custom_call.1} parent=5 // pred_fallthru
        _
      %p262 = scmp.lt.s32.totalorder %s21, 4
      // Predicated region
      $region33: #{tpu_custom_call.1} parent=5 // pred_check
        %p263 = pneg %p262
      $region34: #{tpu_custom_call.1} parent=5 // pred_check_branch
        %265 = sbr.rel (%p263) target = $region36
      $region35: #{tpu_custom_call.1} parent=5 // pred_region
        // Predicated region
        $region37: #{tpu_custom_call.1} parent=35 // pred_check
          %p266 = pneg %p53
        $region38: #{tpu_custom_call.1} parent=35 // pred_check_branch
          %268 = sbr.rel (%p266) target = $region40
        $region39: #{tpu_custom_call.1} parent=35 // pred_region
          %s269 = sand.u32 %s43, 1
          %s270 = scalar_lea.sflag [#allocation8], %s269
          %s271 = sand.u32 %s43, 1
          %s272 = smul.addr %s271, 20
          %s273 = scalar_lea.vmem [#allocation7], %s272
          %s275 = ssub.s32 320, 320
          %276 = vsyncadd %s270, %s275
          %s277 = smul.addr %s29, 5
          %s278 = smul.addr %s277, 64
          %s279 = scalar_lea.hbm %s0, %s278
          %s281 = sshll.u32 %s273, 4
          %s282 = int_to_ptr.vmem [resolvable:$true] %s281
          %284 = dma.hbm_to_vmem [thread:$0]  %s279, 320, %s282, %s270
        $region40: #{tpu_custom_call.1} parent=35 // pred_fallthru
          _
      $region36: #{tpu_custom_call.1} parent=5 // pred_fallthru
        _
      %p285 = scmp.le.s32.totalorder 1, %s21
      %p286 = scmp.lt.s32.totalorder %s21, 5
      %p287 = pnand %p285, %p286
      %p288 = pneg %p287
      // Predicated region
      $region41: #{tpu_custom_call.1} parent=5 // pred_check
        _
      $region42: #{tpu_custom_call.1} parent=5 // pred_check_branch
        %290 = sbr.rel (%p287) target = $region44
      $region43: #{tpu_custom_call.1} parent=5 // pred_region
        %s291 = ssub.s32 %s21, 1
        %s292 = sand.u32 %s46, 1
        %s293 = scalar_lea.sflag [#allocation8], %s292
        %s294 = sand.u32 %s46, 1
        %s295 = smul.addr %s294, 20
        %s296 = scalar_lea.vmem [#allocation7], %s295
        // Predicated region
        $region45: #{tpu_custom_call.1} parent=43 // pred_check
          %p297 = pneg %p59
        $region46: #{tpu_custom_call.1} parent=43 // pred_check_branch
          %299 = sbr.rel (%p297) target = $region48
        $region47: #{tpu_custom_call.1} parent=43 // pred_region
          %300 = dma.done %s293, 320
        $region48: #{tpu_custom_call.1} parent=43 // pred_fallthru
          _
        // Predicated region
        $region49: #{tpu_custom_call.1} parent=43 // pred_check
          %p301 = pneg %p80
        $region50: #{tpu_custom_call.1} parent=43 // pred_check_branch
          %303 = sbr.rel (%p301) target = $region52
        $region51: #{tpu_custom_call.1} parent=43 // pred_region
          %304 = dma.done [#allocation11], 64
        $region52: #{tpu_custom_call.1} parent=43 // pred_fallthru
          _
        // Predicated region
        $region53: #{tpu_custom_call.1} parent=43 // pred_check
          %p305 = pneg %p101
        $region54: #{tpu_custom_call.1} parent=43 // pred_check_branch
          %307 = sbr.rel (%p305) target = $region56
        $region55: #{tpu_custom_call.1} parent=43 // pred_region
          %308 = dma.done [#allocation11], 64
        $region56: #{tpu_custom_call.1} parent=43 // pred_fallthru
          _
        // Predicated region
        $region57: #{tpu_custom_call.1} parent=43 // pred_check
          %p309 = pneg %p122
        $region58: #{tpu_custom_call.1} parent=43 // pred_check_branch
          %311 = sbr.rel (%p309) target = $region60
        $region59: #{tpu_custom_call.1} parent=43 // pred_region
          %312 = dma.done [#allocation14], 64
        $region60: #{tpu_custom_call.1} parent=43 // pred_fallthru
          _
        // Predicated region
        $region61: #{tpu_custom_call.1} parent=43 // pred_check
          %p313 = pneg %p143
        $region62: #{tpu_custom_call.1} parent=43 // pred_check_branch
          %315 = sbr.rel (%p313) target = $region64
        $region63: #{tpu_custom_call.1} parent=43 // pred_region
          %316 = dma.done [#allocation14], 64
        $region64: #{tpu_custom_call.1} parent=43 // pred_fallthru
          _
        // Predicated region
        $region65: #{tpu_custom_call.1} parent=43 // pred_check
          %p317 = pneg %p164
        $region66: #{tpu_custom_call.1} parent=43 // pred_check_branch
          %319 = sbr.rel (%p317) target = $region68
        $region67: #{tpu_custom_call.1} parent=43 // pred_region
          %320 = dma.done [#allocation17], 48
        $region68: #{tpu_custom_call.1} parent=43 // pred_fallthru
          _
        %s321 = sand.u32 %s46, 1
        %s322 = scalar_lea.sflag [#allocation8], %s321
        %s323 = sand.u32 %s46, 1
        %s324 = smul.addr %s323, 20
        %s325 = scalar_lea.vmem [#allocation7], %s324
        %p326 = pneg %p59
        %p327 = pneg %p56
        %p328 = pneg %p80
        %p329 = pneg %p77
        %p330 = pneg %p101
        %p331 = pneg %p98
        %p332 = pneg %p122
        %p333 = pneg %p119
        %p334 = pneg %p143
        %p335 = pneg %p140
        %p336 = pneg %p164
        %p337 = pneg %p161
        %p338 = pneg %p192
        %p339 = pneg %p189
        %s340 = sand.u32 %s179, 1
        %s341 = scalar_lea.sflag [#allocation9], %s340
        %s342 = sand.u32 %s179, 1
        %s343 = smul.addr %s342, 12
        %s344 = scalar_lea.vmem [#allocation18], %s343
        %s345 = smul.u32 %s31, %s30
        %p346 = scmp.eq.s32.totalorder %s30, 0
        // Predicated region
        $region69: #{tpu_custom_call.1} parent=43 // pred_check
          %p347 = pneg %p346
        $region70: #{tpu_custom_call.1} parent=43 // pred_check_branch
          %349 = sbr.rel (%p347) target = $region72
        $region71: #{tpu_custom_call.1} parent=43 // pred_region
          %p350 = scmp.eq.s32.totalorder %s31, 0
          // Predicated region
          $region73: #{tpu_custom_call.1} parent=71 // pred_check
            %p351 = pneg %p350
          $region74: #{tpu_custom_call.1} parent=71 // pred_check_branch
            %353 = sbr.rel (%p351) target = $region76
          $region75: #{tpu_custom_call.1} parent=71 // pred_region
            %354 = vst [vmem:[#allocation2] sm:$0xf] 0.0
            %355 = vst [vmem:[#allocation2 + $0x14] sm:$0xf] 0.0
            %356 = vst [vmem:[#allocation2 + $0x10] sm:$0xf] 0.0
            %357 = vst [vmem:[#allocation2 + $0x24] sm:$0xf] 0.0
            %vm358 = vcmask 3072
            %359 = vst.msk [vmem:[#allocation3] sm:$0xf] %vm358, 0.0
            %360 = vst.msk [vmem:[#allocation4] sm:$0xf] %vm358, 0.0
          $region76: #{tpu_custom_call.1} parent=71 // pred_fallthru
            _
          %v361 = vld [vmem:[#allocation10] sm:$0xf]
          %v362 = vld [vmem:[%s296] sm:$0xff]
          %v363 = vld [vmem:[%s296 + $0x8] sm:$0xff]
          %365 = vrot.lane.b32.xlu0 %v361, 124
          %v366 = vpop.permute.xlu0 %365
          %v369 = vcombine.high %v362, %v362
          %v370 = vcombine.high %v363, %v363
          %371 = vrot.lane.b32.xlu0 %v362, 18
          %v372 = vpop.permute.xlu0 %371
          %373 = vrot.lane.b32.xlu0 %v369, 18
          %v374 = vpop.permute.xlu0 %373
          %375 = vrot.lane.b32.xlu0 %v363, 18
          %v376 = vpop.permute.xlu0 %375
          %377 = vrot.lane.b32.xlu0 %v370, 18
          %v378 = vpop.permute.xlu0 %377
          %vm379 = vcmask 146432
          %v380 = vsel %vm379, %v372, %v374
          %v381 = vsel %vm379, %v374, %v376
          %v382 = vsel %vm379, %v376, %v378
          %vm383 = vcmask 31744
          %v384 = vsel %vm383, %v366, 0
          %vm386 = vcmask 1043456
          %v387 = vsel %vm386, %v380, 0
          %v389 = vsel %vm386, %v381, 0
          %v391 = vsel %vm386, %v382, 0
          %393 = vmatprep.subr.mxu0 %v389
          %394 = vmatpush1.msra.mxu0 %v387
          %395 = vmatprep.subr.mxu0 0.0
          %396 = vmatpush1.msra.mxu0 0.0
          %397 = vmatprep.subr.mxu0 0.0
          %398 = vmatpush1.msra.mxu0 0.0
          %399 = vmatprep.subr.mxu0 0.0
          %400 = vmatpush1.msra.mxu0 0.0
          %401 = vmatprep.subr.mxu0 0.0
          %402 = vmatpush1.msra.mxu0 0.0
          %403 = vmatprep.subr.mxu0 0.0
          %404 = vmatpush1.msra.mxu0 0.0
          %405 = vmatprep.subr.mxu0 0.0
          %406 = vmatpush1.msra.mxu0 0.0
          %407 = vmatprep.subr.mxu0 0.0
          %408 = vmatpush1.msra.mxu0 0.0
          %409 = vmatprep.subr.mxu0 0.0
          %410 = vmatpush1.msra.mxu0 0.0
          %411 = vmatprep.subr.mxu0 0.0
          %412 = vmatpush1.msra.mxu0 0.0
          %413 = vmatprep.subr.mxu0 0.0
          %414 = vmatpush1.msra.mxu0 0.0
          %415 = vmatprep.subr.mxu0 0.0
          %416 = vmatpush1.msra.mxu0 0.0
          %417 = vmatprep.subr.mxu0 0.0
          %418 = vmatpush1.msra.mxu0 0.0
          %419 = vmatprep.subr.mxu0 0.0
          %420 = vmatpush1.msra.mxu0 0.0
          %421 = vmatprep.subr.mxu0 0.0
          %422 = vmatpush1.msra.mxu0 0.0
          %423 = vmatprep.subr.mxu0 0.0
          %424 = vmatpush1.msra.mxu0 0.0
          %425 = vmatprep.subr.mxu0 0.0
          %426 = vmatpush1.msra.mxu0 0.0
          %427 = vmatprep.subr.mxu0 0.0
          %428 = vmatpush1.msra.mxu0 0.0
          %429 = vmatprep.subr.mxu0 0.0
          %430 = vmatpush1.msra.mxu0 0.0
          %431 = vmatprep.subr.mxu0 0.0
          %432 = vmatpush1.msra.mxu0 0.0
          %433 = vmatprep.subr.mxu0 0.0
          %434 = vmatpush1.msra.mxu0 0.0
          %435 = vmatprep.subr.mxu0 0.0
          %436 = vmatpush1.msra.mxu0 0.0
          %437 = vmatprep.subr.mxu0 0.0
          %438 = vmatpush1.msra.mxu0 0.0
          %439 = vmatprep.subr.mxu0 0.0
          %440 = vmatpush1.msra.mxu0 0.0
          %441 = vmatprep.subr.mxu0 0.0
          %442 = vmatpush1.msra.mxu0 0.0
          %443 = vmatprep.subr.mxu0 0.0
          %444 = vmatpush1.msra.mxu0 0.0
          %445 = vmatprep.subr.mxu0 0.0
          %446 = vmatpush1.msra.mxu0 0.0
          %447 = vmatprep.subr.mxu0 0.0
          %448 = vmatpush1.msra.mxu0 0.0
          %449 = vmatprep.subr.mxu0 0.0
          %450 = vmatpush1.msra.mxu0 0.0
          %451 = vmatprep.subr.mxu0 0.0
          %452 = vmatpush1.msra.mxu0 0.0
          %453 = vmatprep.subr.mxu0 0.0
          %454 = vmatpush1.msra.mxu0 0.0
          %455 = vmatprep.subr.mxu0 0.0
          %456 = vmatpush1.msra.mxu0 0.0
          %457 = vmatprep.mubr.f32.mxu0 0.0
          %458 = vmatmul.mubr.f32.gmra.mrb[0].mxu0 %v384
          %v459 = vpop.f32.mrb[0].mxu0
          %v460 = vadd.f32 0.0, %v459
          %v461 = vpop.f32.mrb[0].mxu0
          %v462 = vadd.f32 0.0, %v461
          %463 = vdwg.mxu0
          %464 = vmatprep.subr.mxu0 0.0
          %465 = vmatpush1.msra.mxu0 %v391
          %466 = vmatprep.subr.mxu0 0.0
          %467 = vmatpush1.msra.mxu0 0.0
          %468 = vmatprep.subr.mxu0 0.0
          %469 = vmatpush1.msra.mxu0 0.0
          %470 = vmatprep.subr.mxu0 0.0
          %471 = vmatpush1.msra.mxu0 0.0
          %472 = vmatprep.subr.mxu0 0.0
          %473 = vmatpush1.msra.mxu0 0.0
          %474 = vmatprep.subr.mxu0 0.0
          %475 = vmatpush1.msra.mxu0 0.0
          %476 = vmatprep.subr.mxu0 0.0
          %477 = vmatpush1.msra.mxu0 0.0
          %478 = vmatprep.subr.mxu0 0.0
          %479 = vmatpush1.msra.mxu0 0.0
          %480 = vmatprep.subr.mxu0 0.0
          %481 = vmatpush1.msra.mxu0 0.0
          %482 = vmatprep.subr.mxu0 0.0
          %483 = vmatpush1.msra.mxu0 0.0
          %484 = vmatprep.subr.mxu0 0.0
          %485 = vmatpush1.msra.mxu0 0.0
          %486 = vmatprep.subr.mxu0 0.0
          %487 = vmatpush1.msra.mxu0 0.0
          %488 = vmatprep.subr.mxu0 0.0
          %489 = vmatpush1.msra.mxu0 0.0
          %490 = vmatprep.subr.mxu0 0.0
          %491 = vmatpush1.msra.mxu0 0.0
          %492 = vmatprep.subr.mxu0 0.0
          %493 = vmatpush1.msra.mxu0 0.0
          %494 = vmatprep.subr.mxu0 0.0
          %495 = vmatpush1.msra.mxu0 0.0
          %496 = vmatprep.subr.mxu0 0.0
          %497 = vmatpush1.msra.mxu0 0.0
          %498 = vmatprep.subr.mxu0 0.0
          %499 = vmatpush1.msra.mxu0 0.0
          %500 = vmatprep.subr.mxu0 0.0
          %501 = vmatpush1.msra.mxu0 0.0
          %502 = vmatprep.subr.mxu0 0.0
          %503 = vmatpush1.msra.mxu0 0.0
          %504 = vmatprep.subr.mxu0 0.0
          %505 = vmatpush1.msra.mxu0 0.0
          %506 = vmatprep.subr.mxu0 0.0
          %507 = vmatpush1.msra.mxu0 0.0
          %508 = vmatprep.subr.mxu0 0.0
          %509 = vmatpush1.msra.mxu0 0.0
          %510 = vmatprep.subr.mxu0 0.0
          %511 = vmatpush1.msra.mxu0 0.0
          %512 = vmatprep.subr.mxu0 0.0
          %513 = vmatpush1.msra.mxu0 0.0
          %514 = vmatprep.subr.mxu0 0.0
          %515 = vmatpush1.msra.mxu0 0.0
          %516 = vmatprep.subr.mxu0 0.0
          %517 = vmatpush1.msra.mxu0 0.0
          %518 = vmatprep.subr.mxu0 0.0
          %519 = vmatpush1.msra.mxu0 0.0
          %520 = vmatprep.subr.mxu0 0.0
          %521 = vmatpush1.msra.mxu0 0.0
          %522 = vmatprep.subr.mxu0 0.0
          %523 = vmatpush1.msra.mxu0 0.0
          %524 = vmatprep.subr.mxu0 0.0
          %525 = vmatpush1.msra.mxu0 0.0
          %526 = vmatprep.subr.mxu0 0.0
          %527 = vmatpush1.msra.mxu0 0.0
          %528 = vmatprep.mubr.f32.mxu0 0.0
          %529 = vmatmul.mubr.f32.gmra.mrb[0].mxu0 %v384
          %v530 = vpop.f32.mrb[0].mxu0
          %v531 = vadd.f32 0.0, %v530
          %v532 = vpop.f32.mrb[0].mxu0
          %533 = vdwg.mxu0
          %534 = vrot.lane.b32.xlu0 %v362, 19
          %v535 = vpop.permute.xlu0 %534
          %536 = vrot.lane.b32.xlu0 %v369, 19
          %v537 = vpop.permute.xlu0 %536
          %538 = vrot.lane.b32.xlu0 %v363, 19
          %v539 = vpop.permute.xlu0 %538
          %540 = vrot.lane.b32.xlu0 %v370, 19
          %v541 = vpop.permute.xlu0 %540
          %vm542 = vcmask 154624
          %v543 = vsel %vm542, %v535, %v537
          %v544 = vsel %vm542, %v537, %v539
          %v545 = vsel %vm542, %v539, %v541
          %v546 = vsel %vm383, %v361, 0
          %v548 = vsel %vm386, %v543, 0
          %v550 = vsel %vm386, %v544, 0
          %v552 = vsel %vm386, %v545, 0
          %554 = vmatprep.subr.mxu0 %v550
          %555 = vmatpush1.msra.mxu0 %v548
          %556 = vmatprep.subr.mxu0 0.0
          %557 = vmatpush1.msra.mxu0 0.0
          %558 = vmatprep.subr.mxu0 0.0
          %559 = vmatpush1.msra.mxu0 0.0
          %560 = vmatprep.subr.mxu0 0.0
          %561 = vmatpush1.msra.mxu0 0.0
          %562 = vmatprep.subr.mxu0 0.0
          %563 = vmatpush1.msra.mxu0 0.0
          %564 = vmatprep.subr.mxu0 0.0
          %565 = vmatpush1.msra.mxu0 0.0
          %566 = vmatprep.subr.mxu0 0.0
          %567 = vmatpush1.msra.mxu0 0.0
          %568 = vmatprep.subr.mxu0 0.0
          %569 = vmatpush1.msra.mxu0 0.0
          %570 = vmatprep.subr.mxu0 0.0
          %571 = vmatpush1.msra.mxu0 0.0
          %572 = vmatprep.subr.mxu0 0.0
          %573 = vmatpush1.msra.mxu0 0.0
          %574 = vmatprep.subr.mxu0 0.0
          %575 = vmatpush1.msra.mxu0 0.0
          %576 = vmatprep.subr.mxu0 0.0
          %577 = vmatpush1.msra.mxu0 0.0
          %578 = vmatprep.subr.mxu0 0.0
          %579 = vmatpush1.msra.mxu0 0.0
          %580 = vmatprep.subr.mxu0 0.0
          %581 = vmatpush1.msra.mxu0 0.0
          %582 = vmatprep.subr.mxu0 0.0
          %583 = vmatpush1.msra.mxu0 0.0
          %584 = vmatprep.subr.mxu0 0.0
          %585 = vmatpush1.msra.mxu0 0.0
          %586 = vmatprep.subr.mxu0 0.0
          %587 = vmatpush1.msra.mxu0 0.0
          %588 = vmatprep.subr.mxu0 0.0
          %589 = vmatpush1.msra.mxu0 0.0
          %590 = vmatprep.subr.mxu0 0.0
          %591 = vmatpush1.msra.mxu0 0.0
          %592 = vmatprep.subr.mxu0 0.0
          %593 = vmatpush1.msra.mxu0 0.0
          %594 = vmatprep.subr.mxu0 0.0
          %595 = vmatpush1.msra.mxu0 0.0
          %596 = vmatprep.subr.mxu0 0.0
          %597 = vmatpush1.msra.mxu0 0.0
          %598 = vmatprep.subr.mxu0 0.0
          %599 = vmatpush1.msra.mxu0 0.0
          %600 = vmatprep.subr.mxu0 0.0
          %601 = vmatpush1.msra.mxu0 0.0
          %602 = vmatprep.subr.mxu0 0.0
          %603 = vmatpush1.msra.mxu0 0.0
          %604 = vmatprep.subr.mxu0 0.0
          %605 = vmatpush1.msra.mxu0 0.0
          %606 = vmatprep.subr.mxu0 0.0
          %607 = vmatpush1.msra.mxu0 0.0
          %608 = vmatprep.subr.mxu0 0.0
          %609 = vmatpush1.msra.mxu0 0.0
          %610 = vmatprep.subr.mxu0 0.0
          %611 = vmatpush1.msra.mxu0 0.0
          %612 = vmatprep.subr.mxu0 0.0
          %613 = vmatpush1.msra.mxu0 0.0
          %614 = vmatprep.subr.mxu0 0.0
          %615 = vmatpush1.msra.mxu0 0.0
          %616 = vmatprep.subr.mxu0 0.0
          %617 = vmatpush1.msra.mxu0 0.0
          %618 = vmatprep.mubr.f32.mxu0 0.0
          %619 = vmatmul.mubr.f32.gmra.mrb[0].mxu0 %v546
          %v620 = vpop.f32.mrb[0].mxu0
          %v621 = vadd.f32 %v460, %v620
          %v622 = vpop.f32.mrb[0].mxu0
          %v623 = vadd.f32 %v462, %v622
          %624 = vdwg.mxu0
          %625 = vmatprep.subr.mxu0 0.0
          %626 = vmatpush1.msra.mxu0 %v552
          %627 = vmatprep.subr.mxu0 0.0
          %628 = vmatpush1.msra.mxu0 0.0
          %629 = vmatprep.subr.mxu0 0.0
          %630 = vmatpush1.msra.mxu0 0.0
          %631 = vmatprep.subr.mxu0 0.0
          %632 = vmatpush1.msra.mxu0 0.0
          %633 = vmatprep.subr.mxu0 0.0
          %634 = vmatpush1.msra.mxu0 0.0
          %635 = vmatprep.subr.mxu0 0.0
          %636 = vmatpush1.msra.mxu0 0.0
          %637 = vmatprep.subr.mxu0 0.0
          %638 = vmatpush1.msra.mxu0 0.0
          %639 = vmatprep.subr.mxu0 0.0
          %640 = vmatpush1.msra.mxu0 0.0
          %641 = vmatprep.subr.mxu0 0.0
          %642 = vmatpush1.msra.mxu0 0.0
          %643 = vmatprep.subr.mxu0 0.0
          %644 = vmatpush1.msra.mxu0 0.0
          %645 = vmatprep.subr.mxu0 0.0
          %646 = vmatpush1.msra.mxu0 0.0
          %647 = vmatprep.subr.mxu0 0.0
          %648 = vmatpush1.msra.mxu0 0.0
          %649 = vmatprep.subr.mxu0 0.0
          %650 = vmatpush1.msra.mxu0 0.0
          %651 = vmatprep.subr.mxu0 0.0
          %652 = vmatpush1.msra.mxu0 0.0
          %653 = vmatprep.subr.mxu0 0.0
          %654 = vmatpush1.msra.mxu0 0.0
          %655 = vmatprep.subr.mxu0 0.0
          %656 = vmatpush1.msra.mxu0 0.0
          %657 = vmatprep.subr.mxu0 0.0
          %658 = vmatpush1.msra.mxu0 0.0
          %659 = vmatprep.subr.mxu0 0.0
          %660 = vmatpush1.msra.mxu0 0.0
          %661 = vmatprep.subr.mxu0 0.0
          %662 = vmatpush1.msra.mxu0 0.0
          %663 = vmatprep.subr.mxu0 0.0
          %664 = vmatpush1.msra.mxu0 0.0
          %665 = vmatprep.subr.mxu0 0.0
          %666 = vmatpush1.msra.mxu0 0.0
          %667 = vmatprep.subr.mxu0 0.0
          %668 = vmatpush1.msra.mxu0 0.0
          %669 = vmatprep.subr.mxu0 0.0
          %670 = vmatpush1.msra.mxu0 0.0
          %671 = vmatprep.subr.mxu0 0.0
          %672 = vmatpush1.msra.mxu0 0.0
          %673 = vmatprep.subr.mxu0 0.0
          %674 = vmatpush1.msra.mxu0 0.0
          %675 = vmatprep.subr.mxu0 0.0
          %676 = vmatpush1.msra.mxu0 0.0
          %677 = vmatprep.subr.mxu0 0.0
          %678 = vmatpush1.msra.mxu0 0.0
          %679 = vmatprep.subr.mxu0 0.0
          %680 = vmatpush1.msra.mxu0 0.0
          %681 = vmatprep.subr.mxu0 0.0
          %682 = vmatpush1.msra.mxu0 0.0
          %683 = vmatprep.subr.mxu0 0.0
          %684 = vmatpush1.msra.mxu0 0.0
          %685 = vmatprep.subr.mxu0 0.0
          %686 = vmatpush1.msra.mxu0 0.0
          %687 = vmatprep.subr.mxu0 0.0
          %688 = vmatpush1.msra.mxu0 0.0
          %689 = vmatprep.mubr.f32.mxu0 0.0
          %690 = vmatmul.mubr.f32.gmra.mrb[0].mxu0 %v546
          %v691 = vpop.f32.mrb[0].mxu0
          %v692 = vadd.f32 %v531, %v691
          %v693 = vpop.f32.mrb[0].mxu0
          %694 = vdwg.mxu0
          %v695 = vld [vmem:[#allocation10] sm:$0xf]
          %v696 = vld [vmem:[%s296] sm:$0xff]
          %v697 = vld [vmem:[%s296 + $0x8] sm:$0xff]
          %699 = vrot.lane.b32.xlu0 %v695, 120
          %v700 = vpop.permute.xlu0 %699
          %v703 = vcombine.high %v696, %v696
          %v704 = vcombine.high %v697, %v697
          %705 = vrot.lane.b32.xlu0 %v696, 17
          %v706 = vpop.permute.xlu0 %705
          %707 = vrot.lane.b32.xlu0 %v703, 17
          %v708 = vpop.permute.xlu0 %707
          %709 = vrot.lane.b32.xlu0 %v697, 17
          %v710 = vpop.permute.xlu0 %709
          %711 = vrot.lane.b32.xlu0 %v704, 17
          %v712 = vpop.permute.xlu0 %711
          %vm713 = vcmask 138240
          %v714 = vsel %vm713, %v706, %v708
          %v715 = vsel %vm713, %v708, %v710
          %v716 = vsel %vm713, %v710, %v712
          %v717 = vsel %vm383, %v700, 0
          %v719 = vsel %vm386, %v714, 0
          %v721 = vsel %vm386, %v715, 0
          %v723 = vsel %vm386, %v716, 0
          %725 = vmatprep.subr.mxu0 %v721
          %726 = vmatpush1.msra.mxu0 %v719
          %727 = vmatprep.subr.mxu0 0.0
          %728 = vmatpush1.msra.mxu0 0.0
          %729 = vmatprep.subr.mxu0 0.0
          %730 = vmatpush1.msra.mxu0 0.0
          %731 = vmatprep.subr.mxu0 0.0
          %732 = vmatpush1.msra.mxu0 0.0
          %733 = vmatprep.subr.mxu0 0.0
          %734 = vmatpush1.msra.mxu0 0.0
          %735 = vmatprep.subr.mxu0 0.0
          %736 = vmatpush1.msra.mxu0 0.0
          %737 = vmatprep.subr.mxu0 0.0
          %738 = vmatpush1.msra.mxu0 0.0
          %739 = vmatprep.subr.mxu0 0.0
          %740 = vmatpush1.msra.mxu0 0.0
          %741 = vmatprep.subr.mxu0 0.0
          %742 = vmatpush1.msra.mxu0 0.0
          %743 = vmatprep.subr.mxu0 0.0
          %744 = vmatpush1.msra.mxu0 0.0
          %745 = vmatprep.subr.mxu0 0.0
          %746 = vmatpush1.msra.mxu0 0.0
          %747 = vmatprep.subr.mxu0 0.0
          %748 = vmatpush1.msra.mxu0 0.0
          %749 = vmatprep.subr.mxu0 0.0
          %750 = vmatpush1.msra.mxu0 0.0
          %751 = vmatprep.subr.mxu0 0.0
          %752 = vmatpush1.msra.mxu0 0.0
          %753 = vmatprep.subr.mxu0 0.0
          %754 = vmatpush1.msra.mxu0 0.0
          %755 = vmatprep.subr.mxu0 0.0
          %756 = vmatpush1.msra.mxu0 0.0
          %757 = vmatprep.subr.mxu0 0.0
          %758 = vmatpush1.msra.mxu0 0.0
          %759 = vmatprep.subr.mxu0 0.0
          %760 = vmatpush1.msra.mxu0 0.0
          %761 = vmatprep.subr.mxu0 0.0
          %762 = vmatpush1.msra.mxu0 0.0
          %763 = vmatprep.subr.mxu0 0.0
          %764 = vmatpush1.msra.mxu0 0.0
          %765 = vmatprep.subr.mxu0 0.0
          %766 = vmatpush1.msra.mxu0 0.0
          %767 = vmatprep.subr.mxu0 0.0
          %768 = vmatpush1.msra.mxu0 0.0
          %769 = vmatprep.subr.mxu0 0.0
          %770 = vmatpush1.msra.mxu0 0.0
          %771 = vmatprep.subr.mxu0 0.0
          %772 = vmatpush1.msra.mxu0 0.0
          %773 = vmatprep.subr.mxu0 0.0
          %774 = vmatpush1.msra.mxu0 0.0
          %775 = vmatprep.subr.mxu0 0.0
          %776 = vmatpush1.msra.mxu0 0.0
          %777 = vmatprep.subr.mxu0 0.0
          %778 = vmatpush1.msra.mxu0 0.0
          %779 = vmatprep.subr.mxu0 0.0
          %780 = vmatpush1.msra.mxu0 0.0
          %781 = vmatprep.subr.mxu0 0.0
          %782 = vmatpush1.msra.mxu0 0.0
          %783 = vmatprep.subr.mxu0 0.0
          %784 = vmatpush1.msra.mxu0 0.0
          %785 = vmatprep.subr.mxu0 0.0
          %786 = vmatpush1.msra.mxu0 0.0
          %787 = vmatprep.subr.mxu0 0.0
          %788 = vmatpush1.msra.mxu0 0.0
          %789 = vmatprep.mubr.f32.mxu0 0.0
          %790 = vmatmul.mubr.f32.gmra.mrb[0].mxu0 %v717
          %v791 = vpop.f32.mrb[0].mxu0
          %v792 = vadd.f32 0.0, %v791
          %v793 = vpop.f32.mrb[0].mxu0
          %v794 = vadd.f32 0.0, %v793
          %795 = vdwg.mxu0
          %796 = vmatprep.subr.mxu0 0.0
          %797 = vmatpush1.msra.mxu0 %v723
          %798 = vmatprep.subr.mxu0 0.0
          %799 = vmatpush1.msra.mxu0 0.0
          %800 = vmatprep.subr.mxu0 0.0
          %801 = vmatpush1.msra.mxu0 0.0
          %802 = vmatprep.subr.mxu0 0.0
          %803 = vmatpush1.msra.mxu0 0.0
          %804 = vmatprep.subr.mxu0 0.0
          %805 = vmatpush1.msra.mxu0 0.0
          %806 = vmatprep.subr.mxu0 0.0
          %807 = vmatpush1.msra.mxu0 0.0
          %808 = vmatprep.subr.mxu0 0.0
          %809 = vmatpush1.msra.mxu0 0.0
          %810 = vmatprep.subr.mxu0 0.0
          %811 = vmatpush1.msra.mxu0 0.0
          %812 = vmatprep.subr.mxu0 0.0
          %813 = vmatpush1.msra.mxu0 0.0
          %814 = vmatprep.subr.mxu0 0.0
          %815 = vmatpush1.msra.mxu0 0.0
          %816 = vmatprep.subr.mxu0 0.0
          %817 = vmatpush1.msra.mxu0 0.0
          %818 = vmatprep.subr.mxu0 0.0
          %819 = vmatpush1.msra.mxu0 0.0
          %820 = vmatprep.subr.mxu0 0.0
          %821 = vmatpush1.msra.mxu0 0.0
          %822 = vmatprep.subr.mxu0 0.0
          %823 = vmatpush1.msra.mxu0 0.0
          %824 = vmatprep.subr.mxu0 0.0
          %825 = vmatpush1.msra.mxu0 0.0
          %826 = vmatprep.subr.mxu0 0.0
          %827 = vmatpush1.msra.mxu0 0.0
          %828 = vmatprep.subr.mxu0 0.0
          %829 = vmatpush1.msra.mxu0 0.0
          %830 = vmatprep.subr.mxu0 0.0
          %831 = vmatpush1.msra.mxu0 0.0
          %832 = vmatprep.subr.mxu0 0.0
          %833 = vmatpush1.msra.mxu0 0.0
          %834 = vmatprep.subr.mxu0 0.0
          %835 = vmatpush1.msra.mxu0 0.0
          %836 = vmatprep.subr.mxu0 0.0
          %837 = vmatpush1.msra.mxu0 0.0
          %838 = vmatprep.subr.mxu0 0.0
          %839 = vmatpush1.msra.mxu0 0.0
          %840 = vmatprep.subr.mxu0 0.0
          %841 = vmatpush1.msra.mxu0 0.0
          %842 = vmatprep.subr.mxu0 0.0
          %843 = vmatpush1.msra.mxu0 0.0
          %844 = vmatprep.subr.mxu0 0.0
          %845 = vmatpush1.msra.mxu0 0.0
          %846 = vmatprep.subr.mxu0 0.0
          %847 = vmatpush1.msra.mxu0 0.0
          %848 = vmatprep.subr.mxu0 0.0
          %849 = vmatpush1.msra.mxu0 0.0
          %850 = vmatprep.subr.mxu0 0.0
          %851 = vmatpush1.msra.mxu0 0.0
          %852 = vmatprep.subr.mxu0 0.0
          %853 = vmatpush1.msra.mxu0 0.0
          %854 = vmatprep.subr.mxu0 0.0
          %855 = vmatpush1.msra.mxu0 0.0
          %856 = vmatprep.subr.mxu0 0.0
          %857 = vmatpush1.msra.mxu0 0.0
          %858 = vmatprep.subr.mxu0 0.0
          %859 = vmatpush1.msra.mxu0 0.0
          %860 = vmatprep.mubr.f32.mxu0 0.0
          %861 = vmatmul.mubr.f32.gmra.mrb[0].mxu0 %v717
          %v862 = vpop.f32.mrb[0].mxu0
          %v863 = vadd.f32 0.0, %v862
          %v864 = vpop.f32.mrb[0].mxu0
          %865 = vdwg.mxu0
          %v866 = vadd.f32 %v621, %v792
          %v867 = vadd.f32 %v623, %v794
          %v868 = vadd.f32 %v692, %v863
          %v869 = vld [vmem:[#allocation10] sm:$0xf]
          %v870 = vld [vmem:[%s296] sm:$0xff]
          %v871 = vld [vmem:[%s296 + $0x8] sm:$0xff]
          %873 = vrot.lane.b32.xlu0 %v869, 116
          %v874 = vpop.permute.xlu0 %873
          %v877 = vcombine.high %v870, %v870
          %v878 = vcombine.high %v871, %v871
          %879 = vrot.lane.b32.xlu0 %v870, 1
          %v880 = vpop.permute.xlu0 %879
          %881 = vrot.lane.b32.xlu0 %v877, 1
          %v882 = vpop.permute.xlu0 %881
          %883 = vrot.lane.b32.xlu0 %v871, 1
          %v884 = vpop.permute.xlu0 %883
          %885 = vrot.lane.b32.xlu0 %v878, 1
          %v886 = vpop.permute.xlu0 %885
          %vm887 = vcmask 7168
          %v888 = vsel %vm887, %v880, %v882
          %v889 = vsel %vm887, %v882, %v884
          %v890 = vsel %vm887, %v884, %v886
          %v891 = vsel %vm383, %v874, 0
          %v893 = vsel %vm386, %v888, 0
          %v895 = vsel %vm386, %v889, 0
          %v897 = vsel %vm386, %v890, 0
          %899 = vmatprep.subr.mxu0 %v895
          %900 = vmatpush1.msra.mxu0 %v893
          %901 = vmatprep.subr.mxu0 0.0
          %902 = vmatpush1.msra.mxu0 0.0
          %903 = vmatprep.subr.mxu0 0.0
          %904 = vmatpush1.msra.mxu0 0.0
          %905 = vmatprep.subr.mxu0 0.0
          %906 = vmatpush1.msra.mxu0 0.0
          %907 = vmatprep.subr.mxu0 0.0
          %908 = vmatpush1.msra.mxu0 0.0
          %909 = vmatprep.subr.mxu0 0.0
          %910 = vmatpush1.msra.mxu0 0.0
          %911 = vmatprep.subr.mxu0 0.0
          %912 = vmatpush1.msra.mxu0 0.0
          %913 = vmatprep.subr.mxu0 0.0
          %914 = vmatpush1.msra.mxu0 0.0
          %915 = vmatprep.subr.mxu0 0.0
          %916 = vmatpush1.msra.mxu0 0.0
          %917 = vmatprep.subr.mxu0 0.0
          %918 = vmatpush1.msra.mxu0 0.0
          %919 = vmatprep.subr.mxu0 0.0
          %920 = vmatpush1.msra.mxu0 0.0
          %921 = vmatprep.subr.mxu0 0.0
          %922 = vmatpush1.msra.mxu0 0.0
          %923 = vmatprep.subr.mxu0 0.0
          %924 = vmatpush1.msra.mxu0 0.0
          %925 = vmatprep.subr.mxu0 0.0
          %926 = vmatpush1.msra.mxu0 0.0
          %927 = vmatprep.subr.mxu0 0.0
          %928 = vmatpush1.msra.mxu0 0.0
          %929 = vmatprep.subr.mxu0 0.0
          %930 = vmatpush1.msra.mxu0 0.0
          %931 = vmatprep.subr.mxu0 0.0
          %932 = vmatpush1.msra.mxu0 0.0
          %933 = vmatprep.subr.mxu0 0.0
          %934 = vmatpush1.msra.mxu0 0.0
          %935 = vmatprep.subr.mxu0 0.0
          %936 = vmatpush1.msra.mxu0 0.0
          %937 = vmatprep.subr.mxu0 0.0
          %938 = vmatpush1.msra.mxu0 0.0
          %939 = vmatprep.subr.mxu0 0.0
          %940 = vmatpush1.msra.mxu0 0.0
          %941 = vmatprep.subr.mxu0 0.0
          %942 = vmatpush1.msra.mxu0 0.0
          %943 = vmatprep.subr.mxu0 0.0
          %944 = vmatpush1.msra.mxu0 0.0
          %945 = vmatprep.subr.mxu0 0.0
          %946 = vmatpush1.msra.mxu0 0.0
          %947 = vmatprep.subr.mxu0 0.0
          %948 = vmatpush1.msra.mxu0 0.0
          %949 = vmatprep.subr.mxu0 0.0
          %950 = vmatpush1.msra.mxu0 0.0
          %951 = vmatprep.subr.mxu0 0.0
          %952 = vmatpush1.msra.mxu0 0.0
          %953 = vmatprep.subr.mxu0 0.0
          %954 = vmatpush1.msra.mxu0 0.0
          %955 = vmatprep.subr.mxu0 0.0
          %956 = vmatpush1.msra.mxu0 0.0
          %957 = vmatprep.subr.mxu0 0.0
          %958 = vmatpush1.msra.mxu0 0.0
          %959 = vmatprep.subr.mxu0 0.0
          %960 = vmatpush1.msra.mxu0 0.0
          %961 = vmatprep.subr.mxu0 0.0
          %962 = vmatpush1.msra.mxu0 0.0
          %963 = vmatprep.mubr.f32.mxu0 0.0
          %964 = vmatmul.mubr.f32.gmra.mrb[0].mxu0 %v891
          %v965 = vpop.f32.mrb[0].mxu0
          %v966 = vadd.f32 0.0, %v965
          %v967 = vpop.f32.mrb[0].mxu0
          %v968 = vadd.f32 0.0, %v967
          %969 = vdwg.mxu0
          %970 = vmatprep.subr.mxu0 0.0
          %971 = vmatpush1.msra.mxu0 %v897
          %972 = vmatprep.subr.mxu0 0.0
          %973 = vmatpush1.msra.mxu0 0.0
          %974 = vmatprep.subr.mxu0 0.0
          %975 = vmatpush1.msra.mxu0 0.0
          %976 = vmatprep.subr.mxu0 0.0
          %977 = vmatpush1.msra.mxu0 0.0
          %978 = vmatprep.subr.mxu0 0.0
          %979 = vmatpush1.msra.mxu0 0.0
          %980 = vmatprep.subr.mxu0 0.0
          %981 = vmatpush1.msra.mxu0 0.0
          %982 = vmatprep.subr.mxu0 0.0
          %983 = vmatpush1.msra.mxu0 0.0
          %984 = vmatprep.subr.mxu0 0.0
          %985 = vmatpush1.msra.mxu0 0.0
          %986 = vmatprep.subr.mxu0 0.0
          %987 = vmatpush1.msra.mxu0 0.0
          %988 = vmatprep.subr.mxu0 0.0
          %989 = vmatpush1.msra.mxu0 0.0
          %990 = vmatprep.subr.mxu0 0.0
          %991 = vmatpush1.msra.mxu0 0.0
          %992 = vmatprep.subr.mxu0 0.0
          %993 = vmatpush1.msra.mxu0 0.0
          %994 = vmatprep.subr.mxu0 0.0
          %995 = vmatpush1.msra.mxu0 0.0
          %996 = vmatprep.subr.mxu0 0.0
          %997 = vmatpush1.msra.mxu0 0.0
          %998 = vmatprep.subr.mxu0 0.0
          %999 = vmatpush1.msra.mxu0 0.0
          %1000 = vmatprep.subr.mxu0 0.0
          %1001 = vmatpush1.msra.mxu0 0.0
          %1002 = vmatprep.subr.mxu0 0.0
          %1003 = vmatpush1.msra.mxu0 0.0
          %1004 = vmatprep.subr.mxu0 0.0
          %1005 = vmatpush1.msra.mxu0 0.0
          %1006 = vmatprep.subr.mxu0 0.0
          %1007 = vmatpush1.msra.mxu0 0.0
          %1008 = vmatprep.subr.mxu0 0.0
          %1009 = vmatpush1.msra.mxu0 0.0
          %1010 = vmatprep.subr.mxu0 0.0
          %1011 = vmatpush1.msra.mxu0 0.0
          %1012 = vmatprep.subr.mxu0 0.0
          %1013 = vmatpush1.msra.mxu0 0.0
          %1014 = vmatprep.subr.mxu0 0.0
          %1015 = vmatpush1.msra.mxu0 0.0
          %1016 = vmatprep.subr.mxu0 0.0
          %1017 = vmatpush1.msra.mxu0 0.0
          %1018 = vmatprep.subr.mxu0 0.0
          %1019 = vmatpush1.msra.mxu0 0.0
          %1020 = vmatprep.subr.mxu0 0.0
          %1021 = vmatpush1.msra.mxu0 0.0
          %1022 = vmatprep.subr.mxu0 0.0
          %1023 = vmatpush1.msra.mxu0 0.0
          %1024 = vmatprep.subr.mxu0 0.0
          %1025 = vmatpush1.msra.mxu0 0.0
          %1026 = vmatprep.subr.mxu0 0.0
          %1027 = vmatpush1.msra.mxu0 0.0
          %1028 = vmatprep.subr.mxu0 0.0
          %1029 = vmatpush1.msra.mxu0 0.0
          %1030 = vmatprep.subr.mxu0 0.0
          %1031 = vmatpush1.msra.mxu0 0.0
          %1032 = vmatprep.subr.mxu0 0.0
          %1033 = vmatpush1.msra.mxu0 0.0
          %1034 = vmatprep.mubr.f32.mxu0 0.0
          %1035 = vmatmul.mubr.f32.gmra.mrb[0].mxu0 %v891
          %v1036 = vpop.f32.mrb[0].mxu0
          %v1037 = vadd.f32 0.0, %v1036
          %v1038 = vpop.f32.mrb[0].mxu0
          %1039 = vdwg.mxu0
          %v1040 = vadd.f32 %v866, %v966
          %v1041 = vadd.f32 %v867, %v968
          %v1042 = vadd.f32 %v868, %v1037
          %v1043 = vld [vmem:[#allocation10] sm:$0xf]
          %v1044 = vld [vmem:[%s296 + $0x4] sm:$0xff]
          %v1045 = vld [vmem:[%s296 + $0xc] sm:$0xf]
          %1047 = vrot.lane.b32.xlu0 %v1043, 112
          %v1048 = vpop.permute.xlu0 %1047
          %v1051 = vcombine.high %v1044, %v1044
          %v1052 = vsel %vm383, %v1048, 0
          %v1054 = vsel %vm386, %v1044, 0
          %v1056 = vsel %vm386, %v1051, 0
          %v1058 = vsel %vm386, %v1045, 0
          %1060 = vmatprep.subr.mxu0 %v1056
          %1061 = vmatpush1.msra.mxu0 %v1054
          %1062 = vmatprep.subr.mxu0 0.0
          %1063 = vmatpush1.msra.mxu0 0.0
          %1064 = vmatprep.subr.mxu0 0.0
          %1065 = vmatpush1.msra.mxu0 0.0
          %1066 = vmatprep.subr.mxu0 0.0
          %1067 = vmatpush1.msra.mxu0 0.0
          %1068 = vmatprep.subr.mxu0 0.0
          %1069 = vmatpush1.msra.mxu0 0.0
          %1070 = vmatprep.subr.mxu0 0.0
          %1071 = vmatpush1.msra.mxu0 0.0
          %1072 = vmatprep.subr.mxu0 0.0
          %1073 = vmatpush1.msra.mxu0 0.0
          %1074 = vmatprep.subr.mxu0 0.0
          %1075 = vmatpush1.msra.mxu0 0.0
          %1076 = vmatprep.subr.mxu0 0.0
          %1077 = vmatpush1.msra.mxu0 0.0
          %1078 = vmatprep.subr.mxu0 0.0
          %1079 = vmatpush1.msra.mxu0 0.0
          %1080 = vmatprep.subr.mxu0 0.0
          %1081 = vmatpush1.msra.mxu0 0.0
          %1082 = vmatprep.subr.mxu0 0.0
          %1083 = vmatpush1.msra.mxu0 0.0
          %1084 = vmatprep.subr.mxu0 0.0
          %1085 = vmatpush1.msra.mxu0 0.0
          %1086 = vmatprep.subr.mxu0 0.0
          %1087 = vmatpush1.msra.mxu0 0.0
          %1088 = vmatprep.subr.mxu0 0.0
          %1089 = vmatpush1.msra.mxu0 0.0
          %1090 = vmatprep.subr.mxu0 0.0
          %1091 = vmatpush1.msra.mxu0 0.0
          %1092 = vmatprep.subr.mxu0 0.0
          %1093 = vmatpush1.msra.mxu0 0.0
          %1094 = vmatprep.subr.mxu0 0.0
          %1095 = vmatpush1.msra.mxu0 0.0
          %1096 = vmatprep.subr.mxu0 0.0
          %1097 = vmatpush1.msra.mxu0 0.0
          %1098 = vmatprep.subr.mxu0 0.0
          %1099 = vmatpush1.msra.mxu0 0.0
          %1100 = vmatprep.subr.mxu0 0.0
          %1101 = vmatpush1.msra.mxu0 0.0
          %1102 = vmatprep.subr.mxu0 0.0
          %1103 = vmatpush1.msra.mxu0 0.0
          %1104 = vmatprep.subr.mxu0 0.0
          %1105 = vmatpush1.msra.mxu0 0.0
          %1106 = vmatprep.subr.mxu0 0.0
          %1107 = vmatpush1.msra.mxu0 0.0
          %1108 = vmatprep.subr.mxu0 0.0
          %1109 = vmatpush1.msra.mxu0 0.0
          %1110 = vmatprep.subr.mxu0 0.0
          %1111 = vmatpush1.msra.mxu0 0.0
          %1112 = vmatprep.subr.mxu0 0.0
          %1113 = vmatpush1.msra.mxu0 0.0
          %1114 = vmatprep.subr.mxu0 0.0
          %1115 = vmatpush1.msra.mxu0 0.0
          %1116 = vmatprep.subr.mxu0 0.0
          %1117 = vmatpush1.msra.mxu0 0.0
          %1118 = vmatprep.subr.mxu0 0.0
          %1119 = vmatpush1.msra.mxu0 0.0
          %1120 = vmatprep.subr.mxu0 0.0
          %1121 = vmatpush1.msra.mxu0 0.0
          %1122 = vmatprep.subr.mxu0 0.0
          %1123 = vmatpush1.msra.mxu0 0.0
          %1124 = vmatprep.mubr.f32.mxu0 0.0
          %1125 = vmatmul.mubr.f32.gmra.mrb[0].mxu0 %v1052
          %v1126 = vpop.f32.mrb[0].mxu0
          %v1127 = vadd.f32 0.0, %v1126
          %v1128 = vpop.f32.mrb[0].mxu0
          %v1129 = vadd.f32 0.0, %v1128
          %1130 = vdwg.mxu0
          %1131 = vmatprep.subr.mxu0 0.0
          %1132 = vmatpush1.msra.mxu0 %v1058
          %1133 = vmatprep.subr.mxu0 0.0
          %1134 = vmatpush1.msra.mxu0 0.0
          %1135 = vmatprep.subr.mxu0 0.0
          %1136 = vmatpush1.msra.mxu0 0.0
          %1137 = vmatprep.subr.mxu0 0.0
          %1138 = vmatpush1.msra.mxu0 0.0
          %1139 = vmatprep.subr.mxu0 0.0
          %1140 = vmatpush1.msra.mxu0 0.0
          %1141 = vmatprep.subr.mxu0 0.0
          %1142 = vmatpush1.msra.mxu0 0.0
          %1143 = vmatprep.subr.mxu0 0.0
          %1144 = vmatpush1.msra.mxu0 0.0
          %1145 = vmatprep.subr.mxu0 0.0
          %1146 = vmatpush1.msra.mxu0 0.0
          %1147 = vmatprep.subr.mxu0 0.0
          %1148 = vmatpush1.msra.mxu0 0.0
          %1149 = vmatprep.subr.mxu0 0.0
          %1150 = vmatpush1.msra.mxu0 0.0
          %1151 = vmatprep.subr.mxu0 0.0
          %1152 = vmatpush1.msra.mxu0 0.0
          %1153 = vmatprep.subr.mxu0 0.0
          %1154 = vmatpush1.msra.mxu0 0.0
          %1155 = vmatprep.subr.mxu0 0.0
          %1156 = vmatpush1.msra.mxu0 0.0
          %1157 = vmatprep.subr.mxu0 0.0
          %1158 = vmatpush1.msra.mxu0 0.0
          %1159 = vmatprep.subr.mxu0 0.0
          %1160 = vmatpush1.msra.mxu0 0.0
          %1161 = vmatprep.subr.mxu0 0.0
          %1162 = vmatpush1.msra.mxu0 0.0
          %1163 = vmatprep.subr.mxu0 0.0
          %1164 = vmatpush1.msra.mxu0 0.0
          %1165 = vmatprep.subr.mxu0 0.0
          %1166 = vmatpush1.msra.mxu0 0.0
          %1167 = vmatprep.subr.mxu0 0.0
          %1168 = vmatpush1.msra.mxu0 0.0
          %1169 = vmatprep.subr.mxu0 0.0
          %1170 = vmatpush1.msra.mxu0 0.0
          %1171 = vmatprep.subr.mxu0 0.0
          %1172 = vmatpush1.msra.mxu0 0.0
          %1173 = vmatprep.subr.mxu0 0.0
          %1174 = vmatpush1.msra.mxu0 0.0
          %1175 = vmatprep.subr.mxu0 0.0
          %1176 = vmatpush1.msra.mxu0 0.0
          %1177 = vmatprep.subr.mxu0 0.0
          %1178 = vmatpush1.msra.mxu0 0.0
          %1179 = vmatprep.subr.mxu0 0.0
          %1180 = vmatpush1.msra.mxu0 0.0
          %1181 = vmatprep.subr.mxu0 0.0
          %1182 = vmatpush1.msra.mxu0 0.0
          %1183 = vmatprep.subr.mxu0 0.0
          %1184 = vmatpush1.msra.mxu0 0.0
          %1185 = vmatprep.subr.mxu0 0.0
          %1186 = vmatpush1.msra.mxu0 0.0
          %1187 = vmatprep.subr.mxu0 0.0
          %1188 = vmatpush1.msra.mxu0 0.0
          %1189 = vmatprep.subr.mxu0 0.0
          %1190 = vmatpush1.msra.mxu0 0.0
          %1191 = vmatprep.subr.mxu0 0.0
          %1192 = vmatpush1.msra.mxu0 0.0
          %1193 = vmatprep.subr.mxu0 0.0
          %1194 = vmatpush1.msra.mxu0 0.0
          %1195 = vmatprep.mubr.f32.mxu0 0.0
          %1196 = vmatmul.mubr.f32.gmra.mrb[0].mxu0 %v1052
          %v1197 = vpop.f32.mrb[0].mxu0
          %v1198 = vadd.f32 0.0, %v1197
          %v1199 = vpop.f32.mrb[0].mxu0
          %1200 = vdwg.mxu0
          %v1201 = vadd.f32 %v1040, %v1127
          %v1202 = vadd.f32 %v1041, %v1129
          %v1203 = vadd.f32 %v1042, %v1198
          %v1204 = vld [vmem:[#allocation10] sm:$0xf]
          %v1205 = vld [vmem:[%s296 + $0x4] sm:$0xff]
          %v1206 = vld [vmem:[%s296 + $0xc] sm:$0xff]
          %1208 = vrot.lane.b32.xlu0 %v1204, 108
          %v1209 = vpop.permute.xlu0 %1208
          %v1212 = vcombine.high %v1205, %v1205
          %v1213 = vcombine.high %v1206, %v1206
          %1214 = vrot.lane.b32.xlu0 %v1205, 127
          %v1215 = vpop.permute.xlu0 %1214
          %1216 = vrot.lane.b32.xlu0 %v1212, 127
          %v1217 = vpop.permute.xlu0 %1216
          %1218 = vrot.lane.b32.xlu0 %v1206, 127
          %v1219 = vpop.permute.xlu0 %1218
          %1220 = vrot.lane.b32.xlu0 %v1213, 127
          %v1221 = vpop.permute.xlu0 %1220
          %vm1222 = vcmask 1039360
          %v1223 = vsel %vm1222, %v1215, %v1217
          %v1224 = vsel %vm1222, %v1217, %v1219
          %v1225 = vsel %vm1222, %v1219, %v1221
          %v1226 = vsel %vm383, %v1209, 0
          %v1228 = vsel %vm386, %v1223, 0
          %v1230 = vsel %vm386, %v1224, 0
          %v1232 = vsel %vm386, %v1225, 0
          %1234 = vmatprep.subr.mxu0 %v1230
          %1235 = vmatpush1.msra.mxu0 %v1228
          %1236 = vmatprep.subr.mxu0 0.0
          %1237 = vmatpush1.msra.mxu0 0.0
          %1238 = vmatprep.subr.mxu0 0.0
          %1239 = vmatpush1.msra.mxu0 0.0
          %1240 = vmatprep.subr.mxu0 0.0
          %1241 = vmatpush1.msra.mxu0 0.0
          %1242 = vmatprep.subr.mxu0 0.0
          %1243 = vmatpush1.msra.mxu0 0.0
          %1244 = vmatprep.subr.mxu0 0.0
          %1245 = vmatpush1.msra.mxu0 0.0
          %1246 = vmatprep.subr.mxu0 0.0
          %1247 = vmatpush1.msra.mxu0 0.0
          %1248 = vmatprep.subr.mxu0 0.0
          %1249 = vmatpush1.msra.mxu0 0.0
          %1250 = vmatprep.subr.mxu0 0.0
          %1251 = vmatpush1.msra.mxu0 0.0
          %1252 = vmatprep.subr.mxu0 0.0
          %1253 = vmatpush1.msra.mxu0 0.0
          %1254 = vmatprep.subr.mxu0 0.0
          %1255 = vmatpush1.msra.mxu0 0.0
          %1256 = vmatprep.subr.mxu0 0.0
          %1257 = vmatpush1.msra.mxu0 0.0
          %1258 = vmatprep.subr.mxu0 0.0
          %1259 = vmatpush1.msra.mxu0 0.0
          %1260 = vmatprep.subr.mxu0 0.0
          %1261 = vmatpush1.msra.mxu0 0.0
          %1262 = vmatprep.subr.mxu0 0.0
          %1263 = vmatpush1.msra.mxu0 0.0
          %1264 = vmatprep.subr.mxu0 0.0
          %1265 = vmatpush1.msra.mxu0 0.0
          %1266 = vmatprep.subr.mxu0 0.0
          %1267 = vmatpush1.msra.mxu0 0.0
          %1268 = vmatprep.subr.mxu0 0.0
          %1269 = vmatpush1.msra.mxu0 0.0
          %1270 = vmatprep.subr.mxu0 0.0
          %1271 = vmatpush1.msra.mxu0 0.0
          %1272 = vmatprep.subr.mxu0 0.0
          %1273 = vmatpush1.msra.mxu0 0.0
          %1274 = vmatprep.subr.mxu0 0.0
          %1275 = vmatpush1.msra.mxu0 0.0
          %1276 = vmatprep.subr.mxu0 0.0
          %1277 = vmatpush1.msra.mxu0 0.0
          %1278 = vmatprep.subr.mxu0 0.0
          %1279 = vmatpush1.msra.mxu0 0.0
          %1280 = vmatprep.subr.mxu0 0.0
          %1281 = vmatpush1.msra.mxu0 0.0
          %1282 = vmatprep.subr.mxu0 0.0
          %1283 = vmatpush1.msra.mxu0 0.0
          %1284 = vmatprep.subr.mxu0 0.0
          %1285 = vmatpush1.msra.mxu0 0.0
          %1286 = vmatprep.subr.mxu0 0.0
          %1287 = vmatpush1.msra.mxu0 0.0
          %1288 = vmatprep.subr.mxu0 0.0
          %1289 = vmatpush1.msra.mxu0 0.0
          %1290 = vmatprep.subr.mxu0 0.0
          %1291 = vmatpush1.msra.mxu0 0.0
          %1292 = vmatprep.subr.mxu0 0.0
          %1293 = vmatpush1.msra.mxu0 0.0
          %1294 = vmatprep.subr.mxu0 0.0
          %1295 = vmatpush1.msra.mxu0 0.0
          %1296 = vmatprep.subr.mxu0 0.0
          %1297 = vmatpush1.msra.mxu0 0.0
          %1298 = vmatprep.mubr.f32.mxu0 0.0
          %1299 = vmatmul.mubr.f32.gmra.mrb[0].mxu0 %v1226
          %v1300 = vpop.f32.mrb[0].mxu0
          %v1301 = vadd.f32 0.0, %v1300
          %v1302 = vpop.f32.mrb[0].mxu0
          %v1303 = vadd.f32 0.0, %v1302
          %1304 = vdwg.mxu0
          %1305 = vmatprep.subr.mxu0 0.0
          %1306 = vmatpush1.msra.mxu0 %v1232
          %1307 = vmatprep.subr.mxu0 0.0
          %1308 = vmatpush1.msra.mxu0 0.0
          %1309 = vmatprep.subr.mxu0 0.0
          %1310 = vmatpush1.msra.mxu0 0.0
          %1311 = vmatprep.subr.mxu0 0.0
          %1312 = vmatpush1.msra.mxu0 0.0
          %1313 = vmatprep.subr.mxu0 0.0
          %1314 = vmatpush1.msra.mxu0 0.0
          %1315 = vmatprep.subr.mxu0 0.0
          %1316 = vmatpush1.msra.mxu0 0.0
          %1317 = vmatprep.subr.mxu0 0.0
          %1318 = vmatpush1.msra.mxu0 0.0
          %1319 = vmatprep.subr.mxu0 0.0
          %1320 = vmatpush1.msra.mxu0 0.0
          %1321 = vmatprep.subr.mxu0 0.0
          %1322 = vmatpush1.msra.mxu0 0.0
          %1323 = vmatprep.subr.mxu0 0.0
          %1324 = vmatpush1.msra.mxu0 0.0
          %1325 = vmatprep.subr.mxu0 0.0
          %1326 = vmatpush1.msra.mxu0 0.0
          %1327 = vmatprep.subr.mxu0 0.0
          %1328 = vmatpush1.msra.mxu0 0.0
          %1329 = vmatprep.subr.mxu0 0.0
          %1330 = vmatpush1.msra.mxu0 0.0
          %1331 = vmatprep.subr.mxu0 0.0
          %1332 = vmatpush1.msra.mxu0 0.0
          %1333 = vmatprep.subr.mxu0 0.0
          %1334 = vmatpush1.msra.mxu0 0.0
          %1335 = vmatprep.subr.mxu0 0.0
          %1336 = vmatpush1.msra.mxu0 0.0
          %1337 = vmatprep.subr.mxu0 0.0
          %1338 = vmatpush1.msra.mxu0 0.0
          %1339 = vmatprep.subr.mxu0 0.0
          %1340 = vmatpush1.msra.mxu0 0.0
          %1341 = vmatprep.subr.mxu0 0.0
          %1342 = vmatpush1.msra.mxu0 0.0
          %1343 = vmatprep.subr.mxu0 0.0
          %1344 = vmatpush1.msra.mxu0 0.0
          %1345 = vmatprep.subr.mxu0 0.0
          %1346 = vmatpush1.msra.mxu0 0.0
          %1347 = vmatprep.subr.mxu0 0.0
          %1348 = vmatpush1.msra.mxu0 0.0
          %1349 = vmatprep.subr.mxu0 0.0
          %1350 = vmatpush1.msra.mxu0 0.0
          %1351 = vmatprep.subr.mxu0 0.0
          %1352 = vmatpush1.msra.mxu0 0.0
          %1353 = vmatprep.subr.mxu0 0.0
          %1354 = vmatpush1.msra.mxu0 0.0
          %1355 = vmatprep.subr.mxu0 0.0
          %1356 = vmatpush1.msra.mxu0 0.0
          %1357 = vmatprep.subr.mxu0 0.0
          %1358 = vmatpush1.msra.mxu0 0.0
          %1359 = vmatprep.subr.mxu0 0.0
          %1360 = vmatpush1.msra.mxu0 0.0
          %1361 = vmatprep.subr.mxu0 0.0
          %1362 = vmatpush1.msra.mxu0 0.0
          %1363 = vmatprep.subr.mxu0 0.0
          %1364 = vmatpush1.msra.mxu0 0.0
          %1365 = vmatprep.subr.mxu0 0.0
          %1366 = vmatpush1.msra.mxu0 0.0
          %1367 = vmatprep.subr.mxu0 0.0
          %1368 = vmatpush1.msra.mxu0 0.0
          %1369 = vmatprep.mubr.f32.mxu0 0.0
          %1370 = vmatmul.mubr.f32.gmra.mrb[0].mxu0 %v1226
          %v1371 = vpop.f32.mrb[0].mxu0
          %v1372 = vadd.f32 0.0, %v1371
          %v1373 = vpop.f32.mrb[0].mxu0
          %1374 = vdwg.mxu0
          %v1375 = vadd.f32 %v1201, %v1301
          %v1376 = vadd.f32 %v1202, %v1303
          %v1377 = vadd.f32 %v1203, %v1372
          %v1378 = vld [vmem:[#allocation10] sm:$0xf]
          %v1379 = vld [vmem:[%s296 + $0x4] sm:$0xff]
          %v1380 = vld [vmem:[%s296 + $0xc] sm:$0xff]
          %1382 = vrot.lane.b32.xlu0 %v1378, 104
          %v1383 = vpop.permute.xlu0 %1382
          %v1386 = vcombine.high %v1379, %v1379
          %v1387 = vcombine.high %v1380, %v1380
          %1388 = vrot.lane.b32.xlu0 %v1379, 111
          %v1389 = vpop.permute.xlu0 %1388
          %1390 = vrot.lane.b32.xlu0 %v1386, 111
          %v1391 = vpop.permute.xlu0 %1390
          %1392 = vrot.lane.b32.xlu0 %v1380, 111
          %v1393 = vpop.permute.xlu0 %1392
          %1394 = vrot.lane.b32.xlu0 %v1387, 111
          %v1395 = vpop.permute.xlu0 %1394
          %vm1396 = vcmask 908288
          %v1397 = vsel %vm1396, %v1389, %v1391
          %v1398 = vsel %vm1396, %v1391, %v1393
          %v1399 = vsel %vm1396, %v1393, %v1395
          %v1400 = vsel %vm383, %v1383, 0
          %v1402 = vsel %vm386, %v1397, 0
          %v1404 = vsel %vm386, %v1398, 0
          %v1406 = vsel %vm386, %v1399, 0
          %1408 = vmatprep.subr.mxu0 %v1404
          %1409 = vmatpush1.msra.mxu0 %v1402
          %1410 = vmatprep.subr.mxu0 0.0
          %1411 = vmatpush1.msra.mxu0 0.0
          %1412 = vmatprep.subr.mxu0 0.0
          %1413 = vmatpush1.msra.mxu0 0.0
          %1414 = vmatprep.subr.mxu0 0.0
          %1415 = vmatpush1.msra.mxu0 0.0
          %1416 = vmatprep.subr.mxu0 0.0
          %1417 = vmatpush1.msra.mxu0 0.0
          %1418 = vmatprep.subr.mxu0 0.0
          %1419 = vmatpush1.msra.mxu0 0.0
          %1420 = vmatprep.subr.mxu0 0.0
          %1421 = vmatpush1.msra.mxu0 0.0
          %1422 = vmatprep.subr.mxu0 0.0
          %1423 = vmatpush1.msra.mxu0 0.0
          %1424 = vmatprep.subr.mxu0 0.0
          %1425 = vmatpush1.msra.mxu0 0.0
          %1426 = vmatprep.subr.mxu0 0.0
          %1427 = vmatpush1.msra.mxu0 0.0
          %1428 = vmatprep.subr.mxu0 0.0
          %1429 = vmatpush1.msra.mxu0 0.0
          %1430 = vmatprep.subr.mxu0 0.0
          %1431 = vmatpush1.msra.mxu0 0.0
          %1432 = vmatprep.subr.mxu0 0.0
          %1433 = vmatpush1.msra.mxu0 0.0
          %1434 = vmatprep.subr.mxu0 0.0
          %1435 = vmatpush1.msra.mxu0 0.0
          %1436 = vmatprep.subr.mxu0 0.0
          %1437 = vmatpush1.msra.mxu0 0.0
          %1438 = vmatprep.subr.mxu0 0.0
          %1439 = vmatpush1.msra.mxu0 0.0
          %1440 = vmatprep.subr.mxu0 0.0
          %1441 = vmatpush1.msra.mxu0 0.0
          %1442 = vmatprep.subr.mxu0 0.0
          %1443 = vmatpush1.msra.mxu0 0.0
          %1444 = vmatprep.subr.mxu0 0.0
          %1445 = vmatpush1.msra.mxu0 0.0
          %1446 = vmatprep.subr.mxu0 0.0
          %1447 = vmatpush1.msra.mxu0 0.0
          %1448 = vmatprep.subr.mxu0 0.0
          %1449 = vmatpush1.msra.mxu0 0.0
          %1450 = vmatprep.subr.mxu0 0.0
          %1451 = vmatpush1.msra.mxu0 0.0
          %1452 = vmatprep.subr.mxu0 0.0
          %1453 = vmatpush1.msra.mxu0 0.0
          %1454 = vmatprep.subr.mxu0 0.0
          %1455 = vmatpush1.msra.mxu0 0.0
          %1456 = vmatprep.subr.mxu0 0.0
          %1457 = vmatpush1.msra.mxu0 0.0
          %1458 = vmatprep.subr.mxu0 0.0
          %1459 = vmatpush1.msra.mxu0 0.0
          %1460 = vmatprep.subr.mxu0 0.0
          %1461 = vmatpush1.msra.mxu0 0.0
          %1462 = vmatprep.subr.mxu0 0.0
          %1463 = vmatpush1.msra.mxu0 0.0
          %1464 = vmatprep.subr.mxu0 0.0
          %1465 = vmatpush1.msra.mxu0 0.0
          %1466 = vmatprep.subr.mxu0 0.0
          %1467 = vmatpush1.msra.mxu0 0.0
          %1468 = vmatprep.subr.mxu0 0.0
          %1469 = vmatpush1.msra.mxu0 0.0
          %1470 = vmatprep.subr.mxu0 0.0
          %1471 = vmatpush1.msra.mxu0 0.0
          %1472 = vmatprep.mubr.f32.mxu0 0.0
          %1473 = vmatmul.mubr.f32.gmra.mrb[0].mxu0 %v1400
          %v1474 = vpop.f32.mrb[0].mxu0
          %v1475 = vadd.f32 0.0, %v1474
          %v1476 = vpop.f32.mrb[0].mxu0
          %v1477 = vadd.f32 0.0, %v1476
          %1478 = vdwg.mxu0
          %1479 = vmatprep.subr.mxu0 0.0
          %1480 = vmatpush1.msra.mxu0 %v1406
          %1481 = vmatprep.subr.mxu0 0.0
          %1482 = vmatpush1.msra.mxu0 0.0
          %1483 = vmatprep.subr.mxu0 0.0
          %1484 = vmatpush1.msra.mxu0 0.0
          %1485 = vmatprep.subr.mxu0 0.0
          %1486 = vmatpush1.msra.mxu0 0.0
          %1487 = vmatprep.subr.mxu0 0.0
          %1488 = vmatpush1.msra.mxu0 0.0
          %1489 = vmatprep.subr.mxu0 0.0
          %1490 = vmatpush1.msra.mxu0 0.0
          %1491 = vmatprep.subr.mxu0 0.0
          %1492 = vmatpush1.msra.mxu0 0.0
          %1493 = vmatprep.subr.mxu0 0.0
          %1494 = vmatpush1.msra.mxu0 0.0
          %1495 = vmatprep.subr.mxu0 0.0
          %1496 = vmatpush1.msra.mxu0 0.0
          %1497 = vmatprep.subr.mxu0 0.0
          %1498 = vmatpush1.msra.mxu0 0.0
          %1499 = vmatprep.subr.mxu0 0.0
          %1500 = vmatpush1.msra.mxu0 0.0
          %1501 = vmatprep.subr.mxu0 0.0
          %1502 = vmatpush1.msra.mxu0 0.0
          %1503 = vmatprep.subr.mxu0 0.0
          %1504 = vmatpush1.msra.mxu0 0.0
          %1505 = vmatprep.subr.mxu0 0.0
          %1506 = vmatpush1.msra.mxu0 0.0
          %1507 = vmatprep.subr.mxu0 0.0
          %1508 = vmatpush1.msra.mxu0 0.0
          %1509 = vmatprep.subr.mxu0 0.0
          %1510 = vmatpush1.msra.mxu0 0.0
          %1511 = vmatprep.subr.mxu0 0.0
          %1512 = vmatpush1.msra.mxu0 0.0
          %1513 = vmatprep.subr.mxu0 0.0
          %1514 = vmatpush1.msra.mxu0 0.0
          %1515 = vmatprep.subr.mxu0 0.0
          %1516 = vmatpush1.msra.mxu0 0.0
          %1517 = vmatprep.subr.mxu0 0.0
          %1518 = vmatpush1.msra.mxu0 0.0
          %1519 = vmatprep.subr.mxu0 0.0
          %1520 = vmatpush1.msra.mxu0 0.0
          %1521 = vmatprep.subr.mxu0 0.0
          %1522 = vmatpush1.msra.mxu0 0.0
          %1523 = vmatprep.subr.mxu0 0.0
          %1524 = vmatpush1.msra.mxu0 0.0
          %1525 = vmatprep.subr.mxu0 0.0
          %1526 = vmatpush1.msra.mxu0 0.0
          %1527 = vmatprep.subr.mxu0 0.0
          %1528 = vmatpush1.msra.mxu0 0.0
          %1529 = vmatprep.subr.mxu0 0.0
          %1530 = vmatpush1.msra.mxu0 0.0
          %1531 = vmatprep.subr.mxu0 0.0
          %1532 = vmatpush1.msra.mxu0 0.0
          %1533 = vmatprep.subr.mxu0 0.0
          %1534 = vmatpush1.msra.mxu0 0.0
          %1535 = vmatprep.subr.mxu0 0.0
          %1536 = vmatpush1.msra.mxu0 0.0
          %1537 = vmatprep.subr.mxu0 0.0
          %1538 = vmatpush1.msra.mxu0 0.0
          %1539 = vmatprep.subr.mxu0 0.0
          %1540 = vmatpush1.msra.mxu0 0.0
          %1541 = vmatprep.subr.mxu0 0.0
          %1542 = vmatpush1.msra.mxu0 0.0
          %1543 = vmatprep.mubr.f32.mxu0 0.0
          %1544 = vmatmul.mubr.f32.gmra.mrb[0].mxu0 %v1400
          %v1545 = vpop.f32.mrb[0].mxu0
          %v1546 = vadd.f32 0.0, %v1545
          %v1547 = vpop.f32.mrb[0].mxu0
          %1548 = vdwg.mxu0
          %v1549 = vadd.f32 %v1375, %v1475
          %v1550 = vadd.f32 %v1376, %v1477
          %v1551 = vadd.f32 %v1377, %v1546
          %v1552 = vld [vmem:[#allocation10] sm:$0xf]
          %v1553 = vld [vmem:[%s296 + $0x4] sm:$0xff]
          %v1554 = vld [vmem:[%s296 + $0xc] sm:$0xff]
          %1556 = vrot.lane.b32.xlu0 %v1552, 100
          %v1557 = vpop.permute.xlu0 %1556
          %v1560 = vcombine.high %v1553, %v1553
          %v1561 = vcombine.high %v1554, %v1554
          %1562 = vrot.lane.b32.xlu0 %v1553, 110
          %v1563 = vpop.permute.xlu0 %1562
          %1564 = vrot.lane.b32.xlu0 %v1560, 110
          %v1565 = vpop.permute.xlu0 %1564
          %1566 = vrot.lane.b32.xlu0 %v1554, 110
          %v1567 = vpop.permute.xlu0 %1566
          %1568 = vrot.lane.b32.xlu0 %v1561, 110
          %v1569 = vpop.permute.xlu0 %1568
          %vm1570 = vcmask 900096
          %v1571 = vsel %vm1570, %v1563, %v1565
          %v1572 = vsel %vm1570, %v1565, %v1567
          %v1573 = vsel %vm1570, %v1567, %v1569
          %v1574 = vsel %vm383, %v1557, 0
          %v1576 = vsel %vm386, %v1571, 0
          %v1578 = vsel %vm386, %v1572, 0
          %v1580 = vsel %vm386, %v1573, 0
          %1582 = vmatprep.subr.mxu0 %v1578
          %1583 = vmatpush1.msra.mxu0 %v1576
          %1584 = vmatprep.subr.mxu0 0.0
          %1585 = vmatpush1.msra.mxu0 0.0
          %1586 = vmatprep.subr.mxu0 0.0
          %1587 = vmatpush1.msra.mxu0 0.0
          %1588 = vmatprep.subr.mxu0 0.0
          %1589 = vmatpush1.msra.mxu0 0.0
          %1590 = vmatprep.subr.mxu0 0.0
          %1591 = vmatpush1.msra.mxu0 0.0
          %1592 = vmatprep.subr.mxu0 0.0
          %1593 = vmatpush1.msra.mxu0 0.0
          %1594 = vmatprep.subr.mxu0 0.0
          %1595 = vmatpush1.msra.mxu0 0.0
          %1596 = vmatprep.subr.mxu0 0.0
          %1597 = vmatpush1.msra.mxu0 0.0
          %1598 = vmatprep.subr.mxu0 0.0
          %1599 = vmatpush1.msra.mxu0 0.0
          %1600 = vmatprep.subr.mxu0 0.0
          %1601 = vmatpush1.msra.mxu0 0.0
          %1602 = vmatprep.subr.mxu0 0.0
          %1603 = vmatpush1.msra.mxu0 0.0
          %1604 = vmatprep.subr.mxu0 0.0
          %1605 = vmatpush1.msra.mxu0 0.0
          %1606 = vmatprep.subr.mxu0 0.0
          %1607 = vmatpush1.msra.mxu0 0.0
          %1608 = vmatprep.subr.mxu0 0.0
          %1609 = vmatpush1.msra.mxu0 0.0
          %1610 = vmatprep.subr.mxu0 0.0
          %1611 = vmatpush1.msra.mxu0 0.0
          %1612 = vmatprep.subr.mxu0 0.0
          %1613 = vmatpush1.msra.mxu0 0.0
          %1614 = vmatprep.subr.mxu0 0.0
          %1615 = vmatpush1.msra.mxu0 0.0
          %1616 = vmatprep.subr.mxu0 0.0
          %1617 = vmatpush1.msra.mxu0 0.0
          %1618 = vmatprep.subr.mxu0 0.0
          %1619 = vmatpush1.msra.mxu0 0.0
          %1620 = vmatprep.subr.mxu0 0.0
          %1621 = vmatpush1.msra.mxu0 0.0
          %1622 = vmatprep.subr.mxu0 0.0
          %1623 = vmatpush1.msra.mxu0 0.0
          %1624 = vmatprep.subr.mxu0 0.0
          %1625 = vmatpush1.msra.mxu0 0.0
          %1626 = vmatprep.subr.mxu0 0.0
          %1627 = vmatpush1.msra.mxu0 0.0
          %1628 = vmatprep.subr.mxu0 0.0
          %1629 = vmatpush1.msra.mxu0 0.0
          %1630 = vmatprep.subr.mxu0 0.0
          %1631 = vmatpush1.msra.mxu0 0.0
          %1632 = vmatprep.subr.mxu0 0.0
          %1633 = vmatpush1.msra.mxu0 0.0
          %1634 = vmatprep.subr.mxu0 0.0
          %1635 = vmatpush1.msra.mxu0 0.0
          %1636 = vmatprep.subr.mxu0 0.0
          %1637 = vmatpush1.msra.mxu0 0.0
          %1638 = vmatprep.subr.mxu0 0.0
          %1639 = vmatpush1.msra.mxu0 0.0
          %1640 = vmatprep.subr.mxu0 0.0
          %1641 = vmatpush1.msra.mxu0 0.0
          %1642 = vmatprep.subr.mxu0 0.0
          %1643 = vmatpush1.msra.mxu0 0.0
          %1644 = vmatprep.subr.mxu0 0.0
          %1645 = vmatpush1.msra.mxu0 0.0
          %1646 = vmatprep.mubr.f32.mxu0 0.0
          %1647 = vmatmul.mubr.f32.gmra.mrb[0].mxu0 %v1574
          %v1648 = vpop.f32.mrb[0].mxu0
          %v1649 = vadd.f32 0.0, %v1648
          %v1650 = vpop.f32.mrb[0].mxu0
          %v1651 = vadd.f32 0.0, %v1650
          %1652 = vdwg.mxu0
          %1653 = vmatprep.subr.mxu0 0.0
          %1654 = vmatpush1.msra.mxu0 %v1580
          %1655 = vmatprep.subr.mxu0 0.0
          %1656 = vmatpush1.msra.mxu0 0.0
          %1657 = vmatprep.subr.mxu0 0.0
          %1658 = vmatpush1.msra.mxu0 0.0
          %1659 = vmatprep.subr.mxu0 0.0
          %1660 = vmatpush1.msra.mxu0 0.0
          %1661 = vmatprep.subr.mxu0 0.0
          %1662 = vmatpush1.msra.mxu0 0.0
          %1663 = vmatprep.subr.mxu0 0.0
          %1664 = vmatpush1.msra.mxu0 0.0
          %1665 = vmatprep.subr.mxu0 0.0
          %1666 = vmatpush1.msra.mxu0 0.0
          %1667 = vmatprep.subr.mxu0 0.0
          %1668 = vmatpush1.msra.mxu0 0.0
          %1669 = vmatprep.subr.mxu0 0.0
          %1670 = vmatpush1.msra.mxu0 0.0
          %1671 = vmatprep.subr.mxu0 0.0
          %1672 = vmatpush1.msra.mxu0 0.0
          %1673 = vmatprep.subr.mxu0 0.0
          %1674 = vmatpush1.msra.mxu0 0.0
          %1675 = vmatprep.subr.mxu0 0.0
          %1676 = vmatpush1.msra.mxu0 0.0
          %1677 = vmatprep.subr.mxu0 0.0
          %1678 = vmatpush1.msra.mxu0 0.0
          %1679 = vmatprep.subr.mxu0 0.0
          %1680 = vmatpush1.msra.mxu0 0.0
          %1681 = vmatprep.subr.mxu0 0.0
          %1682 = vmatpush1.msra.mxu0 0.0
          %1683 = vmatprep.subr.mxu0 0.0
          %1684 = vmatpush1.msra.mxu0 0.0
          %1685 = vmatprep.subr.mxu0 0.0
          %1686 = vmatpush1.msra.mxu0 0.0
          %1687 = vmatprep.subr.mxu0 0.0
          %1688 = vmatpush1.msra.mxu0 0.0
          %1689 = vmatprep.subr.mxu0 0.0
          %1690 = vmatpush1.msra.mxu0 0.0
          %1691 = vmatprep.subr.mxu0 0.0
          %1692 = vmatpush1.msra.mxu0 0.0
          %1693 = vmatprep.subr.mxu0 0.0
          %1694 = vmatpush1.msra.mxu0 0.0
          %1695 = vmatprep.subr.mxu0 0.0
          %1696 = vmatpush1.msra.mxu0 0.0
          %1697 = vmatprep.subr.mxu0 0.0
          %1698 = vmatpush1.msra.mxu0 0.0
          %1699 = vmatprep.subr.mxu0 0.0
          %1700 = vmatpush1.msra.mxu0 0.0
          %1701 = vmatprep.subr.mxu0 0.0
          %1702 = vmatpush1.msra.mxu0 0.0
          %1703 = vmatprep.subr.mxu0 0.0
          %1704 = vmatpush1.msra.mxu0 0.0
          %1705 = vmatprep.subr.mxu0 0.0
          %1706 = vmatpush1.msra.mxu0 0.0
          %1707 = vmatprep.subr.mxu0 0.0
          %1708 = vmatpush1.msra.mxu0 0.0
          %1709 = vmatprep.subr.mxu0 0.0
          %1710 = vmatpush1.msra.mxu0 0.0
          %1711 = vmatprep.subr.mxu0 0.0
          %1712 = vmatpush1.msra.mxu0 0.0
          %1713 = vmatprep.subr.mxu0 0.0
          %1714 = vmatpush1.msra.mxu0 0.0
          %1715 = vmatprep.subr.mxu0 0.0
          %1716 = vmatpush1.msra.mxu0 0.0
          %1717 = vmatprep.mubr.f32.mxu0 0.0
          %1718 = vmatmul.mubr.f32.gmra.mrb[0].mxu0 %v1574
          %v1719 = vpop.f32.mrb[0].mxu0
          %v1720 = vadd.f32 0.0, %v1719
          %v1721 = vpop.f32.mrb[0].mxu0
          %1722 = vdwg.mxu0
          %v1723 = vadd.f32 %v1549, %v1649
          %v1724 = vadd.f32 %v1550, %v1651
          %v1725 = vadd.f32 %v1551, %v1720
          %v1726 = vld [vmem:[#allocation10] sm:$0xf]
          %v1727 = vld [vmem:[%s296 + $0x4] sm:$0xff]
          %v1728 = vld [vmem:[%s296 + $0xc] sm:$0xff]
          %1730 = vrot.lane.b32.xlu0 %v1726, 96
          %v1731 = vpop.permute.xlu0 %1730
          %v1734 = vcombine.high %v1727, %v1727
          %v1735 = vcombine.high %v1728, %v1728
          %1736 = vrot.lane.b32.xlu0 %v1727, 109
          %v1737 = vpop.permute.xlu0 %1736
          %1738 = vrot.lane.b32.xlu0 %v1734, 109
          %v1739 = vpop.permute.xlu0 %1738
          %1740 = vrot.lane.b32.xlu0 %v1728, 109
          %v1741 = vpop.permute.xlu0 %1740
          %1742 = vrot.lane.b32.xlu0 %v1735, 109
          %v1743 = vpop.permute.xlu0 %1742
          %vm1744 = vcmask 891904
          %v1745 = vsel %vm1744, %v1737, %v1739
          %v1746 = vsel %vm1744, %v1739, %v1741
          %v1747 = vsel %vm1744, %v1741, %v1743
          %v1748 = vsel %vm383, %v1731, 0
          %v1750 = vsel %vm386, %v1745, 0
          %v1752 = vsel %vm386, %v1746, 0
          %v1754 = vsel %vm386, %v1747, 0
          %1756 = vmatprep.subr.mxu0 %v1752
          %1757 = vmatpush1.msra.mxu0 %v1750
          %1758 = vmatprep.subr.mxu0 0.0
          %1759 = vmatpush1.msra.mxu0 0.0
          %1760 = vmatprep.subr.mxu0 0.0
          %1761 = vmatpush1.msra.mxu0 0.0
          %1762 = vmatprep.subr.mxu0 0.0
          %1763 = vmatpush1.msra.mxu0 0.0
          %1764 = vmatprep.subr.mxu0 0.0
          %1765 = vmatpush1.msra.mxu0 0.0
          %1766 = vmatprep.subr.mxu0 0.0
          %1767 = vmatpush1.msra.mxu0 0.0
          %1768 = vmatprep.subr.mxu0 0.0
          %1769 = vmatpush1.msra.mxu0 0.0
          %1770 = vmatprep.subr.mxu0 0.0
          %1771 = vmatpush1.msra.mxu0 0.0
          %1772 = vmatprep.subr.mxu0 0.0
          %1773 = vmatpush1.msra.mxu0 0.0
          %1774 = vmatprep.subr.mxu0 0.0
          %1775 = vmatpush1.msra.mxu0 0.0
          %1776 = vmatprep.subr.mxu0 0.0
          %1777 = vmatpush1.msra.mxu0 0.0
          %1778 = vmatprep.subr.mxu0 0.0
          %1779 = vmatpush1.msra.mxu0 0.0
          %1780 = vmatprep.subr.mxu0 0.0
          %1781 = vmatpush1.msra.mxu0 0.0
          %1782 = vmatprep.subr.mxu0 0.0
          %1783 = vmatpush1.msra.mxu0 0.0
          %1784 = vmatprep.subr.mxu0 0.0
          %1785 = vmatpush1.msra.mxu0 0.0
          %1786 = vmatprep.subr.mxu0 0.0
          %1787 = vmatpush1.msra.mxu0 0.0
          %1788 = vmatprep.subr.mxu0 0.0
          %1789 = vmatpush1.msra.mxu0 0.0
          %1790 = vmatprep.subr.mxu0 0.0
          %1791 = vmatpush1.msra.mxu0 0.0
          %1792 = vmatprep.subr.mxu0 0.0
          %1793 = vmatpush1.msra.mxu0 0.0
          %1794 = vmatprep.subr.mxu0 0.0
          %1795 = vmatpush1.msra.mxu0 0.0
          %1796 = vmatprep.subr.mxu0 0.0
          %1797 = vmatpush1.msra.mxu0 0.0
          %1798 = vmatprep.subr.mxu0 0.0
          %1799 = vmatpush1.msra.mxu0 0.0
          %1800 = vmatprep.subr.mxu0 0.0
          %1801 = vmatpush1.msra.mxu0 0.0
          %1802 = vmatprep.subr.mxu0 0.0
          %1803 = vmatpush1.msra.mxu0 0.0
          %1804 = vmatprep.subr.mxu0 0.0
          %1805 = vmatpush1.msra.mxu0 0.0
          %1806 = vmatprep.subr.mxu0 0.0
          %1807 = vmatpush1.msra.mxu0 0.0
          %1808 = vmatprep.subr.mxu0 0.0
          %1809 = vmatpush1.msra.mxu0 0.0
          %1810 = vmatprep.subr.mxu0 0.0
          %1811 = vmatpush1.msra.mxu0 0.0
          %1812 = vmatprep.subr.mxu0 0.0
          %1813 = vmatpush1.msra.mxu0 0.0
          %1814 = vmatprep.subr.mxu0 0.0
          %1815 = vmatpush1.msra.mxu0 0.0
          %1816 = vmatprep.subr.mxu0 0.0
          %1817 = vmatpush1.msra.mxu0 0.0
          %1818 = vmatprep.subr.mxu0 0.0
          %1819 = vmatpush1.msra.mxu0 0.0
          %1820 = vmatprep.mubr.f32.mxu0 0.0
          %1821 = vmatmul.mubr.f32.gmra.mrb[0].mxu0 %v1748
          %v1822 = vpop.f32.mrb[0].mxu0
          %v1823 = vadd.f32 0.0, %v1822
          %v1824 = vpop.f32.mrb[0].mxu0
          %v1825 = vadd.f32 0.0, %v1824
          %1826 = vdwg.mxu0
          %1827 = vmatprep.subr.mxu0 0.0
          %1828 = vmatpush1.msra.mxu0 %v1754
          %1829 = vmatprep.subr.mxu0 0.0
          %1830 = vmatpush1.msra.mxu0 0.0
          %1831 = vmatprep.subr.mxu0 0.0
          %1832 = vmatpush1.msra.mxu0 0.0
          %1833 = vmatprep.subr.mxu0 0.0
          %1834 = vmatpush1.msra.mxu0 0.0
          %1835 = vmatprep.subr.mxu0 0.0
          %1836 = vmatpush1.msra.mxu0 0.0
          %1837 = vmatprep.subr.mxu0 0.0
          %1838 = vmatpush1.msra.mxu0 0.0
          %1839 = vmatprep.subr.mxu0 0.0
          %1840 = vmatpush1.msra.mxu0 0.0
          %1841 = vmatprep.subr.mxu0 0.0
          %1842 = vmatpush1.msra.mxu0 0.0
          %1843 = vmatprep.subr.mxu0 0.0
          %1844 = vmatpush1.msra.mxu0 0.0
          %1845 = vmatprep.subr.mxu0 0.0
          %1846 = vmatpush1.msra.mxu0 0.0
          %1847 = vmatprep.subr.mxu0 0.0
          %1848 = vmatpush1.msra.mxu0 0.0
          %1849 = vmatprep.subr.mxu0 0.0
          %1850 = vmatpush1.msra.mxu0 0.0
          %1851 = vmatprep.subr.mxu0 0.0
          %1852 = vmatpush1.msra.mxu0 0.0
          %1853 = vmatprep.subr.mxu0 0.0
          %1854 = vmatpush1.msra.mxu0 0.0
          %1855 = vmatprep.subr.mxu0 0.0
          %1856 = vmatpush1.msra.mxu0 0.0
          %1857 = vmatprep.subr.mxu0 0.0
          %1858 = vmatpush1.msra.mxu0 0.0
          %1859 = vmatprep.subr.mxu0 0.0
          %1860 = vmatpush1.msra.mxu0 0.0
          %1861 = vmatprep.subr.mxu0 0.0
          %1862 = vmatpush1.msra.mxu0 0.0
          %1863 = vmatprep.subr.mxu0 0.0
          %1864 = vmatpush1.msra.mxu0 0.0
          %1865 = vmatprep.subr.mxu0 0.0
          %1866 = vmatpush1.msra.mxu0 0.0
          %1867 = vmatprep.subr.mxu0 0.0
          %1868 = vmatpush1.msra.mxu0 0.0
          %1869 = vmatprep.subr.mxu0 0.0
          %1870 = vmatpush1.msra.mxu0 0.0
          %1871 = vmatprep.subr.mxu0 0.0
          %1872 = vmatpush1.msra.mxu0 0.0
          %1873 = vmatprep.subr.mxu0 0.0
          %1874 = vmatpush1.msra.mxu0 0.0
          %1875 = vmatprep.subr.mxu0 0.0
          %1876 = vmatpush1.msra.mxu0 0.0
          %1877 = vmatprep.subr.mxu0 0.0
          %1878 = vmatpush1.msra.mxu0 0.0
          %1879 = vmatprep.subr.mxu0 0.0
          %1880 = vmatpush1.msra.mxu0 0.0
          %1881 = vmatprep.subr.mxu0 0.0
          %1882 = vmatpush1.msra.mxu0 0.0
          %1883 = vmatprep.subr.mxu0 0.0
          %1884 = vmatpush1.msra.mxu0 0.0
          %1885 = vmatprep.subr.mxu0 0.0
          %1886 = vmatpush1.msra.mxu0 0.0
          %1887 = vmatprep.subr.mxu0 0.0
          %1888 = vmatpush1.msra.mxu0 0.0
          %1889 = vmatprep.subr.mxu0 0.0
          %1890 = vmatpush1.msra.mxu0 0.0
          %1891 = vmatprep.mubr.f32.mxu0 0.0
          %1892 = vmatmul.mubr.f32.gmra.mrb[0].mxu0 %v1748
          %v1893 = vpop.f32.mrb[0].mxu0
          %v1894 = vadd.f32 0.0, %v1893
          %v1895 = vpop.f32.mrb[0].mxu0
          %1896 = vdwg.mxu0
          %v1897 = vadd.f32 %v1723, %v1823
          %v1898 = vadd.f32 %v1724, %v1825
          %v1899 = vadd.f32 %v1725, %v1894
          %v1902 = vcombine.low %v1897, %v1898
          %s1904 = smul.u32 %s31, 5
          %s1905 = smul.addr %s1904, 4
          %s1906 = scalar_lea.vmem [#allocation2], %s1905
          %1907 = vst [vmem:[%s1906 + $0x4] sm:$0xff] %v1902
          %1908 = vst [vmem:[%s1906 + $0xc] sm:$0xf] %v1899
          %v1909 = vld [vmem:[#allocation16] sm:$0x7]
          %v1911 = vlaneseq
          %v1912 = vshrl.u32 %v1911, 7
          %v1913 = vsub.s32 0, %v1912
          %v1914 = vrot.slane %v1909, %v1913
          %v1915 = vlaneseq
          %v1916 = vshrl.u32 %v1915, 7
          %v1917 = vsub.s32 1, %v1916
          %v1918 = vrot.slane %v1909, %v1917
          %v1919 = vlaneseq
          %v1920 = vshrl.u32 %v1919, 7
          %v1921 = vsub.s32 2, %v1920
          %v1922 = vrot.slane %v1909, %v1921
          %v1926 = vmul.f32 %v1897, %v1914
          %v1927 = vmul.f32 %v1898, %v1918
          %v1928 = vmul.f32 %v1899, %v1922
          %v1929 = vsel %vm386, %v1926, 0.0
          %v1930 = vsel %vm386, %v1927, 0.0
          %v1931 = vadd.f32 %v1929, %v1930
          %v1932 = vsel %vm386, %v1928, 0.0
          %v1933 = vadd.f32 %v1931, %v1932
          %1934 = vadd.xlane.f32.xlu0 %v1933
          %v1935 = vpop.xlane.xlu0 %1934
          %v1936 = vmul.f32 %v1935, 0.00390625
          %v1937 = vsub.f32 %v1897, %v1936
          %v1938 = vsub.f32 %v1898, %v1936
          %v1939 = vsub.f32 %v1899, %v1936
          %v1940 = vmul.f32 %v1937, %v1914
          %v1941 = vmul.f32 %v1938, %v1918
          %v1942 = vmul.f32 %v1939, %v1922
          %v1943 = vmul.f32 %v1940, %v1940
          %v1944 = vmul.f32 %v1941, %v1941
          %v1945 = vmul.f32 %v1942, %v1942
          %v1946 = vsel %vm386, %v1943, 0.0
          %v1947 = vsel %vm386, %v1944, 0.0
          %v1948 = vadd.f32 %v1946, %v1947
          %v1949 = vsel %vm386, %v1945, 0.0
          %v1950 = vadd.f32 %v1948, %v1949
          %1951 = vadd.xlane.f32.xlu0 %v1950
          %v1952 = vpop.xlane.xlu0 %1951
          %s1953 = scvt.s32.f32 %s31
          %v1954 = vld [vmem:[#allocation3] sm:$0xf]
          %v1955 = vsub.f32 %v1936, %v1954
          %s1956 = sadd.f32 %s1953, 1.0
          %v1957 = vstv %s1956
          %v1958 = vrcp.pop %v1957
          %s1959 = vtos %v1958
          %v1960 = vstv %s1959
          %v1961 = vmul.f32 %v1955, %v1960
          %v1962 = vadd.f32 %v1954, %v1961
          %vm1963 = vcmask 3072
          %1964 = vst.msk [vmem:[#allocation3] sm:$0xf] %vm1963, %v1962
          %v1965 = vld [vmem:[#allocation4] sm:$0xf]
          %v1966 = vadd.f32 %v1965, %v1952
          %v1967 = vmul.f32 %v1955, %v1955
          %s1968 = smul.f32 %s1953, 256.0
          %v1969 = vstv %s1956
          %v1970 = vrcp.pop %v1969
          %s1971 = vtos %v1970
          %s1972 = smul.f32 %s1968, %s1971
          %v1973 = vstv %s1972
          %v1974 = vmul.f32 %v1967, %v1973
          %v1975 = vadd.f32 %v1966, %v1974
          %1976 = vst.msk [vmem:[#allocation4] sm:$0xf] %vm1963, %v1975
        $region72: #{tpu_custom_call.1} parent=43 // pred_fallthru
          _
        %p1977 = scmp.eq.s32.totalorder %s30, 1
        // Predicated region
        $region77: #{tpu_custom_call.1} parent=43 // pred_check
          %p1978 = pneg %p1977
        $region78: #{tpu_custom_call.1} parent=43 // pred_check_branch
          %1980 = sbr.rel (%p1978) target = $region80
        $region79: #{tpu_custom_call.1} parent=43 // pred_region
          %p1981 = scmp.eq.s32.totalorder %s31, 0
          // Predicated region
          $region81: #{tpu_custom_call.1} parent=79 // pred_check
            %p1982 = pneg %p1981
          $region82: #{tpu_custom_call.1} parent=79 // pred_check_branch
            %1984 = sbr.rel (%p1982) target = $region84
          $region83: #{tpu_custom_call.1} parent=79 // pred_region
            %v1985 = vld [vmem:[#allocation4] sm:$0xf]
            %v1986 = vmul.f32 %v1985, 0.001953125
            %v1987 = vld [vmem:[#allocation13] sm:$0xf]
            %v1988 = vadd.f32 %v1986, 1e-05
            %v1989 = vrsqrt.pop %v1988
            %v1990 = vmul.f32 %v1987, %v1989
            %vm1991 = vcmask 3072
            %1992 = vst.msk [vmem:[#allocation5] sm:$0xf] %vm1991, %v1990
            %v1993 = vld [vmem:[#allocation15] sm:$0xf]
            %v1994 = vld [vmem:[#allocation3] sm:$0xf]
            %v1995 = vmul.f32 %v1994, %v1990
            %v1996 = vsub.f32 %v1993, %v1995
            %1997 = vst.msk [vmem:[#allocation6] sm:$0xf] %vm1991, %v1996
          $region84: #{tpu_custom_call.1} parent=79 // pred_fallthru
            _
          %s1998 = smul.u32 %s31, 5
          %s1999 = smul.addr %s1998, 4
          %s2000 = scalar_lea.vmem [#allocation2], %s1999
          %v2001 = vld [vmem:[%s2000 + $0x4] sm:$0xff]
          %v2002 = vld [vmem:[%s2000 + $0xc] sm:$0xf]
          %v2003 = vld [vmem:[#allocation5] sm:$0xf]
          %2005 = vset.pattern.permute.xlu0 0
          %2006 = vperm.xlu0 %2005, %v2003
          %v2007 = vpop.permute.xlu0 %2006
          %v2009 = vunpack.c.l.s4 839922192
          %v2010 = vunpack.c.0.s8 %v2009
          %v2011 = vlaneseq
          %v2012 = vshrl.u32 %v2011, 7
          %v2013 = vsub.s32 %v2010, %v2012
          %v2014 = vrot.slane %v2007, %v2013
          %v2016 = vmul.f32 %v2001, %v2014
          %v2017 = vmul.f32 %v2002, %v2014
          %v2018 = vld [vmem:[#allocation6] sm:$0xf]
          %2020 = vset.pattern.permute.xlu0 0
          %2021 = vperm.xlu0 %2020, %v2018
          %v2022 = vpop.permute.xlu0 %2021
          %v2024 = vunpack.c.l.s4 839922192
          %v2025 = vunpack.c.0.s8 %v2024
          %v2026 = vlaneseq
          %v2027 = vshrl.u32 %v2026, 7
          %v2028 = vsub.s32 %v2025, %v2027
          %v2029 = vrot.slane %v2022, %v2028
          %v2031 = vadd.f32 %v2016, %v2029
          %v2032 = vadd.f32 %v2017, %v2029
          %v2033 = vmax.f32 %v2031, 0.0
          %v2034 = vmax.f32 %v2032, 0.0
          %v2035 = vld [vmem:[#allocation16] sm:$0x7]
          %v2037 = vlaneseq
          %v2038 = vshrl.u32 %v2037, 7
          %v2039 = vsub.s32 0, %v2038
          %v2040 = vrot.slane %v2035, %v2039
          %v2041 = vlaneseq
          %v2042 = vshrl.u32 %v2041, 7
          %v2043 = vsub.s32 1, %v2042
          %v2044 = vrot.slane %v2035, %v2043
          %v2045 = vlaneseq
          %v2046 = vshrl.u32 %v2045, 7
          %v2047 = vsub.s32 2, %v2046
          %v2048 = vrot.slane %v2035, %v2047
          %v2050 = vcombine.low %v2040, %v2044
          %v2052 = vmul.f32 %v2033, %v2050
          %v2053 = vmul.f32 %v2034, %v2048
          %2054 = vst [vmem:[%s2000 + $0x4] sm:$0xff] %v2052
          %2055 = vst [vmem:[%s2000 + $0xc] sm:$0xf] %v2053
          %v2056 = vld [vmem:[#allocation12] sm:$0xf]
          %v2057 = vld [vmem:[%s2000] sm:$0xff]
          %v2058 = vld [vmem:[%s2000 + $0x8] sm:$0xff]
          %2060 = vrot.lane.b32.xlu0 %v2056, 124
          %v2061 = vpop.permute.xlu0 %2060
          %v2064 = vcombine.high %v2057, %v2057
          %v2065 = vcombine.high %v2058, %v2058
          %2066 = vrot.lane.b32.xlu0 %v2057, 18
          %v2067 = vpop.permute.xlu0 %2066
          %2068 = vrot.lane.b32.xlu0 %v2064, 18
          %v2069 = vpop.permute.xlu0 %2068
          %2070 = vrot.lane.b32.xlu0 %v2058, 18
          %v2071 = vpop.permute.xlu0 %2070
          %2072 = vrot.lane.b32.xlu0 %v2065, 18
          %v2073 = vpop.permute.xlu0 %2072
          %vm2074 = vcmask 146432
          %v2075 = vsel %vm2074, %v2067, %v2069
          %v2076 = vsel %vm2074, %v2069, %v2071
          %v2077 = vsel %vm2074, %v2071, %v2073
          %vm2078 = vcmask 31744
          %v2079 = vsel %vm2078, %v2061, 0
          %vm2081 = vcmask 1043456
          %v2082 = vsel %vm2081, %v2075, 0
          %v2084 = vsel %vm2081, %v2076, 0
          %v2086 = vsel %vm2081, %v2077, 0
          %2088 = vmatprep.subr.mxu0 %v2084
          %2089 = vmatpush1.msra.mxu0 %v2082
          %2090 = vmatprep.subr.mxu0 0.0
          %2091 = vmatpush1.msra.mxu0 0.0
          %2092 = vmatprep.subr.mxu0 0.0
          %2093 = vmatpush1.msra.mxu0 0.0
          %2094 = vmatprep.subr.mxu0 0.0
          %2095 = vmatpush1.msra.mxu0 0.0
          %2096 = vmatprep.subr.mxu0 0.0
          %2097 = vmatpush1.msra.mxu0 0.0
          %2098 = vmatprep.subr.mxu0 0.0
          %2099 = vmatpush1.msra.mxu0 0.0
          %2100 = vmatprep.subr.mxu0 0.0
          %2101 = vmatpush1.msra.mxu0 0.0
          %2102 = vmatprep.subr.mxu0 0.0
          %2103 = vmatpush1.msra.mxu0 0.0
          %2104 = vmatprep.subr.mxu0 0.0
          %2105 = vmatpush1.msra.mxu0 0.0
          %2106 = vmatprep.subr.mxu0 0.0
          %2107 = vmatpush1.msra.mxu0 0.0
          %2108 = vmatprep.subr.mxu0 0.0
          %2109 = vmatpush1.msra.mxu0 0.0
          %2110 = vmatprep.subr.mxu0 0.0
          %2111 = vmatpush1.msra.mxu0 0.0
          %2112 = vmatprep.subr.mxu0 0.0
          %2113 = vmatpush1.msra.mxu0 0.0
          %2114 = vmatprep.subr.mxu0 0.0
          %2115 = vmatpush1.msra.mxu0 0.0
          %2116 = vmatprep.subr.mxu0 0.0
          %2117 = vmatpush1.msra.mxu0 0.0
          %2118 = vmatprep.subr.mxu0 0.0
          %2119 = vmatpush1.msra.mxu0 0.0
          %2120 = vmatprep.subr.mxu0 0.0
          %2121 = vmatpush1.msra.mxu0 0.0
          %2122 = vmatprep.subr.mxu0 0.0
          %2123 = vmatpush1.msra.mxu0 0.0
          %2124 = vmatprep.subr.mxu0 0.0
          %2125 = vmatpush1.msra.mxu0 0.0
          %2126 = vmatprep.subr.mxu0 0.0
          %2127 = vmatpush1.msra.mxu0 0.0
          %2128 = vmatprep.subr.mxu0 0.0
          %2129 = vmatpush1.msra.mxu0 0.0
          %2130 = vmatprep.subr.mxu0 0.0
          %2131 = vmatpush1.msra.mxu0 0.0
          %2132 = vmatprep.subr.mxu0 0.0
          %2133 = vmatpush1.msra.mxu0 0.0
          %2134 = vmatprep.subr.mxu0 0.0
          %2135 = vmatpush1.msra.mxu0 0.0
          %2136 = vmatprep.subr.mxu0 0.0
          %2137 = vmatpush1.msra.mxu0 0.0
          %2138 = vmatprep.subr.mxu0 0.0
          %2139 = vmatpush1.msra.mxu0 0.0
          %2140 = vmatprep.subr.mxu0 0.0
          %2141 = vmatpush1.msra.mxu0 0.0
          %2142 = vmatprep.subr.mxu0 0.0
          %2143 = vmatpush1.msra.mxu0 0.0
          %2144 = vmatprep.subr.mxu0 0.0
          %2145 = vmatpush1.msra.mxu0 0.0
          %2146 = vmatprep.subr.mxu0 0.0
          %2147 = vmatpush1.msra.mxu0 0.0
          %2148 = vmatprep.subr.mxu0 0.0
          %2149 = vmatpush1.msra.mxu0 0.0
          %2150 = vmatprep.subr.mxu0 0.0
          %2151 = vmatpush1.msra.mxu0 0.0
          %2152 = vmatprep.mubr.f32.mxu0 0.0
          %2153 = vmatmul.mubr.f32.gmra.mrb[0].mxu0 %v2079
          %v2154 = vpop.f32.mrb[0].mxu0
          %v2155 = vadd.f32 0.0, %v2154
          %v2156 = vpop.f32.mrb[0].mxu0
          %v2157 = vadd.f32 0.0, %v2156
          %2158 = vdwg.mxu0
          %2159 = vmatprep.subr.mxu0 0.0
          %2160 = vmatpush1.msra.mxu0 %v2086
          %2161 = vmatprep.subr.mxu0 0.0
          %2162 = vmatpush1.msra.mxu0 0.0
          %2163 = vmatprep.subr.mxu0 0.0
          %2164 = vmatpush1.msra.mxu0 0.0
          %2165 = vmatprep.subr.mxu0 0.0
          %2166 = vmatpush1.msra.mxu0 0.0
          %2167 = vmatprep.subr.mxu0 0.0
          %2168 = vmatpush1.msra.mxu0 0.0
          %2169 = vmatprep.subr.mxu0 0.0
          %2170 = vmatpush1.msra.mxu0 0.0
          %2171 = vmatprep.subr.mxu0 0.0
          %2172 = vmatpush1.msra.mxu0 0.0
          %2173 = vmatprep.subr.mxu0 0.0
          %2174 = vmatpush1.msra.mxu0 0.0
          %2175 = vmatprep.subr.mxu0 0.0
          %2176 = vmatpush1.msra.mxu0 0.0
          %2177 = vmatprep.subr.mxu0 0.0
          %2178 = vmatpush1.msra.mxu0 0.0
          %2179 = vmatprep.subr.mxu0 0.0
          %2180 = vmatpush1.msra.mxu0 0.0
          %2181 = vmatprep.subr.mxu0 0.0
          %2182 = vmatpush1.msra.mxu0 0.0
          %2183 = vmatprep.subr.mxu0 0.0
          %2184 = vmatpush1.msra.mxu0 0.0
          %2185 = vmatprep.subr.mxu0 0.0
          %2186 = vmatpush1.msra.mxu0 0.0
          %2187 = vmatprep.subr.mxu0 0.0
          %2188 = vmatpush1.msra.mxu0 0.0
          %2189 = vmatprep.subr.mxu0 0.0
          %2190 = vmatpush1.msra.mxu0 0.0
          %2191 = vmatprep.subr.mxu0 0.0
          %2192 = vmatpush1.msra.mxu0 0.0
          %2193 = vmatprep.subr.mxu0 0.0
          %2194 = vmatpush1.msra.mxu0 0.0
          %2195 = vmatprep.subr.mxu0 0.0
          %2196 = vmatpush1.msra.mxu0 0.0
          %2197 = vmatprep.subr.mxu0 0.0
          %2198 = vmatpush1.msra.mxu0 0.0
          %2199 = vmatprep.subr.mxu0 0.0
          %2200 = vmatpush1.msra.mxu0 0.0
          %2201 = vmatprep.subr.mxu0 0.0
          %2202 = vmatpush1.msra.mxu0 0.0
          %2203 = vmatprep.subr.mxu0 0.0
          %2204 = vmatpush1.msra.mxu0 0.0
          %2205 = vmatprep.subr.mxu0 0.0
          %2206 = vmatpush1.msra.mxu0 0.0
          %2207 = vmatprep.subr.mxu0 0.0
          %2208 = vmatpush1.msra.mxu0 0.0
          %2209 = vmatprep.subr.mxu0 0.0
          %2210 = vmatpush1.msra.mxu0 0.0
          %2211 = vmatprep.subr.mxu0 0.0
          %2212 = vmatpush1.msra.mxu0 0.0
          %2213 = vmatprep.subr.mxu0 0.0
          %2214 = vmatpush1.msra.mxu0 0.0
          %2215 = vmatprep.subr.mxu0 0.0
          %2216 = vmatpush1.msra.mxu0 0.0
          %2217 = vmatprep.subr.mxu0 0.0
          %2218 = vmatpush1.msra.mxu0 0.0
          %2219 = vmatprep.subr.mxu0 0.0
          %2220 = vmatpush1.msra.mxu0 0.0
          %2221 = vmatprep.subr.mxu0 0.0
          %2222 = vmatpush1.msra.mxu0 0.0
          %2223 = vmatprep.mubr.f32.mxu0 0.0
          %2224 = vmatmul.mubr.f32.gmra.mrb[0].mxu0 %v2079
          %v2225 = vpop.f32.mrb[0].mxu0
          %v2226 = vadd.f32 0.0, %v2225
          %v2227 = vpop.f32.mrb[0].mxu0
          %2228 = vdwg.mxu0
          %2229 = vrot.lane.b32.xlu0 %v2057, 19
          %v2230 = vpop.permute.xlu0 %2229
          %2231 = vrot.lane.b32.xlu0 %v2064, 19
          %v2232 = vpop.permute.xlu0 %2231
          %2233 = vrot.lane.b32.xlu0 %v2058, 19
          %v2234 = vpop.permute.xlu0 %2233
          %2235 = vrot.lane.b32.xlu0 %v2065, 19
          %v2236 = vpop.permute.xlu0 %2235
          %vm2237 = vcmask 154624
          %v2238 = vsel %vm2237, %v2230, %v2232
          %v2239 = vsel %vm2237, %v2232, %v2234
          %v2240 = vsel %vm2237, %v2234, %v2236
          %v2241 = vsel %vm2078, %v2056, 0
          %v2243 = vsel %vm2081, %v2238, 0
          %v2245 = vsel %vm2081, %v2239, 0
          %v2247 = vsel %vm2081, %v2240, 0
          %2249 = vmatprep.subr.mxu0 %v2245
          %2250 = vmatpush1.msra.mxu0 %v2243
          %2251 = vmatprep.subr.mxu0 0.0
          %2252 = vmatpush1.msra.mxu0 0.0
          %2253 = vmatprep.subr.mxu0 0.0
          %2254 = vmatpush1.msra.mxu0 0.0
          %2255 = vmatprep.subr.mxu0 0.0
          %2256 = vmatpush1.msra.mxu0 0.0
          %2257 = vmatprep.subr.mxu0 0.0
          %2258 = vmatpush1.msra.mxu0 0.0
          %2259 = vmatprep.subr.mxu0 0.0
          %2260 = vmatpush1.msra.mxu0 0.0
          %2261 = vmatprep.subr.mxu0 0.0
          %2262 = vmatpush1.msra.mxu0 0.0
          %2263 = vmatprep.subr.mxu0 0.0
          %2264 = vmatpush1.msra.mxu0 0.0
          %2265 = vmatprep.subr.mxu0 0.0
          %2266 = vmatpush1.msra.mxu0 0.0
          %2267 = vmatprep.subr.mxu0 0.0
          %2268 = vmatpush1.msra.mxu0 0.0
          %2269 = vmatprep.subr.mxu0 0.0
          %2270 = vmatpush1.msra.mxu0 0.0
          %2271 = vmatprep.subr.mxu0 0.0
          %2272 = vmatpush1.msra.mxu0 0.0
          %2273 = vmatprep.subr.mxu0 0.0
          %2274 = vmatpush1.msra.mxu0 0.0
          %2275 = vmatprep.subr.mxu0 0.0
          %2276 = vmatpush1.msra.mxu0 0.0
          %2277 = vmatprep.subr.mxu0 0.0
          %2278 = vmatpush1.msra.mxu0 0.0
          %2279 = vmatprep.subr.mxu0 0.0
          %2280 = vmatpush1.msra.mxu0 0.0
          %2281 = vmatprep.subr.mxu0 0.0
          %2282 = vmatpush1.msra.mxu0 0.0
          %2283 = vmatprep.subr.mxu0 0.0
          %2284 = vmatpush1.msra.mxu0 0.0
          %2285 = vmatprep.subr.mxu0 0.0
          %2286 = vmatpush1.msra.mxu0 0.0
          %2287 = vmatprep.subr.mxu0 0.0
          %2288 = vmatpush1.msra.mxu0 0.0
          %2289 = vmatprep.subr.mxu0 0.0
          %2290 = vmatpush1.msra.mxu0 0.0
          %2291 = vmatprep.subr.mxu0 0.0
          %2292 = vmatpush1.msra.mxu0 0.0
          %2293 = vmatprep.subr.mxu0 0.0
          %2294 = vmatpush1.msra.mxu0 0.0
          %2295 = vmatprep.subr.mxu0 0.0
          %2296 = vmatpush1.msra.mxu0 0.0
          %2297 = vmatprep.subr.mxu0 0.0
          %2298 = vmatpush1.msra.mxu0 0.0
          %2299 = vmatprep.subr.mxu0 0.0
          %2300 = vmatpush1.msra.mxu0 0.0
          %2301 = vmatprep.subr.mxu0 0.0
          %2302 = vmatpush1.msra.mxu0 0.0
          %2303 = vmatprep.subr.mxu0 0.0
          %2304 = vmatpush1.msra.mxu0 0.0
          %2305 = vmatprep.subr.mxu0 0.0
          %2306 = vmatpush1.msra.mxu0 0.0
          %2307 = vmatprep.subr.mxu0 0.0
          %2308 = vmatpush1.msra.mxu0 0.0
          %2309 = vmatprep.subr.mxu0 0.0
          %2310 = vmatpush1.msra.mxu0 0.0
          %2311 = vmatprep.subr.mxu0 0.0
          %2312 = vmatpush1.msra.mxu0 0.0
          %2313 = vmatprep.mubr.f32.mxu0 0.0
          %2314 = vmatmul.mubr.f32.gmra.mrb[0].mxu0 %v2241
          %v2315 = vpop.f32.mrb[0].mxu0
          %v2316 = vadd.f32 %v2155, %v2315
          %v2317 = vpop.f32.mrb[0].mxu0
          %v2318 = vadd.f32 %v2157, %v2317
          %2319 = vdwg.mxu0
          %2320 = vmatprep.subr.mxu0 0.0
          %2321 = vmatpush1.msra.mxu0 %v2247
          %2322 = vmatprep.subr.mxu0 0.0
          %2323 = vmatpush1.msra.mxu0 0.0
          %2324 = vmatprep.subr.mxu0 0.0
          %2325 = vmatpush1.msra.mxu0 0.0
          %2326 = vmatprep.subr.mxu0 0.0
          %2327 = vmatpush1.msra.mxu0 0.0
          %2328 = vmatprep.subr.mxu0 0.0
          %2329 = vmatpush1.msra.mxu0 0.0
          %2330 = vmatprep.subr.mxu0 0.0
          %2331 = vmatpush1.msra.mxu0 0.0
          %2332 = vmatprep.subr.mxu0 0.0
          %2333 = vmatpush1.msra.mxu0 0.0
          %2334 = vmatprep.subr.mxu0 0.0
          %2335 = vmatpush1.msra.mxu0 0.0
          %2336 = vmatprep.subr.mxu0 0.0
          %2337 = vmatpush1.msra.mxu0 0.0
          %2338 = vmatprep.subr.mxu0 0.0
          %2339 = vmatpush1.msra.mxu0 0.0
          %2340 = vmatprep.subr.mxu0 0.0
          %2341 = vmatpush1.msra.mxu0 0.0
          %2342 = vmatprep.subr.mxu0 0.0
          %2343 = vmatpush1.msra.mxu0 0.0
          %2344 = vmatprep.subr.mxu0 0.0
          %2345 = vmatpush1.msra.mxu0 0.0
          %2346 = vmatprep.subr.mxu0 0.0
          %2347 = vmatpush1.msra.mxu0 0.0
          %2348 = vmatprep.subr.mxu0 0.0
          %2349 = vmatpush1.msra.mxu0 0.0
          %2350 = vmatprep.subr.mxu0 0.0
          %2351 = vmatpush1.msra.mxu0 0.0
          %2352 = vmatprep.subr.mxu0 0.0
          %2353 = vmatpush1.msra.mxu0 0.0
          %2354 = vmatprep.subr.mxu0 0.0
          %2355 = vmatpush1.msra.mxu0 0.0
          %2356 = vmatprep.subr.mxu0 0.0
          %2357 = vmatpush1.msra.mxu0 0.0
          %2358 = vmatprep.subr.mxu0 0.0
          %2359 = vmatpush1.msra.mxu0 0.0
          %2360 = vmatprep.subr.mxu0 0.0
          %2361 = vmatpush1.msra.mxu0 0.0
          %2362 = vmatprep.subr.mxu0 0.0
          %2363 = vmatpush1.msra.mxu0 0.0
          %2364 = vmatprep.subr.mxu0 0.0
          %2365 = vmatpush1.msra.mxu0 0.0
          %2366 = vmatprep.subr.mxu0 0.0
          %2367 = vmatpush1.msra.mxu0 0.0
          %2368 = vmatprep.subr.mxu0 0.0
          %2369 = vmatpush1.msra.mxu0 0.0
          %2370 = vmatprep.subr.mxu0 0.0
          %2371 = vmatpush1.msra.mxu0 0.0
          %2372 = vmatprep.subr.mxu0 0.0
          %2373 = vmatpush1.msra.mxu0 0.0
          %2374 = vmatprep.subr.mxu0 0.0
          %2375 = vmatpush1.msra.mxu0 0.0
          %2376 = vmatprep.subr.mxu0 0.0
          %2377 = vmatpush1.msra.mxu0 0.0
          %2378 = vmatprep.subr.mxu0 0.0
          %2379 = vmatpush1.msra.mxu0 0.0
          %2380 = vmatprep.subr.mxu0 0.0
          %2381 = vmatpush1.msra.mxu0 0.0
          %2382 = vmatprep.subr.mxu0 0.0
          %2383 = vmatpush1.msra.mxu0 0.0
          %2384 = vmatprep.mubr.f32.mxu0 0.0
          %2385 = vmatmul.mubr.f32.gmra.mrb[0].mxu0 %v2241
          %v2386 = vpop.f32.mrb[0].mxu0
          %v2387 = vadd.f32 %v2226, %v2386
          %v2388 = vpop.f32.mrb[0].mxu0
          %2389 = vdwg.mxu0
          %v2390 = vld [vmem:[#allocation12] sm:$0xf]
          %v2391 = vld [vmem:[%s2000] sm:$0xff]
          %v2392 = vld [vmem:[%s2000 + $0x8] sm:$0xff]
          %2394 = vrot.lane.b32.xlu0 %v2390, 120
          %v2395 = vpop.permute.xlu0 %2394
          %v2398 = vcombine.high %v2391, %v2391
          %v2399 = vcombine.high %v2392, %v2392
          %2400 = vrot.lane.b32.xlu0 %v2391, 17
          %v2401 = vpop.permute.xlu0 %2400
          %2402 = vrot.lane.b32.xlu0 %v2398, 17
          %v2403 = vpop.permute.xlu0 %2402
          %2404 = vrot.lane.b32.xlu0 %v2392, 17
          %v2405 = vpop.permute.xlu0 %2404
          %2406 = vrot.lane.b32.xlu0 %v2399, 17
          %v2407 = vpop.permute.xlu0 %2406
          %vm2408 = vcmask 138240
          %v2409 = vsel %vm2408, %v2401, %v2403
          %v2410 = vsel %vm2408, %v2403, %v2405
          %v2411 = vsel %vm2408, %v2405, %v2407
          %v2412 = vsel %vm2078, %v2395, 0
          %v2414 = vsel %vm2081, %v2409, 0
          %v2416 = vsel %vm2081, %v2410, 0
          %v2418 = vsel %vm2081, %v2411, 0
          %2420 = vmatprep.subr.mxu0 %v2416
          %2421 = vmatpush1.msra.mxu0 %v2414
          %2422 = vmatprep.subr.mxu0 0.0
          %2423 = vmatpush1.msra.mxu0 0.0
          %2424 = vmatprep.subr.mxu0 0.0
          %2425 = vmatpush1.msra.mxu0 0.0
          %2426 = vmatprep.subr.mxu0 0.0
          %2427 = vmatpush1.msra.mxu0 0.0
          %2428 = vmatprep.subr.mxu0 0.0
          %2429 = vmatpush1.msra.mxu0 0.0
          %2430 = vmatprep.subr.mxu0 0.0
          %2431 = vmatpush1.msra.mxu0 0.0
          %2432 = vmatprep.subr.mxu0 0.0
          %2433 = vmatpush1.msra.mxu0 0.0
          %2434 = vmatprep.subr.mxu0 0.0
          %2435 = vmatpush1.msra.mxu0 0.0
          %2436 = vmatprep.subr.mxu0 0.0
          %2437 = vmatpush1.msra.mxu0 0.0
          %2438 = vmatprep.subr.mxu0 0.0
          %2439 = vmatpush1.msra.mxu0 0.0
          %2440 = vmatprep.subr.mxu0 0.0
          %2441 = vmatpush1.msra.mxu0 0.0
          %2442 = vmatprep.subr.mxu0 0.0
          %2443 = vmatpush1.msra.mxu0 0.0
          %2444 = vmatprep.subr.mxu0 0.0
          %2445 = vmatpush1.msra.mxu0 0.0
          %2446 = vmatprep.subr.mxu0 0.0
          %2447 = vmatpush1.msra.mxu0 0.0
          %2448 = vmatprep.subr.mxu0 0.0
          %2449 = vmatpush1.msra.mxu0 0.0
          %2450 = vmatprep.subr.mxu0 0.0
          %2451 = vmatpush1.msra.mxu0 0.0
          %2452 = vmatprep.subr.mxu0 0.0
          %2453 = vmatpush1.msra.mxu0 0.0
          %2454 = vmatprep.subr.mxu0 0.0
          %2455 = vmatpush1.msra.mxu0 0.0
          %2456 = vmatprep.subr.mxu0 0.0
          %2457 = vmatpush1.msra.mxu0 0.0
          %2458 = vmatprep.subr.mxu0 0.0
          %2459 = vmatpush1.msra.mxu0 0.0
          %2460 = vmatprep.subr.mxu0 0.0
          %2461 = vmatpush1.msra.mxu0 0.0
          %2462 = vmatprep.subr.mxu0 0.0
          %2463 = vmatpush1.msra.mxu0 0.0
          %2464 = vmatprep.subr.mxu0 0.0
          %2465 = vmatpush1.msra.mxu0 0.0
          %2466 = vmatprep.subr.mxu0 0.0
          %2467 = vmatpush1.msra.mxu0 0.0
          %2468 = vmatprep.subr.mxu0 0.0
          %2469 = vmatpush1.msra.mxu0 0.0
          %2470 = vmatprep.subr.mxu0 0.0
          %2471 = vmatpush1.msra.mxu0 0.0
          %2472 = vmatprep.subr.mxu0 0.0
          %2473 = vmatpush1.msra.mxu0 0.0
          %2474 = vmatprep.subr.mxu0 0.0
          %2475 = vmatpush1.msra.mxu0 0.0
          %2476 = vmatprep.subr.mxu0 0.0
          %2477 = vmatpush1.msra.mxu0 0.0
          %2478 = vmatprep.subr.mxu0 0.0
          %2479 = vmatpush1.msra.mxu0 0.0
          %2480 = vmatprep.subr.mxu0 0.0
          %2481 = vmatpush1.msra.mxu0 0.0
          %2482 = vmatprep.subr.mxu0 0.0
          %2483 = vmatpush1.msra.mxu0 0.0
          %2484 = vmatprep.mubr.f32.mxu0 0.0
          %2485 = vmatmul.mubr.f32.gmra.mrb[0].mxu0 %v2412
          %v2486 = vpop.f32.mrb[0].mxu0
          %v2487 = vadd.f32 0.0, %v2486
          %v2488 = vpop.f32.mrb[0].mxu0
          %v2489 = vadd.f32 0.0, %v2488
          %2490 = vdwg.mxu0
          %2491 = vmatprep.subr.mxu0 0.0
          %2492 = vmatpush1.msra.mxu0 %v2418
          %2493 = vmatprep.subr.mxu0 0.0
          %2494 = vmatpush1.msra.mxu0 0.0
          %2495 = vmatprep.subr.mxu0 0.0
          %2496 = vmatpush1.msra.mxu0 0.0
          %2497 = vmatprep.subr.mxu0 0.0
          %2498 = vmatpush1.msra.mxu0 0.0
          %2499 = vmatprep.subr.mxu0 0.0
          %2500 = vmatpush1.msra.mxu0 0.0
          %2501 = vmatprep.subr.mxu0 0.0
          %2502 = vmatpush1.msra.mxu0 0.0
          %2503 = vmatprep.subr.mxu0 0.0
          %2504 = vmatpush1.msra.mxu0 0.0
          %2505 = vmatprep.subr.mxu0 0.0
          %2506 = vmatpush1.msra.mxu0 0.0
          %2507 = vmatprep.subr.mxu0 0.0
          %2508 = vmatpush1.msra.mxu0 0.0
          %2509 = vmatprep.subr.mxu0 0.0
          %2510 = vmatpush1.msra.mxu0 0.0
          %2511 = vmatprep.subr.mxu0 0.0
          %2512 = vmatpush1.msra.mxu0 0.0
          %2513 = vmatprep.subr.mxu0 0.0
          %2514 = vmatpush1.msra.mxu0 0.0
          %2515 = vmatprep.subr.mxu0 0.0
          %2516 = vmatpush1.msra.mxu0 0.0
          %2517 = vmatprep.subr.mxu0 0.0
          %2518 = vmatpush1.msra.mxu0 0.0
          %2519 = vmatprep.subr.mxu0 0.0
          %2520 = vmatpush1.msra.mxu0 0.0
          %2521 = vmatprep.subr.mxu0 0.0
          %2522 = vmatpush1.msra.mxu0 0.0
          %2523 = vmatprep.subr.mxu0 0.0
          %2524 = vmatpush1.msra.mxu0 0.0
          %2525 = vmatprep.subr.mxu0 0.0
          %2526 = vmatpush1.msra.mxu0 0.0
          %2527 = vmatprep.subr.mxu0 0.0
          %2528 = vmatpush1.msra.mxu0 0.0
          %2529 = vmatprep.subr.mxu0 0.0
          %2530 = vmatpush1.msra.mxu0 0.0
          %2531 = vmatprep.subr.mxu0 0.0
          %2532 = vmatpush1.msra.mxu0 0.0
          %2533 = vmatprep.subr.mxu0 0.0
          %2534 = vmatpush1.msra.mxu0 0.0
          %2535 = vmatprep.subr.mxu0 0.0
          %2536 = vmatpush1.msra.mxu0 0.0
          %2537 = vmatprep.subr.mxu0 0.0
          %2538 = vmatpush1.msra.mxu0 0.0
          %2539 = vmatprep.subr.mxu0 0.0
          %2540 = vmatpush1.msra.mxu0 0.0
          %2541 = vmatprep.subr.mxu0 0.0
          %2542 = vmatpush1.msra.mxu0 0.0
          %2543 = vmatprep.subr.mxu0 0.0
          %2544 = vmatpush1.msra.mxu0 0.0
          %2545 = vmatprep.subr.mxu0 0.0
          %2546 = vmatpush1.msra.mxu0 0.0
          %2547 = vmatprep.subr.mxu0 0.0
          %2548 = vmatpush1.msra.mxu0 0.0
          %2549 = vmatprep.subr.mxu0 0.0
          %2550 = vmatpush1.msra.mxu0 0.0
          %2551 = vmatprep.subr.mxu0 0.0
          %2552 = vmatpush1.msra.mxu0 0.0
          %2553 = vmatprep.subr.mxu0 0.0
          %2554 = vmatpush1.msra.mxu0 0.0
          %2555 = vmatprep.mubr.f32.mxu0 0.0
          %2556 = vmatmul.mubr.f32.gmra.mrb[0].mxu0 %v2412
          %v2557 = vpop.f32.mrb[0].mxu0
          %v2558 = vadd.f32 0.0, %v2557
          %v2559 = vpop.f32.mrb[0].mxu0
          %2560 = vdwg.mxu0
          %v2561 = vadd.f32 %v2316, %v2487
          %v2562 = vadd.f32 %v2318, %v2489
          %v2563 = vadd.f32 %v2387, %v2558
          %v2564 = vld [vmem:[#allocation12] sm:$0xf]
          %v2565 = vld [vmem:[%s2000] sm:$0xff]
          %v2566 = vld [vmem:[%s2000 + $0x8] sm:$0xff]
          %2568 = vrot.lane.b32.xlu0 %v2564, 116
          %v2569 = vpop.permute.xlu0 %2568
          %v2572 = vcombine.high %v2565, %v2565
          %v2573 = vcombine.high %v2566, %v2566
          %2574 = vrot.lane.b32.xlu0 %v2565, 1
          %v2575 = vpop.permute.xlu0 %2574
          %2576 = vrot.lane.b32.xlu0 %v2572, 1
          %v2577 = vpop.permute.xlu0 %2576
          %2578 = vrot.lane.b32.xlu0 %v2566, 1
          %v2579 = vpop.permute.xlu0 %2578
          %2580 = vrot.lane.b32.xlu0 %v2573, 1
          %v2581 = vpop.permute.xlu0 %2580
          %vm2582 = vcmask 7168
          %v2583 = vsel %vm2582, %v2575, %v2577
          %v2584 = vsel %vm2582, %v2577, %v2579
          %v2585 = vsel %vm2582, %v2579, %v2581
          %v2586 = vsel %vm2078, %v2569, 0
          %v2588 = vsel %vm2081, %v2583, 0
          %v2590 = vsel %vm2081, %v2584, 0
          %v2592 = vsel %vm2081, %v2585, 0
          %2594 = vmatprep.subr.mxu0 %v2590
          %2595 = vmatpush1.msra.mxu0 %v2588
          %2596 = vmatprep.subr.mxu0 0.0
          %2597 = vmatpush1.msra.mxu0 0.0
          %2598 = vmatprep.subr.mxu0 0.0
          %2599 = vmatpush1.msra.mxu0 0.0
          %2600 = vmatprep.subr.mxu0 0.0
          %2601 = vmatpush1.msra.mxu0 0.0
          %2602 = vmatprep.subr.mxu0 0.0
          %2603 = vmatpush1.msra.mxu0 0.0
          %2604 = vmatprep.subr.mxu0 0.0
          %2605 = vmatpush1.msra.mxu0 0.0
          %2606 = vmatprep.subr.mxu0 0.0
          %2607 = vmatpush1.msra.mxu0 0.0
          %2608 = vmatprep.subr.mxu0 0.0
          %2609 = vmatpush1.msra.mxu0 0.0
          %2610 = vmatprep.subr.mxu0 0.0
          %2611 = vmatpush1.msra.mxu0 0.0
          %2612 = vmatprep.subr.mxu0 0.0
          %2613 = vmatpush1.msra.mxu0 0.0
          %2614 = vmatprep.subr.mxu0 0.0
          %2615 = vmatpush1.msra.mxu0 0.0
          %2616 = vmatprep.subr.mxu0 0.0
          %2617 = vmatpush1.msra.mxu0 0.0
          %2618 = vmatprep.subr.mxu0 0.0
          %2619 = vmatpush1.msra.mxu0 0.0
          %2620 = vmatprep.subr.mxu0 0.0
          %2621 = vmatpush1.msra.mxu0 0.0
          %2622 = vmatprep.subr.mxu0 0.0
          %2623 = vmatpush1.msra.mxu0 0.0
          %2624 = vmatprep.subr.mxu0 0.0
          %2625 = vmatpush1.msra.mxu0 0.0
          %2626 = vmatprep.subr.mxu0 0.0
          %2627 = vmatpush1.msra.mxu0 0.0
          %2628 = vmatprep.subr.mxu0 0.0
          %2629 = vmatpush1.msra.mxu0 0.0
          %2630 = vmatprep.subr.mxu0 0.0
          %2631 = vmatpush1.msra.mxu0 0.0
          %2632 = vmatprep.subr.mxu0 0.0
          %2633 = vmatpush1.msra.mxu0 0.0
          %2634 = vmatprep.subr.mxu0 0.0
          %2635 = vmatpush1.msra.mxu0 0.0
          %2636 = vmatprep.subr.mxu0 0.0
          %2637 = vmatpush1.msra.mxu0 0.0
          %2638 = vmatprep.subr.mxu0 0.0
          %2639 = vmatpush1.msra.mxu0 0.0
          %2640 = vmatprep.subr.mxu0 0.0
          %2641 = vmatpush1.msra.mxu0 0.0
          %2642 = vmatprep.subr.mxu0 0.0
          %2643 = vmatpush1.msra.mxu0 0.0
          %2644 = vmatprep.subr.mxu0 0.0
          %2645 = vmatpush1.msra.mxu0 0.0
          %2646 = vmatprep.subr.mxu0 0.0
          %2647 = vmatpush1.msra.mxu0 0.0
          %2648 = vmatprep.subr.mxu0 0.0
          %2649 = vmatpush1.msra.mxu0 0.0
          %2650 = vmatprep.subr.mxu0 0.0
          %2651 = vmatpush1.msra.mxu0 0.0
          %2652 = vmatprep.subr.mxu0 0.0
          %2653 = vmatpush1.msra.mxu0 0.0
          %2654 = vmatprep.subr.mxu0 0.0
          %2655 = vmatpush1.msra.mxu0 0.0
          %2656 = vmatprep.subr.mxu0 0.0
          %2657 = vmatpush1.msra.mxu0 0.0
          %2658 = vmatprep.mubr.f32.mxu0 0.0
          %2659 = vmatmul.mubr.f32.gmra.mrb[0].mxu0 %v2586
          %v2660 = vpop.f32.mrb[0].mxu0
          %v2661 = vadd.f32 0.0, %v2660
          %v2662 = vpop.f32.mrb[0].mxu0
          %v2663 = vadd.f32 0.0, %v2662
          %2664 = vdwg.mxu0
          %2665 = vmatprep.subr.mxu0 0.0
          %2666 = vmatpush1.msra.mxu0 %v2592
          %2667 = vmatprep.subr.mxu0 0.0
          %2668 = vmatpush1.msra.mxu0 0.0
          %2669 = vmatprep.subr.mxu0 0.0
          %2670 = vmatpush1.msra.mxu0 0.0
          %2671 = vmatprep.subr.mxu0 0.0
          %2672 = vmatpush1.msra.mxu0 0.0
          %2673 = vmatprep.subr.mxu0 0.0
          %2674 = vmatpush1.msra.mxu0 0.0
          %2675 = vmatprep.subr.mxu0 0.0
          %2676 = vmatpush1.msra.mxu0 0.0
          %2677 = vmatprep.subr.mxu0 0.0
          %2678 = vmatpush1.msra.mxu0 0.0
          %2679 = vmatprep.subr.mxu0 0.0
          %2680 = vmatpush1.msra.mxu0 0.0
          %2681 = vmatprep.subr.mxu0 0.0
          %2682 = vmatpush1.msra.mxu0 0.0
          %2683 = vmatprep.subr.mxu0 0.0
          %2684 = vmatpush1.msra.mxu0 0.0
          %2685 = vmatprep.subr.mxu0 0.0
          %2686 = vmatpush1.msra.mxu0 0.0
          %2687 = vmatprep.subr.mxu0 0.0
          %2688 = vmatpush1.msra.mxu0 0.0
          %2689 = vmatprep.subr.mxu0 0.0
          %2690 = vmatpush1.msra.mxu0 0.0
          %2691 = vmatprep.subr.mxu0 0.0
          %2692 = vmatpush1.msra.mxu0 0.0
          %2693 = vmatprep.subr.mxu0 0.0
          %2694 = vmatpush1.msra.mxu0 0.0
          %2695 = vmatprep.subr.mxu0 0.0
          %2696 = vmatpush1.msra.mxu0 0.0
          %2697 = vmatprep.subr.mxu0 0.0
          %2698 = vmatpush1.msra.mxu0 0.0
          %2699 = vmatprep.subr.mxu0 0.0
          %2700 = vmatpush1.msra.mxu0 0.0
          %2701 = vmatprep.subr.mxu0 0.0
          %2702 = vmatpush1.msra.mxu0 0.0
          %2703 = vmatprep.subr.mxu0 0.0
          %2704 = vmatpush1.msra.mxu0 0.0
          %2705 = vmatprep.subr.mxu0 0.0
          %2706 = vmatpush1.msra.mxu0 0.0
          %2707 = vmatprep.subr.mxu0 0.0
          %2708 = vmatpush1.msra.mxu0 0.0
          %2709 = vmatprep.subr.mxu0 0.0
          %2710 = vmatpush1.msra.mxu0 0.0
          %2711 = vmatprep.subr.mxu0 0.0
          %2712 = vmatpush1.msra.mxu0 0.0
          %2713 = vmatprep.subr.mxu0 0.0
          %2714 = vmatpush1.msra.mxu0 0.0
          %2715 = vmatprep.subr.mxu0 0.0
          %2716 = vmatpush1.msra.mxu0 0.0
          %2717 = vmatprep.subr.mxu0 0.0
          %2718 = vmatpush1.msra.mxu0 0.0
          %2719 = vmatprep.subr.mxu0 0.0
          %2720 = vmatpush1.msra.mxu0 0.0
          %2721 = vmatprep.subr.mxu0 0.0
          %2722 = vmatpush1.msra.mxu0 0.0
          %2723 = vmatprep.subr.mxu0 0.0
          %2724 = vmatpush1.msra.mxu0 0.0
          %2725 = vmatprep.subr.mxu0 0.0
          %2726 = vmatpush1.msra.mxu0 0.0
          %2727 = vmatprep.subr.mxu0 0.0
          %2728 = vmatpush1.msra.mxu0 0.0
          %2729 = vmatprep.mubr.f32.mxu0 0.0
          %2730 = vmatmul.mubr.f32.gmra.mrb[0].mxu0 %v2586
          %v2731 = vpop.f32.mrb[0].mxu0
          %v2732 = vadd.f32 0.0, %v2731
          %v2733 = vpop.f32.mrb[0].mxu0
          %2734 = vdwg.mxu0
          %v2735 = vadd.f32 %v2561, %v2661
          %v2736 = vadd.f32 %v2562, %v2663
          %v2737 = vadd.f32 %v2563, %v2732
          %v2738 = vld [vmem:[#allocation12] sm:$0xf]
          %v2739 = vld [vmem:[%s2000 + $0x4] sm:$0xff]
          %v2740 = vld [vmem:[%s2000 + $0xc] sm:$0xf]
          %2742 = vrot.lane.b32.xlu0 %v2738, 112
          %v2743 = vpop.permute.xlu0 %2742
          %v2746 = vcombine.high %v2739, %v2739
          %v2747 = vsel %vm2078, %v2743, 0
          %v2749 = vsel %vm2081, %v2739, 0
          %v2751 = vsel %vm2081, %v2746, 0
          %v2753 = vsel %vm2081, %v2740, 0
          %2755 = vmatprep.subr.mxu0 %v2751
          %2756 = vmatpush1.msra.mxu0 %v2749
          %2757 = vmatprep.subr.mxu0 0.0
          %2758 = vmatpush1.msra.mxu0 0.0
          %2759 = vmatprep.subr.mxu0 0.0
          %2760 = vmatpush1.msra.mxu0 0.0
          %2761 = vmatprep.subr.mxu0 0.0
          %2762 = vmatpush1.msra.mxu0 0.0
          %2763 = vmatprep.subr.mxu0 0.0
          %2764 = vmatpush1.msra.mxu0 0.0
          %2765 = vmatprep.subr.mxu0 0.0
          %2766 = vmatpush1.msra.mxu0 0.0
          %2767 = vmatprep.subr.mxu0 0.0
          %2768 = vmatpush1.msra.mxu0 0.0
          %2769 = vmatprep.subr.mxu0 0.0
          %2770 = vmatpush1.msra.mxu0 0.0
          %2771 = vmatprep.subr.mxu0 0.0
          %2772 = vmatpush1.msra.mxu0 0.0
          %2773 = vmatprep.subr.mxu0 0.0
          %2774 = vmatpush1.msra.mxu0 0.0
          %2775 = vmatprep.subr.mxu0 0.0
          %2776 = vmatpush1.msra.mxu0 0.0
          %2777 = vmatprep.subr.mxu0 0.0
          %2778 = vmatpush1.msra.mxu0 0.0
          %2779 = vmatprep.subr.mxu0 0.0
          %2780 = vmatpush1.msra.mxu0 0.0
          %2781 = vmatprep.subr.mxu0 0.0
          %2782 = vmatpush1.msra.mxu0 0.0
          %2783 = vmatprep.subr.mxu0 0.0
          %2784 = vmatpush1.msra.mxu0 0.0
          %2785 = vmatprep.subr.mxu0 0.0
          %2786 = vmatpush1.msra.mxu0 0.0
          %2787 = vmatprep.subr.mxu0 0.0
          %2788 = vmatpush1.msra.mxu0 0.0
          %2789 = vmatprep.subr.mxu0 0.0
          %2790 = vmatpush1.msra.mxu0 0.0
          %2791 = vmatprep.subr.mxu0 0.0
          %2792 = vmatpush1.msra.mxu0 0.0
          %2793 = vmatprep.subr.mxu0 0.0
          %2794 = vmatpush1.msra.mxu0 0.0
          %2795 = vmatprep.subr.mxu0 0.0
          %2796 = vmatpush1.msra.mxu0 0.0
          %2797 = vmatprep.subr.mxu0 0.0
          %2798 = vmatpush1.msra.mxu0 0.0
          %2799 = vmatprep.subr.mxu0 0.0
          %2800 = vmatpush1.msra.mxu0 0.0
          %2801 = vmatprep.subr.mxu0 0.0
          %2802 = vmatpush1.msra.mxu0 0.0
          %2803 = vmatprep.subr.mxu0 0.0
          %2804 = vmatpush1.msra.mxu0 0.0
          %2805 = vmatprep.subr.mxu0 0.0
          %2806 = vmatpush1.msra.mxu0 0.0
          %2807 = vmatprep.subr.mxu0 0.0
          %2808 = vmatpush1.msra.mxu0 0.0
          %2809 = vmatprep.subr.mxu0 0.0
          %2810 = vmatpush1.msra.mxu0 0.0
          %2811 = vmatprep.subr.mxu0 0.0
          %2812 = vmatpush1.msra.mxu0 0.0
          %2813 = vmatprep.subr.mxu0 0.0
          %2814 = vmatpush1.msra.mxu0 0.0
          %2815 = vmatprep.subr.mxu0 0.0
          %2816 = vmatpush1.msra.mxu0 0.0
          %2817 = vmatprep.subr.mxu0 0.0
          %2818 = vmatpush1.msra.mxu0 0.0
          %2819 = vmatprep.mubr.f32.mxu0 0.0
          %2820 = vmatmul.mubr.f32.gmra.mrb[0].mxu0 %v2747
          %v2821 = vpop.f32.mrb[0].mxu0
          %v2822 = vadd.f32 0.0, %v2821
          %v2823 = vpop.f32.mrb[0].mxu0
          %v2824 = vadd.f32 0.0, %v2823
          %2825 = vdwg.mxu0
          %2826 = vmatprep.subr.mxu0 0.0
          %2827 = vmatpush1.msra.mxu0 %v2753
          %2828 = vmatprep.subr.mxu0 0.0
          %2829 = vmatpush1.msra.mxu0 0.0
          %2830 = vmatprep.subr.mxu0 0.0
          %2831 = vmatpush1.msra.mxu0 0.0
          %2832 = vmatprep.subr.mxu0 0.0
          %2833 = vmatpush1.msra.mxu0 0.0
          %2834 = vmatprep.subr.mxu0 0.0
          %2835 = vmatpush1.msra.mxu0 0.0
          %2836 = vmatprep.subr.mxu0 0.0
          %2837 = vmatpush1.msra.mxu0 0.0
          %2838 = vmatprep.subr.mxu0 0.0
          %2839 = vmatpush1.msra.mxu0 0.0
          %2840 = vmatprep.subr.mxu0 0.0
          %2841 = vmatpush1.msra.mxu0 0.0
          %2842 = vmatprep.subr.mxu0 0.0
          %2843 = vmatpush1.msra.mxu0 0.0
          %2844 = vmatprep.subr.mxu0 0.0
          %2845 = vmatpush1.msra.mxu0 0.0
          %2846 = vmatprep.subr.mxu0 0.0
          %2847 = vmatpush1.msra.mxu0 0.0
          %2848 = vmatprep.subr.mxu0 0.0
          %2849 = vmatpush1.msra.mxu0 0.0
          %2850 = vmatprep.subr.mxu0 0.0
          %2851 = vmatpush1.msra.mxu0 0.0
          %2852 = vmatprep.subr.mxu0 0.0
          %2853 = vmatpush1.msra.mxu0 0.0
          %2854 = vmatprep.subr.mxu0 0.0
          %2855 = vmatpush1.msra.mxu0 0.0
          %2856 = vmatprep.subr.mxu0 0.0
          %2857 = vmatpush1.msra.mxu0 0.0
          %2858 = vmatprep.subr.mxu0 0.0
          %2859 = vmatpush1.msra.mxu0 0.0
          %2860 = vmatprep.subr.mxu0 0.0
          %2861 = vmatpush1.msra.mxu0 0.0
          %2862 = vmatprep.subr.mxu0 0.0
          %2863 = vmatpush1.msra.mxu0 0.0
          %2864 = vmatprep.subr.mxu0 0.0
          %2865 = vmatpush1.msra.mxu0 0.0
          %2866 = vmatprep.subr.mxu0 0.0
          %2867 = vmatpush1.msra.mxu0 0.0
          %2868 = vmatprep.subr.mxu0 0.0
          %2869 = vmatpush1.msra.mxu0 0.0
          %2870 = vmatprep.subr.mxu0 0.0
          %2871 = vmatpush1.msra.mxu0 0.0
          %2872 = vmatprep.subr.mxu0 0.0
          %2873 = vmatpush1.msra.mxu0 0.0
          %2874 = vmatprep.subr.mxu0 0.0
          %2875 = vmatpush1.msra.mxu0 0.0
          %2876 = vmatprep.subr.mxu0 0.0
          %2877 = vmatpush1.msra.mxu0 0.0
          %2878 = vmatprep.subr.mxu0 0.0
          %2879 = vmatpush1.msra.mxu0 0.0
          %2880 = vmatprep.subr.mxu0 0.0
          %2881 = vmatpush1.msra.mxu0 0.0
          %2882 = vmatprep.subr.mxu0 0.0
          %2883 = vmatpush1.msra.mxu0 0.0
          %2884 = vmatprep.subr.mxu0 0.0
          %2885 = vmatpush1.msra.mxu0 0.0
          %2886 = vmatprep.subr.mxu0 0.0
          %2887 = vmatpush1.msra.mxu0 0.0
          %2888 = vmatprep.subr.mxu0 0.0
          %2889 = vmatpush1.msra.mxu0 0.0
          %2890 = vmatprep.mubr.f32.mxu0 0.0
          %2891 = vmatmul.mubr.f32.gmra.mrb[0].mxu0 %v2747
          %v2892 = vpop.f32.mrb[0].mxu0
          %v2893 = vadd.f32 0.0, %v2892
          %v2894 = vpop.f32.mrb[0].mxu0
          %2895 = vdwg.mxu0
          %v2896 = vadd.f32 %v2735, %v2822
          %v2897 = vadd.f32 %v2736, %v2824
          %v2898 = vadd.f32 %v2737, %v2893
          %v2899 = vld [vmem:[#allocation12] sm:$0xf]
          %v2900 = vld [vmem:[%s2000 + $0x4] sm:$0xff]
          %v2901 = vld [vmem:[%s2000 + $0xc] sm:$0xff]
          %2903 = vrot.lane.b32.xlu0 %v2899, 108
          %v2904 = vpop.permute.xlu0 %2903
          %v2907 = vcombine.high %v2900, %v2900
          %v2908 = vcombine.high %v2901, %v2901
          %2909 = vrot.lane.b32.xlu0 %v2900, 127
          %v2910 = vpop.permute.xlu0 %2909
          %2911 = vrot.lane.b32.xlu0 %v2907, 127
          %v2912 = vpop.permute.xlu0 %2911
          %2913 = vrot.lane.b32.xlu0 %v2901, 127
          %v2914 = vpop.permute.xlu0 %2913
          %2915 = vrot.lane.b32.xlu0 %v2908, 127
          %v2916 = vpop.permute.xlu0 %2915
          %vm2917 = vcmask 1039360
          %v2918 = vsel %vm2917, %v2910, %v2912
          %v2919 = vsel %vm2917, %v2912, %v2914
          %v2920 = vsel %vm2917, %v2914, %v2916
          %v2921 = vsel %vm2078, %v2904, 0
          %v2923 = vsel %vm2081, %v2918, 0
          %v2925 = vsel %vm2081, %v2919, 0
          %v2927 = vsel %vm2081, %v2920, 0
          %2929 = vmatprep.subr.mxu0 %v2925
          %2930 = vmatpush1.msra.mxu0 %v2923
          %2931 = vmatprep.subr.mxu0 0.0
          %2932 = vmatpush1.msra.mxu0 0.0
          %2933 = vmatprep.subr.mxu0 0.0
          %2934 = vmatpush1.msra.mxu0 0.0
          %2935 = vmatprep.subr.mxu0 0.0
          %2936 = vmatpush1.msra.mxu0 0.0
          %2937 = vmatprep.subr.mxu0 0.0
          %2938 = vmatpush1.msra.mxu0 0.0
          %2939 = vmatprep.subr.mxu0 0.0
          %2940 = vmatpush1.msra.mxu0 0.0
          %2941 = vmatprep.subr.mxu0 0.0
          %2942 = vmatpush1.msra.mxu0 0.0
          %2943 = vmatprep.subr.mxu0 0.0
          %2944 = vmatpush1.msra.mxu0 0.0
          %2945 = vmatprep.subr.mxu0 0.0
          %2946 = vmatpush1.msra.mxu0 0.0
          %2947 = vmatprep.subr.mxu0 0.0
          %2948 = vmatpush1.msra.mxu0 0.0
          %2949 = vmatprep.subr.mxu0 0.0
          %2950 = vmatpush1.msra.mxu0 0.0
          %2951 = vmatprep.subr.mxu0 0.0
          %2952 = vmatpush1.msra.mxu0 0.0
          %2953 = vmatprep.subr.mxu0 0.0
          %2954 = vmatpush1.msra.mxu0 0.0
          %2955 = vmatprep.subr.mxu0 0.0
          %2956 = vmatpush1.msra.mxu0 0.0
          %2957 = vmatprep.subr.mxu0 0.0
          %2958 = vmatpush1.msra.mxu0 0.0
          %2959 = vmatprep.subr.mxu0 0.0
          %2960 = vmatpush1.msra.mxu0 0.0
          %2961 = vmatprep.subr.mxu0 0.0
          %2962 = vmatpush1.msra.mxu0 0.0
          %2963 = vmatprep.subr.mxu0 0.0
          %2964 = vmatpush1.msra.mxu0 0.0
          %2965 = vmatprep.subr.mxu0 0.0
          %2966 = vmatpush1.msra.mxu0 0.0
          %2967 = vmatprep.subr.mxu0 0.0
          %2968 = vmatpush1.msra.mxu0 0.0
          %2969 = vmatprep.subr.mxu0 0.0
          %2970 = vmatpush1.msra.mxu0 0.0
          %2971 = vmatprep.subr.mxu0 0.0
          %2972 = vmatpush1.msra.mxu0 0.0
          %2973 = vmatprep.subr.mxu0 0.0
          %2974 = vmatpush1.msra.mxu0 0.0
          %2975 = vmatprep.subr.mxu0 0.0
          %2976 = vmatpush1.msra.mxu0 0.0
          %2977 = vmatprep.subr.mxu0 0.0
          %2978 = vmatpush1.msra.mxu0 0.0
          %2979 = vmatprep.subr.mxu0 0.0
          %2980 = vmatpush1.msra.mxu0 0.0
          %2981 = vmatprep.subr.mxu0 0.0
          %2982 = vmatpush1.msra.mxu0 0.0
          %2983 = vmatprep.subr.mxu0 0.0
          %2984 = vmatpush1.msra.mxu0 0.0
          %2985 = vmatprep.subr.mxu0 0.0
          %2986 = vmatpush1.msra.mxu0 0.0
          %2987 = vmatprep.subr.mxu0 0.0
          %2988 = vmatpush1.msra.mxu0 0.0
          %2989 = vmatprep.subr.mxu0 0.0
          %2990 = vmatpush1.msra.mxu0 0.0
          %2991 = vmatprep.subr.mxu0 0.0
          %2992 = vmatpush1.msra.mxu0 0.0
          %2993 = vmatprep.mubr.f32.mxu0 0.0
          %2994 = vmatmul.mubr.f32.gmra.mrb[0].mxu0 %v2921
          %v2995 = vpop.f32.mrb[0].mxu0
          %v2996 = vadd.f32 0.0, %v2995
          %v2997 = vpop.f32.mrb[0].mxu0
          %v2998 = vadd.f32 0.0, %v2997
          %2999 = vdwg.mxu0
          %3000 = vmatprep.subr.mxu0 0.0
          %3001 = vmatpush1.msra.mxu0 %v2927
          %3002 = vmatprep.subr.mxu0 0.0
          %3003 = vmatpush1.msra.mxu0 0.0
          %3004 = vmatprep.subr.mxu0 0.0
          %3005 = vmatpush1.msra.mxu0 0.0
          %3006 = vmatprep.subr.mxu0 0.0
          %3007 = vmatpush1.msra.mxu0 0.0
          %3008 = vmatprep.subr.mxu0 0.0
          %3009 = vmatpush1.msra.mxu0 0.0
          %3010 = vmatprep.subr.mxu0 0.0
          %3011 = vmatpush1.msra.mxu0 0.0
          %3012 = vmatprep.subr.mxu0 0.0
          %3013 = vmatpush1.msra.mxu0 0.0
          %3014 = vmatprep.subr.mxu0 0.0
          %3015 = vmatpush1.msra.mxu0 0.0
          %3016 = vmatprep.subr.mxu0 0.0
          %3017 = vmatpush1.msra.mxu0 0.0
          %3018 = vmatprep.subr.mxu0 0.0
          %3019 = vmatpush1.msra.mxu0 0.0
          %3020 = vmatprep.subr.mxu0 0.0
          %3021 = vmatpush1.msra.mxu0 0.0
          %3022 = vmatprep.subr.mxu0 0.0
          %3023 = vmatpush1.msra.mxu0 0.0
          %3024 = vmatprep.subr.mxu0 0.0
          %3025 = vmatpush1.msra.mxu0 0.0
          %3026 = vmatprep.subr.mxu0 0.0
          %3027 = vmatpush1.msra.mxu0 0.0
          %3028 = vmatprep.subr.mxu0 0.0
          %3029 = vmatpush1.msra.mxu0 0.0
          %3030 = vmatprep.subr.mxu0 0.0
          %3031 = vmatpush1.msra.mxu0 0.0
          %3032 = vmatprep.subr.mxu0 0.0
          %3033 = vmatpush1.msra.mxu0 0.0
          %3034 = vmatprep.subr.mxu0 0.0
          %3035 = vmatpush1.msra.mxu0 0.0
          %3036 = vmatprep.subr.mxu0 0.0
          %3037 = vmatpush1.msra.mxu0 0.0
          %3038 = vmatprep.subr.mxu0 0.0
          %3039 = vmatpush1.msra.mxu0 0.0
          %3040 = vmatprep.subr.mxu0 0.0
          %3041 = vmatpush1.msra.mxu0 0.0
          %3042 = vmatprep.subr.mxu0 0.0
          %3043 = vmatpush1.msra.mxu0 0.0
          %3044 = vmatprep.subr.mxu0 0.0
          %3045 = vmatpush1.msra.mxu0 0.0
          %3046 = vmatprep.subr.mxu0 0.0
          %3047 = vmatpush1.msra.mxu0 0.0
          %3048 = vmatprep.subr.mxu0 0.0
          %3049 = vmatpush1.msra.mxu0 0.0
          %3050 = vmatprep.subr.mxu0 0.0
          %3051 = vmatpush1.msra.mxu0 0.0
          %3052 = vmatprep.subr.mxu0 0.0
          %3053 = vmatpush1.msra.mxu0 0.0
          %3054 = vmatprep.subr.mxu0 0.0
          %3055 = vmatpush1.msra.mxu0 0.0
          %3056 = vmatprep.subr.mxu0 0.0
          %3057 = vmatpush1.msra.mxu0 0.0
          %3058 = vmatprep.subr.mxu0 0.0
          %3059 = vmatpush1.msra.mxu0 0.0
          %3060 = vmatprep.subr.mxu0 0.0
          %3061 = vmatpush1.msra.mxu0 0.0
          %3062 = vmatprep.subr.mxu0 0.0
          %3063 = vmatpush1.msra.mxu0 0.0
          %3064 = vmatprep.mubr.f32.mxu0 0.0
          %3065 = vmatmul.mubr.f32.gmra.mrb[0].mxu0 %v2921
          %v3066 = vpop.f32.mrb[0].mxu0
          %v3067 = vadd.f32 0.0, %v3066
          %v3068 = vpop.f32.mrb[0].mxu0
          %3069 = vdwg.mxu0
          %v3070 = vadd.f32 %v2896, %v2996
          %v3071 = vadd.f32 %v2897, %v2998
          %v3072 = vadd.f32 %v2898, %v3067
          %v3073 = vld [vmem:[#allocation12] sm:$0xf]
          %v3074 = vld [vmem:[%s2000 + $0x4] sm:$0xff]
          %v3075 = vld [vmem:[%s2000 + $0xc] sm:$0xff]
          %3077 = vrot.lane.b32.xlu0 %v3073, 104
          %v3078 = vpop.permute.xlu0 %3077
          %v3081 = vcombine.high %v3074, %v3074
          %v3082 = vcombine.high %v3075, %v3075
          %3083 = vrot.lane.b32.xlu0 %v3074, 111
          %v3084 = vpop.permute.xlu0 %3083
          %3085 = vrot.lane.b32.xlu0 %v3081, 111
          %v3086 = vpop.permute.xlu0 %3085
          %3087 = vrot.lane.b32.xlu0 %v3075, 111
          %v3088 = vpop.permute.xlu0 %3087
          %3089 = vrot.lane.b32.xlu0 %v3082, 111
          %v3090 = vpop.permute.xlu0 %3089
          %vm3091 = vcmask 908288
          %v3092 = vsel %vm3091, %v3084, %v3086
          %v3093 = vsel %vm3091, %v3086, %v3088
          %v3094 = vsel %vm3091, %v3088, %v3090
          %v3095 = vsel %vm2078, %v3078, 0
          %v3097 = vsel %vm2081, %v3092, 0
          %v3099 = vsel %vm2081, %v3093, 0
          %v3101 = vsel %vm2081, %v3094, 0
          %3103 = vmatprep.subr.mxu0 %v3099
          %3104 = vmatpush1.msra.mxu0 %v3097
          %3105 = vmatprep.subr.mxu0 0.0
          %3106 = vmatpush1.msra.mxu0 0.0
          %3107 = vmatprep.subr.mxu0 0.0
          %3108 = vmatpush1.msra.mxu0 0.0
          %3109 = vmatprep.subr.mxu0 0.0
          %3110 = vmatpush1.msra.mxu0 0.0
          %3111 = vmatprep.subr.mxu0 0.0
          %3112 = vmatpush1.msra.mxu0 0.0
          %3113 = vmatprep.subr.mxu0 0.0
          %3114 = vmatpush1.msra.mxu0 0.0
          %3115 = vmatprep.subr.mxu0 0.0
          %3116 = vmatpush1.msra.mxu0 0.0
          %3117 = vmatprep.subr.mxu0 0.0
          %3118 = vmatpush1.msra.mxu0 0.0
          %3119 = vmatprep.subr.mxu0 0.0
          %3120 = vmatpush1.msra.mxu0 0.0
          %3121 = vmatprep.subr.mxu0 0.0
          %3122 = vmatpush1.msra.mxu0 0.0
          %3123 = vmatprep.subr.mxu0 0.0
          %3124 = vmatpush1.msra.mxu0 0.0
          %3125 = vmatprep.subr.mxu0 0.0
          %3126 = vmatpush1.msra.mxu0 0.0
          %3127 = vmatprep.subr.mxu0 0.0
          %3128 = vmatpush1.msra.mxu0 0.0
          %3129 = vmatprep.subr.mxu0 0.0
          %3130 = vmatpush1.msra.mxu0 0.0
          %3131 = vmatprep.subr.mxu0 0.0
          %3132 = vmatpush1.msra.mxu0 0.0
          %3133 = vmatprep.subr.mxu0 0.0
          %3134 = vmatpush1.msra.mxu0 0.0
          %3135 = vmatprep.subr.mxu0 0.0
          %3136 = vmatpush1.msra.mxu0 0.0
          %3137 = vmatprep.subr.mxu0 0.0
          %3138 = vmatpush1.msra.mxu0 0.0
          %3139 = vmatprep.subr.mxu0 0.0
          %3140 = vmatpush1.msra.mxu0 0.0
          %3141 = vmatprep.subr.mxu0 0.0
          %3142 = vmatpush1.msra.mxu0 0.0
          %3143 = vmatprep.subr.mxu0 0.0
          %3144 = vmatpush1.msra.mxu0 0.0
          %3145 = vmatprep.subr.mxu0 0.0
          %3146 = vmatpush1.msra.mxu0 0.0
          %3147 = vmatprep.subr.mxu0 0.0
          %3148 = vmatpush1.msra.mxu0 0.0
          %3149 = vmatprep.subr.mxu0 0.0
          %3150 = vmatpush1.msra.mxu0 0.0
          %3151 = vmatprep.subr.mxu0 0.0
          %3152 = vmatpush1.msra.mxu0 0.0
          %3153 = vmatprep.subr.mxu0 0.0
          %3154 = vmatpush1.msra.mxu0 0.0
          %3155 = vmatprep.subr.mxu0 0.0
          %3156 = vmatpush1.msra.mxu0 0.0
          %3157 = vmatprep.subr.mxu0 0.0
          %3158 = vmatpush1.msra.mxu0 0.0
          %3159 = vmatprep.subr.mxu0 0.0
          %3160 = vmatpush1.msra.mxu0 0.0
          %3161 = vmatprep.subr.mxu0 0.0
          %3162 = vmatpush1.msra.mxu0 0.0
          %3163 = vmatprep.subr.mxu0 0.0
          %3164 = vmatpush1.msra.mxu0 0.0
          %3165 = vmatprep.subr.mxu0 0.0
          %3166 = vmatpush1.msra.mxu0 0.0
          %3167 = vmatprep.mubr.f32.mxu0 0.0
          %3168 = vmatmul.mubr.f32.gmra.mrb[0].mxu0 %v3095
          %v3169 = vpop.f32.mrb[0].mxu0
          %v3170 = vadd.f32 0.0, %v3169
          %v3171 = vpop.f32.mrb[0].mxu0
          %v3172 = vadd.f32 0.0, %v3171
          %3173 = vdwg.mxu0
          %3174 = vmatprep.subr.mxu0 0.0
          %3175 = vmatpush1.msra.mxu0 %v3101
          %3176 = vmatprep.subr.mxu0 0.0
          %3177 = vmatpush1.msra.mxu0 0.0
          %3178 = vmatprep.subr.mxu0 0.0
          %3179 = vmatpush1.msra.mxu0 0.0
          %3180 = vmatprep.subr.mxu0 0.0
          %3181 = vmatpush1.msra.mxu0 0.0
          %3182 = vmatprep.subr.mxu0 0.0
          %3183 = vmatpush1.msra.mxu0 0.0
          %3184 = vmatprep.subr.mxu0 0.0
          %3185 = vmatpush1.msra.mxu0 0.0
          %3186 = vmatprep.subr.mxu0 0.0
          %3187 = vmatpush1.msra.mxu0 0.0
          %3188 = vmatprep.subr.mxu0 0.0
          %3189 = vmatpush1.msra.mxu0 0.0
          %3190 = vmatprep.subr.mxu0 0.0
          %3191 = vmatpush1.msra.mxu0 0.0
          %3192 = vmatprep.subr.mxu0 0.0
          %3193 = vmatpush1.msra.mxu0 0.0
          %3194 = vmatprep.subr.mxu0 0.0
          %3195 = vmatpush1.msra.mxu0 0.0
          %3196 = vmatprep.subr.mxu0 0.0
          %3197 = vmatpush1.msra.mxu0 0.0
          %3198 = vmatprep.subr.mxu0 0.0
          %3199 = vmatpush1.msra.mxu0 0.0
          %3200 = vmatprep.subr.mxu0 0.0
          %3201 = vmatpush1.msra.mxu0 0.0
          %3202 = vmatprep.subr.mxu0 0.0
          %3203 = vmatpush1.msra.mxu0 0.0
          %3204 = vmatprep.subr.mxu0 0.0
          %3205 = vmatpush1.msra.mxu0 0.0
          %3206 = vmatprep.subr.mxu0 0.0
          %3207 = vmatpush1.msra.mxu0 0.0
          %3208 = vmatprep.subr.mxu0 0.0
          %3209 = vmatpush1.msra.mxu0 0.0
          %3210 = vmatprep.subr.mxu0 0.0
          %3211 = vmatpush1.msra.mxu0 0.0
          %3212 = vmatprep.subr.mxu0 0.0
          %3213 = vmatpush1.msra.mxu0 0.0
          %3214 = vmatprep.subr.mxu0 0.0
          %3215 = vmatpush1.msra.mxu0 0.0
          %3216 = vmatprep.subr.mxu0 0.0
          %3217 = vmatpush1.msra.mxu0 0.0
          %3218 = vmatprep.subr.mxu0 0.0
          %3219 = vmatpush1.msra.mxu0 0.0
          %3220 = vmatprep.subr.mxu0 0.0
          %3221 = vmatpush1.msra.mxu0 0.0
          %3222 = vmatprep.subr.mxu0 0.0
          %3223 = vmatpush1.msra.mxu0 0.0
          %3224 = vmatprep.subr.mxu0 0.0
          %3225 = vmatpush1.msra.mxu0 0.0
          %3226 = vmatprep.subr.mxu0 0.0
          %3227 = vmatpush1.msra.mxu0 0.0
          %3228 = vmatprep.subr.mxu0 0.0
          %3229 = vmatpush1.msra.mxu0 0.0
          %3230 = vmatprep.subr.mxu0 0.0
          %3231 = vmatpush1.msra.mxu0 0.0
          %3232 = vmatprep.subr.mxu0 0.0
          %3233 = vmatpush1.msra.mxu0 0.0
          %3234 = vmatprep.subr.mxu0 0.0
          %3235 = vmatpush1.msra.mxu0 0.0
          %3236 = vmatprep.subr.mxu0 0.0
          %3237 = vmatpush1.msra.mxu0 0.0
          %3238 = vmatprep.mubr.f32.mxu0 0.0
          %3239 = vmatmul.mubr.f32.gmra.mrb[0].mxu0 %v3095
          %v3240 = vpop.f32.mrb[0].mxu0
          %v3241 = vadd.f32 0.0, %v3240
          %v3242 = vpop.f32.mrb[0].mxu0
          %3243 = vdwg.mxu0
          %v3244 = vadd.f32 %v3070, %v3170
          %v3245 = vadd.f32 %v3071, %v3172
          %v3246 = vadd.f32 %v3072, %v3241
          %v3247 = vld [vmem:[#allocation12] sm:$0xf]
          %v3248 = vld [vmem:[%s2000 + $0x4] sm:$0xff]
          %v3249 = vld [vmem:[%s2000 + $0xc] sm:$0xff]
          %3251 = vrot.lane.b32.xlu0 %v3247, 100
          %v3252 = vpop.permute.xlu0 %3251
          %v3255 = vcombine.high %v3248, %v3248
          %v3256 = vcombine.high %v3249, %v3249
          %3257 = vrot.lane.b32.xlu0 %v3248, 110
          %v3258 = vpop.permute.xlu0 %3257
          %3259 = vrot.lane.b32.xlu0 %v3255, 110
          %v3260 = vpop.permute.xlu0 %3259
          %3261 = vrot.lane.b32.xlu0 %v3249, 110
          %v3262 = vpop.permute.xlu0 %3261
          %3263 = vrot.lane.b32.xlu0 %v3256, 110
          %v3264 = vpop.permute.xlu0 %3263
          %vm3265 = vcmask 900096
          %v3266 = vsel %vm3265, %v3258, %v3260
          %v3267 = vsel %vm3265, %v3260, %v3262
          %v3268 = vsel %vm3265, %v3262, %v3264
          %v3269 = vsel %vm2078, %v3252, 0
          %v3271 = vsel %vm2081, %v3266, 0
          %v3273 = vsel %vm2081, %v3267, 0
          %v3275 = vsel %vm2081, %v3268, 0
          %3277 = vmatprep.subr.mxu0 %v3273
          %3278 = vmatpush1.msra.mxu0 %v3271
          %3279 = vmatprep.subr.mxu0 0.0
          %3280 = vmatpush1.msra.mxu0 0.0
          %3281 = vmatprep.subr.mxu0 0.0
          %3282 = vmatpush1.msra.mxu0 0.0
          %3283 = vmatprep.subr.mxu0 0.0
          %3284 = vmatpush1.msra.mxu0 0.0
          %3285 = vmatprep.subr.mxu0 0.0
          %3286 = vmatpush1.msra.mxu0 0.0
          %3287 = vmatprep.subr.mxu0 0.0
          %3288 = vmatpush1.msra.mxu0 0.0
          %3289 = vmatprep.subr.mxu0 0.0
          %3290 = vmatpush1.msra.mxu0 0.0
          %3291 = vmatprep.subr.mxu0 0.0
          %3292 = vmatpush1.msra.mxu0 0.0
          %3293 = vmatprep.subr.mxu0 0.0
          %3294 = vmatpush1.msra.mxu0 0.0
          %3295 = vmatprep.subr.mxu0 0.0
          %3296 = vmatpush1.msra.mxu0 0.0
          %3297 = vmatprep.subr.mxu0 0.0
          %3298 = vmatpush1.msra.mxu0 0.0
          %3299 = vmatprep.subr.mxu0 0.0
          %3300 = vmatpush1.msra.mxu0 0.0
          %3301 = vmatprep.subr.mxu0 0.0
          %3302 = vmatpush1.msra.mxu0 0.0
          %3303 = vmatprep.subr.mxu0 0.0
          %3304 = vmatpush1.msra.mxu0 0.0
          %3305 = vmatprep.subr.mxu0 0.0
          %3306 = vmatpush1.msra.mxu0 0.0
          %3307 = vmatprep.subr.mxu0 0.0
          %3308 = vmatpush1.msra.mxu0 0.0
          %3309 = vmatprep.subr.mxu0 0.0
          %3310 = vmatpush1.msra.mxu0 0.0
          %3311 = vmatprep.subr.mxu0 0.0
          %3312 = vmatpush1.msra.mxu0 0.0
          %3313 = vmatprep.subr.mxu0 0.0
          %3314 = vmatpush1.msra.mxu0 0.0
          %3315 = vmatprep.subr.mxu0 0.0
          %3316 = vmatpush1.msra.mxu0 0.0
          %3317 = vmatprep.subr.mxu0 0.0
          %3318 = vmatpush1.msra.mxu0 0.0
          %3319 = vmatprep.subr.mxu0 0.0
          %3320 = vmatpush1.msra.mxu0 0.0
          %3321 = vmatprep.subr.mxu0 0.0
          %3322 = vmatpush1.msra.mxu0 0.0
          %3323 = vmatprep.subr.mxu0 0.0
          %3324 = vmatpush1.msra.mxu0 0.0
          %3325 = vmatprep.subr.mxu0 0.0
          %3326 = vmatpush1.msra.mxu0 0.0
          %3327 = vmatprep.subr.mxu0 0.0
          %3328 = vmatpush1.msra.mxu0 0.0
          %3329 = vmatprep.subr.mxu0 0.0
          %3330 = vmatpush1.msra.mxu0 0.0
          %3331 = vmatprep.subr.mxu0 0.0
          %3332 = vmatpush1.msra.mxu0 0.0
          %3333 = vmatprep.subr.mxu0 0.0
          %3334 = vmatpush1.msra.mxu0 0.0
          %3335 = vmatprep.subr.mxu0 0.0
          %3336 = vmatpush1.msra.mxu0 0.0
          %3337 = vmatprep.subr.mxu0 0.0
          %3338 = vmatpush1.msra.mxu0 0.0
          %3339 = vmatprep.subr.mxu0 0.0
          %3340 = vmatpush1.msra.mxu0 0.0
          %3341 = vmatprep.mubr.f32.mxu0 0.0
          %3342 = vmatmul.mubr.f32.gmra.mrb[0].mxu0 %v3269
          %v3343 = vpop.f32.mrb[0].mxu0
          %v3344 = vadd.f32 0.0, %v3343
          %v3345 = vpop.f32.mrb[0].mxu0
          %v3346 = vadd.f32 0.0, %v3345
          %3347 = vdwg.mxu0
          %3348 = vmatprep.subr.mxu0 0.0
          %3349 = vmatpush1.msra.mxu0 %v3275
          %3350 = vmatprep.subr.mxu0 0.0
          %3351 = vmatpush1.msra.mxu0 0.0
          %3352 = vmatprep.subr.mxu0 0.0
          %3353 = vmatpush1.msra.mxu0 0.0
          %3354 = vmatprep.subr.mxu0 0.0
          %3355 = vmatpush1.msra.mxu0 0.0
          %3356 = vmatprep.subr.mxu0 0.0
          %3357 = vmatpush1.msra.mxu0 0.0
          %3358 = vmatprep.subr.mxu0 0.0
          %3359 = vmatpush1.msra.mxu0 0.0
          %3360 = vmatprep.subr.mxu0 0.0
          %3361 = vmatpush1.msra.mxu0 0.0
          %3362 = vmatprep.subr.mxu0 0.0
          %3363 = vmatpush1.msra.mxu0 0.0
          %3364 = vmatprep.subr.mxu0 0.0
          %3365 = vmatpush1.msra.mxu0 0.0
          %3366 = vmatprep.subr.mxu0 0.0
          %3367 = vmatpush1.msra.mxu0 0.0
          %3368 = vmatprep.subr.mxu0 0.0
          %3369 = vmatpush1.msra.mxu0 0.0
          %3370 = vmatprep.subr.mxu0 0.0
          %3371 = vmatpush1.msra.mxu0 0.0
          %3372 = vmatprep.subr.mxu0 0.0
          %3373 = vmatpush1.msra.mxu0 0.0
          %3374 = vmatprep.subr.mxu0 0.0
          %3375 = vmatpush1.msra.mxu0 0.0
          %3376 = vmatprep.subr.mxu0 0.0
          %3377 = vmatpush1.msra.mxu0 0.0
          %3378 = vmatprep.subr.mxu0 0.0
          %3379 = vmatpush1.msra.mxu0 0.0
          %3380 = vmatprep.subr.mxu0 0.0
          %3381 = vmatpush1.msra.mxu0 0.0
          %3382 = vmatprep.subr.mxu0 0.0
          %3383 = vmatpush1.msra.mxu0 0.0
          %3384 = vmatprep.subr.mxu0 0.0
          %3385 = vmatpush1.msra.mxu0 0.0
          %3386 = vmatprep.subr.mxu0 0.0
          %3387 = vmatpush1.msra.mxu0 0.0
          %3388 = vmatprep.subr.mxu0 0.0
          %3389 = vmatpush1.msra.mxu0 0.0
          %3390 = vmatprep.subr.mxu0 0.0
          %3391 = vmatpush1.msra.mxu0 0.0
          %3392 = vmatprep.subr.mxu0 0.0
          %3393 = vmatpush1.msra.mxu0 0.0
          %3394 = vmatprep.subr.mxu0 0.0
          %3395 = vmatpush1.msra.mxu0 0.0
          %3396 = vmatprep.subr.mxu0 0.0
          %3397 = vmatpush1.msra.mxu0 0.0
          %3398 = vmatprep.subr.mxu0 0.0
          %3399 = vmatpush1.msra.mxu0 0.0
          %3400 = vmatprep.subr.mxu0 0.0
          %3401 = vmatpush1.msra.mxu0 0.0
          %3402 = vmatprep.subr.mxu0 0.0
          %3403 = vmatpush1.msra.mxu0 0.0
          %3404 = vmatprep.subr.mxu0 0.0
          %3405 = vmatpush1.msra.mxu0 0.0
          %3406 = vmatprep.subr.mxu0 0.0
          %3407 = vmatpush1.msra.mxu0 0.0
          %3408 = vmatprep.subr.mxu0 0.0
          %3409 = vmatpush1.msra.mxu0 0.0
          %3410 = vmatprep.subr.mxu0 0.0
          %3411 = vmatpush1.msra.mxu0 0.0
          %3412 = vmatprep.mubr.f32.mxu0 0.0
          %3413 = vmatmul.mubr.f32.gmra.mrb[0].mxu0 %v3269
          %v3414 = vpop.f32.mrb[0].mxu0
          %v3415 = vadd.f32 0.0, %v3414
          %v3416 = vpop.f32.mrb[0].mxu0
          %3417 = vdwg.mxu0
          %v3418 = vadd.f32 %v3244, %v3344
          %v3419 = vadd.f32 %v3245, %v3346
          %v3420 = vadd.f32 %v3246, %v3415
          %v3421 = vld [vmem:[#allocation12] sm:$0xf]
          %v3422 = vld [vmem:[%s2000 + $0x4] sm:$0xff]
          %v3423 = vld [vmem:[%s2000 + $0xc] sm:$0xff]
          %3425 = vrot.lane.b32.xlu0 %v3421, 96
          %v3426 = vpop.permute.xlu0 %3425
          %v3429 = vcombine.high %v3422, %v3422
          %v3430 = vcombine.high %v3423, %v3423
          %3431 = vrot.lane.b32.xlu0 %v3422, 109
          %v3432 = vpop.permute.xlu0 %3431
          %3433 = vrot.lane.b32.xlu0 %v3429, 109
          %v3434 = vpop.permute.xlu0 %3433
          %3435 = vrot.lane.b32.xlu0 %v3423, 109
          %v3436 = vpop.permute.xlu0 %3435
          %3437 = vrot.lane.b32.xlu0 %v3430, 109
          %v3438 = vpop.permute.xlu0 %3437
          %vm3439 = vcmask 891904
          %v3440 = vsel %vm3439, %v3432, %v3434
          %v3441 = vsel %vm3439, %v3434, %v3436
          %v3442 = vsel %vm3439, %v3436, %v3438
          %v3443 = vsel %vm2078, %v3426, 0
          %v3445 = vsel %vm2081, %v3440, 0
          %v3447 = vsel %vm2081, %v3441, 0
          %v3449 = vsel %vm2081, %v3442, 0
          %3451 = vmatprep.subr.mxu0 %v3447
          %3452 = vmatpush1.msra.mxu0 %v3445
          %3453 = vmatprep.subr.mxu0 0.0
          %3454 = vmatpush1.msra.mxu0 0.0
          %3455 = vmatprep.subr.mxu0 0.0
          %3456 = vmatpush1.msra.mxu0 0.0
          %3457 = vmatprep.subr.mxu0 0.0
          %3458 = vmatpush1.msra.mxu0 0.0
          %3459 = vmatprep.subr.mxu0 0.0
          %3460 = vmatpush1.msra.mxu0 0.0
          %3461 = vmatprep.subr.mxu0 0.0
          %3462 = vmatpush1.msra.mxu0 0.0
          %3463 = vmatprep.subr.mxu0 0.0
          %3464 = vmatpush1.msra.mxu0 0.0
          %3465 = vmatprep.subr.mxu0 0.0
          %3466 = vmatpush1.msra.mxu0 0.0
          %3467 = vmatprep.subr.mxu0 0.0
          %3468 = vmatpush1.msra.mxu0 0.0
          %3469 = vmatprep.subr.mxu0 0.0
          %3470 = vmatpush1.msra.mxu0 0.0
          %3471 = vmatprep.subr.mxu0 0.0
          %3472 = vmatpush1.msra.mxu0 0.0
          %3473 = vmatprep.subr.mxu0 0.0
          %3474 = vmatpush1.msra.mxu0 0.0
          %3475 = vmatprep.subr.mxu0 0.0
          %3476 = vmatpush1.msra.mxu0 0.0
          %3477 = vmatprep.subr.mxu0 0.0
          %3478 = vmatpush1.msra.mxu0 0.0
          %3479 = vmatprep.subr.mxu0 0.0
          %3480 = vmatpush1.msra.mxu0 0.0
          %3481 = vmatprep.subr.mxu0 0.0
          %3482 = vmatpush1.msra.mxu0 0.0
          %3483 = vmatprep.subr.mxu0 0.0
          %3484 = vmatpush1.msra.mxu0 0.0
          %3485 = vmatprep.subr.mxu0 0.0
          %3486 = vmatpush1.msra.mxu0 0.0
          %3487 = vmatprep.subr.mxu0 0.0
          %3488 = vmatpush1.msra.mxu0 0.0
          %3489 = vmatprep.subr.mxu0 0.0
          %3490 = vmatpush1.msra.mxu0 0.0
          %3491 = vmatprep.subr.mxu0 0.0
          %3492 = vmatpush1.msra.mxu0 0.0
          %3493 = vmatprep.subr.mxu0 0.0
          %3494 = vmatpush1.msra.mxu0 0.0
          %3495 = vmatprep.subr.mxu0 0.0
          %3496 = vmatpush1.msra.mxu0 0.0
          %3497 = vmatprep.subr.mxu0 0.0
          %3498 = vmatpush1.msra.mxu0 0.0
          %3499 = vmatprep.subr.mxu0 0.0
          %3500 = vmatpush1.msra.mxu0 0.0
          %3501 = vmatprep.subr.mxu0 0.0
          %3502 = vmatpush1.msra.mxu0 0.0
          %3503 = vmatprep.subr.mxu0 0.0
          %3504 = vmatpush1.msra.mxu0 0.0
          %3505 = vmatprep.subr.mxu0 0.0
          %3506 = vmatpush1.msra.mxu0 0.0
          %3507 = vmatprep.subr.mxu0 0.0
          %3508 = vmatpush1.msra.mxu0 0.0
          %3509 = vmatprep.subr.mxu0 0.0
          %3510 = vmatpush1.msra.mxu0 0.0
          %3511 = vmatprep.subr.mxu0 0.0
          %3512 = vmatpush1.msra.mxu0 0.0
          %3513 = vmatprep.subr.mxu0 0.0
          %3514 = vmatpush1.msra.mxu0 0.0
          %3515 = vmatprep.mubr.f32.mxu0 0.0
          %3516 = vmatmul.mubr.f32.gmra.mrb[0].mxu0 %v3443
          %v3517 = vpop.f32.mrb[0].mxu0
          %v3518 = vadd.f32 0.0, %v3517
          %v3519 = vpop.f32.mrb[0].mxu0
          %v3520 = vadd.f32 0.0, %v3519
          %3521 = vdwg.mxu0
          %3522 = vmatprep.subr.mxu0 0.0
          %3523 = vmatpush1.msra.mxu0 %v3449
          %3524 = vmatprep.subr.mxu0 0.0
          %3525 = vmatpush1.msra.mxu0 0.0
          %3526 = vmatprep.subr.mxu0 0.0
          %3527 = vmatpush1.msra.mxu0 0.0
          %3528 = vmatprep.subr.mxu0 0.0
          %3529 = vmatpush1.msra.mxu0 0.0
          %3530 = vmatprep.subr.mxu0 0.0
          %3531 = vmatpush1.msra.mxu0 0.0
          %3532 = vmatprep.subr.mxu0 0.0
          %3533 = vmatpush1.msra.mxu0 0.0
          %3534 = vmatprep.subr.mxu0 0.0
          %3535 = vmatpush1.msra.mxu0 0.0
          %3536 = vmatprep.subr.mxu0 0.0
          %3537 = vmatpush1.msra.mxu0 0.0
          %3538 = vmatprep.subr.mxu0 0.0
          %3539 = vmatpush1.msra.mxu0 0.0
          %3540 = vmatprep.subr.mxu0 0.0
          %3541 = vmatpush1.msra.mxu0 0.0
          %3542 = vmatprep.subr.mxu0 0.0
          %3543 = vmatpush1.msra.mxu0 0.0
          %3544 = vmatprep.subr.mxu0 0.0
          %3545 = vmatpush1.msra.mxu0 0.0
          %3546 = vmatprep.subr.mxu0 0.0
          %3547 = vmatpush1.msra.mxu0 0.0
          %3548 = vmatprep.subr.mxu0 0.0
          %3549 = vmatpush1.msra.mxu0 0.0
          %3550 = vmatprep.subr.mxu0 0.0
          %3551 = vmatpush1.msra.mxu0 0.0
          %3552 = vmatprep.subr.mxu0 0.0
          %3553 = vmatpush1.msra.mxu0 0.0
          %3554 = vmatprep.subr.mxu0 0.0
          %3555 = vmatpush1.msra.mxu0 0.0
          %3556 = vmatprep.subr.mxu0 0.0
          %3557 = vmatpush1.msra.mxu0 0.0
          %3558 = vmatprep.subr.mxu0 0.0
          %3559 = vmatpush1.msra.mxu0 0.0
          %3560 = vmatprep.subr.mxu0 0.0
          %3561 = vmatpush1.msra.mxu0 0.0
          %3562 = vmatprep.subr.mxu0 0.0
          %3563 = vmatpush1.msra.mxu0 0.0
          %3564 = vmatprep.subr.mxu0 0.0
          %3565 = vmatpush1.msra.mxu0 0.0
          %3566 = vmatprep.subr.mxu0 0.0
          %3567 = vmatpush1.msra.mxu0 0.0
          %3568 = vmatprep.subr.mxu0 0.0
          %3569 = vmatpush1.msra.mxu0 0.0
          %3570 = vmatprep.subr.mxu0 0.0
          %3571 = vmatpush1.msra.mxu0 0.0
          %3572 = vmatprep.subr.mxu0 0.0
          %3573 = vmatpush1.msra.mxu0 0.0
          %3574 = vmatprep.subr.mxu0 0.0
          %3575 = vmatpush1.msra.mxu0 0.0
          %3576 = vmatprep.subr.mxu0 0.0
          %3577 = vmatpush1.msra.mxu0 0.0
          %3578 = vmatprep.subr.mxu0 0.0
          %3579 = vmatpush1.msra.mxu0 0.0
          %3580 = vmatprep.subr.mxu0 0.0
          %3581 = vmatpush1.msra.mxu0 0.0
          %3582 = vmatprep.subr.mxu0 0.0
          %3583 = vmatpush1.msra.mxu0 0.0
          %3584 = vmatprep.subr.mxu0 0.0
          %3585 = vmatpush1.msra.mxu0 0.0
          %3586 = vmatprep.mubr.f32.mxu0 0.0
          %3587 = vmatmul.mubr.f32.gmra.mrb[0].mxu0 %v3443
          %v3588 = vpop.f32.mrb[0].mxu0
          %v3589 = vadd.f32 0.0, %v3588
          %v3590 = vpop.f32.mrb[0].mxu0
          %3591 = vdwg.mxu0
          %v3592 = vadd.f32 %v3418, %v3518
          %v3593 = vadd.f32 %v3419, %v3520
          %v3594 = vadd.f32 %v3420, %v3589
          %v3595 = vld [vmem:[%s296 + $0x4] sm:$0xff]
          %v3596 = vld [vmem:[%s296 + $0xc] sm:$0xf]
          %v3598 = vcombine.high %v3595, %v3595
          %v3600 = vadd.f32 %v3592, %v3595
          %v3601 = vadd.f32 %v3593, %v3598
          %v3602 = vadd.f32 %v3594, %v3596
          %v3605 = vcombine.low %v3600, %v3601
          %3607 = vst [vmem:[%s344] sm:$0xff] %v3605
          %3608 = vst [vmem:[%s344 + $0x8] sm:$0xf] %v3602
        $region80: #{tpu_custom_call.1} parent=43 // pred_fallthru
          _
        %s3609 = sand.u32 %s179, 1
        %s3610 = scalar_lea.sflag [#allocation9], %s3609
        %s3611 = sand.u32 %s179, 1
        %s3612 = smul.addr %s3611, 12
        %s3613 = scalar_lea.vmem [#allocation18], %s3612
        // Predicated region
        $region85: #{tpu_custom_call.1} parent=43 // pred_check
          %p3614 = pneg %p189
        $region86: #{tpu_custom_call.1} parent=43 // pred_check_branch
          %3616 = sbr.rel (%p3614) target = $region88
        $region87: #{tpu_custom_call.1} parent=43 // pred_region
          %s3617 = smul.u32 %s31, %s30
          %s3619 = ssub.s32 192, 192
          %3620 = vsyncadd %s3610, %s3619
          %s3621 = smul.addr %s3617, 3
          %s3622 = smul.addr %s3621, 64
          %s3623 = scalar_lea.hbm %s6, %s3622
          %s3625 = sshll.u32 %s3613, 4
          %s3626 = int_to_ptr.vmem [resolvable:$true] %s3625
          %3628 = dma.vmem_to_hbm [thread:$0]  %s3626, 192, %s3623, %s3610
        $region88: #{tpu_custom_call.1} parent=43 // pred_fallthru
          _
      $region44: #{tpu_custom_call.1} parent=5 // pred_fallthru
        _
      %p3629 = scmp.le.s32.totalorder 2, %s21
      // Predicated region
      $region89: #{tpu_custom_call.1} parent=5 // pred_check
        %p3630 = pneg %p3629
      $region90: #{tpu_custom_call.1} parent=5 // pred_check_branch
        %3632 = sbr.rel (%p3630) target = $region92
      $region91: #{tpu_custom_call.1} parent=5 // pred_region
        %s3633 = ssub.s32 %s21, 2
        // Predicated region
        $region93: #{tpu_custom_call.1} parent=91 // pred_check
          %p3634 = pneg %p195
        $region94: #{tpu_custom_call.1} parent=91 // pred_check_branch
          %3636 = sbr.rel (%p3634) target = $region96
        $region95: #{tpu_custom_call.1} parent=91 // pred_region
          %s3637 = sand.u32 %s180, 1
          %s3638 = scalar_lea.sflag [#allocation9], %s3637
          %s3639 = sand.u32 %s180, 1
          %s3640 = smul.addr %s3639, 12
          %s3641 = scalar_lea.vmem [#allocation18], %s3640
          %3642 = dma.done %s3638, 192
        $region96: #{tpu_custom_call.1} parent=91 // pred_fallthru
          _
      $region92: #{tpu_custom_call.1} parent=5 // pred_fallthru
        _
    $region6: #{tpu_custom_call.1} parent=1 // loop_footer
      %s25 = sadd.s32 1, %s21
    $region7: #{tpu_custom_call.1} parent=1 // loop_footer_branch
      %20 = sbr.rel target = $region3
    $region8: #{tpu_custom_call.1} parent=1 // loop_exit
      _
    %3643 = vsyncpa [#allocation8], 1
    %s3644 = scalar_lea.sflag [#allocation8], 1
    %3645 = vsyncpa %s3644, 1
    %3646 = vsyncpa [#allocation11], 1
    %3647 = vsyncpa [#allocation14], 1
    %3648 = vsyncpa [#allocation17], 1
    %3649 = vsyncpa [#allocation9], 1
    %s3650 = scalar_lea.sflag [#allocation9], 1
    %3651 = vsyncpa %s3650, 1

</llo_original>
